<compile_context>
chip_gen: v7x
topology: tpu7x:2x2x1
jax: 0.10.0
libtpu: 0.0.40
codegen_flags: <defaults>
</compile_context>

<pallas_src>
import functools

import jax
import jax.numpy as jnp
from jax.experimental import pallas as pl
from jax.experimental.pallas import tpu as pltpu


# ---------------------------------------------------------------------------
# Fused SigLIP-style encoder kernel: grid = (batch_tiles, layer)
# ---------------------------------------------------------------------------
def fused_encoder_kernel(
    patches_ref,                      # (bt, S, Cp) f32    block by batch tile
    patch_w_ref, patch_b_ref,         # (Cp, d) bf16, (1, d) f32
    pos_ref,                          # (S, d) f32
    ln1_g_ref, ln1_b_ref,             # (1, 1, d)          block by layer
    wq_ref, wk_ref, wv_ref,           # (1, d, d) bf16
    bq_ref, bk_ref, bv_ref,           # (1, 1, d)
    wo_ref, bo_ref,                   # (1, d, d) bf16, (1, 1, d)
    ln2_g_ref, ln2_b_ref,             # (1, 1, d)
    w1_ref, b1_ref,                   # (1, d, mlp) bf16, (1, 1, mlp)
    w2_ref, b2_ref,                   # (1, mlp, d) bf16, (1, 1, d)
    post_g_ref, post_b_ref,           # (1, d)
    out_ref,                          # (bt, S, d) bf16    block by batch tile
    x_sc,                             # VMEM (bt*S, d) f32 resident activations
    *, hidden, heads, head_dim, eps,
):
    layer = pl.program_id(1)
    n_layers = pl.num_programs(1)
    bt, S, cp = patches_ref.shape
    d = hidden
    R = bt * S
    scale = 1.0 / (head_dim ** 0.5)
    bf16 = jnp.bfloat16

    def layer_norm(x, g, b):
        mu = jnp.mean(x, axis=-1, keepdims=True)
        xc = x - mu
        var = jnp.mean(xc * xc, axis=-1, keepdims=True)
        return xc * jax.lax.rsqrt(var + eps) * g + b

    # ---- patch embed (conv as matmul) + positional embedding: layer 0 only --
    @pl.when(layer == 0)
    def _():
        p = patches_ref[...].reshape(R, cp).astype(bf16)
        y = jnp.dot(p, patch_w_ref[...], preferred_element_type=jnp.float32)
        y = y + patch_b_ref[...]
        y = y.reshape(bt, S, d) + pos_ref[...]
        x_sc[...] = y.reshape(R, d)

    x = x_sc[...]                                            # (R, d) f32

    # ---- attention block -----------------------------------------------------
    h = layer_norm(x, ln1_g_ref[0], ln1_b_ref[0]).astype(bf16)
    q = jnp.dot(h, wq_ref[0], preferred_element_type=jnp.float32) + bq_ref[0]
    k = jnp.dot(h, wk_ref[0], preferred_element_type=jnp.float32) + bk_ref[0]
    v = jnp.dot(h, wv_ref[0], preferred_element_type=jnp.float32) + bv_ref[0]

    # Attention is computed per-image (batch dim of the einsum) so folding the
    # batch into the matmul rows above never mixes tokens across images.
    # TODO(synk): at production S/heads, switch this static head loop to
    # lax.fori_loop to bound live ranges of the per-head (bt, S, S) score tiles.
    head_outs = []
    for hh in range(heads):
        sl = slice(hh * head_dim, (hh + 1) * head_dim)
        qh = q[:, sl].astype(bf16).reshape(bt, S, head_dim)
        kh = k[:, sl].astype(bf16).reshape(bt, S, head_dim)
        vh = v[:, sl].astype(bf16).reshape(bt, S, head_dim)
        s = jnp.einsum('bqd,bkd->bqk', qh, kh,
                       preferred_element_type=jnp.float32) * scale
        m = jnp.max(s, axis=-1, keepdims=True)
        p_ = jnp.exp(s - m)
        p_ = p_ * pl.reciprocal(jnp.sum(p_, axis=-1, keepdims=True), approx=True)
        head_outs.append(jnp.einsum('bqk,bkd->bqd', p_.astype(bf16), vh,
                                    preferred_element_type=jnp.float32))
    attn = jnp.concatenate(head_outs, axis=-1).reshape(R, d)
    # single full-K output projection (not per-head)
    x = x + jnp.dot(attn.astype(bf16), wo_ref[0],
                    preferred_element_type=jnp.float32) + bo_ref[0]

    # ---- MLP block -------------------------------------------------------------
    h = layer_norm(x, ln2_g_ref[0], ln2_b_ref[0]).astype(bf16)
    y = jnp.dot(h, w1_ref[0], preferred_element_type=jnp.float32) + b1_ref[0]
    # tanh-approximate GELU (matches SigLIP gelu_pytorch_tanh); f32 VPU/EUP math
    c = 0.7978845608028654  # sqrt(2/pi)
    y = 0.5 * y * (1.0 + jnp.tanh(c * (y + 0.044715 * y * y * y)))
    x = x + jnp.dot(y.astype(bf16), w2_ref[0],
                    preferred_element_type=jnp.float32) + b2_ref[0]

    x_sc[...] = x

    # ---- final LayerNorm + writeback on the last layer step --------------------
    @pl.when(layer == n_layers - 1)
    def _():
        out = layer_norm(x, post_g_ref[...], post_b_ref[...])
        out_ref[...] = out.reshape(bt, S, d).astype(out_ref.dtype)


# ---------------------------------------------------------------------------
# Residual quantizer kernel: grid over row tiles; codebook resident full block
# ---------------------------------------------------------------------------
def rq_quantize_kernel(z_ref, cb_ref, feat_ref, code_ref, *, depth):
    z = z_ref[...].astype(jnp.float32)            # (TN, dim)
    cb = cb_ref[...]                              # (Kp, dim) f32 (padded rows 1e6)
    kp = cb.shape[0]
    cb_sq = jnp.sum(cb * cb, axis=-1)             # (Kp,)  hoisted out of depth loop

    residual = z
    acc = jnp.zeros_like(z)
    for dd in range(depth):
        # argmin_k ||r - c_k||^2 == argmin_k (||c_k||^2 - 2 r.c_k)
        # contract rhs dim 1 directly (no pre-transposed codebook input)
        dist = cb_sq[None, :] - 2.0 * jax.lax.dot_general(
            residual, cb, (((1,), (1,)), ((), ())),
            preferred_element_type=jnp.float32)                     # (TN, Kp)
        iota = jax.lax.broadcasted_iota(jnp.int32, dist.shape, 1)
        min_d = jnp.min(dist, axis=-1, keepdims=True)
        code = jnp.min(jnp.where(dist <= min_d, iota, kp), axis=-1)  # (TN,) int32
        # TODO(synk): at production K (~16384) replace this one-hot MXU gather with
        # jnp.take / DMA gather and stream K tiles with a running (min, argmin).
        onehot = (iota == code[:, None]).astype(jnp.float32)         # (TN, Kp)
        qv = jnp.dot(onehot, cb, preferred_element_type=jnp.float32)  # (TN, dim)
        acc = acc + qv
        residual = residual - qv
        code_ref[dd, :] = code        # lane-dense (TN is a multiple of 128)
    feat_ref[...] = acc


def p_rq_quantize(z, codebook, depth, row_tile=128):
    n, dim = z.shape
    n_pad = ((n + row_tile - 1) // row_tile) * row_tile
    k = codebook.shape[0]
    k_pad = ((k + 127) // 128) * 128
    z_p = jnp.pad(z, ((0, n_pad - n), (0, 0)))
    # pad codebook rows with a huge value so padded entries are never selected
    cb_p = jnp.pad(codebook, ((0, k_pad - k), (0, 0)), constant_values=1e6)
    n_tiles = n_pad // row_tile

    vmem_limit = int(
        2 * (row_tile * dim * (z_p.dtype.itemsize + 4) + depth * row_tile * 4)
        + 2 * k_pad * dim * 4              # resident codebook (double-buffer slot)
        + 4 * row_tile * k_pad * 4         # dist / iota / one-hot temporaries
    ) + (8 << 20)

    feat, codes = pl.pallas_call(
        functools.partial(rq_quantize_kernel, depth=depth),
        out_shape=(jax.ShapeDtypeStruct((n_pad, dim), jnp.float32),
                   jax.ShapeDtypeStruct((depth, n_pad), jnp.int32)),
        grid=(n_tiles,),
        in_specs=[pl.BlockSpec((row_tile, dim), lambda i: (i, 0)),
                  pl.BlockSpec((k_pad, dim), lambda i: (0, 0))],
        out_specs=(pl.BlockSpec((row_tile, dim), lambda i: (i, 0)),
                   pl.BlockSpec((depth, row_tile), lambda i: (0, i))),
        compiler_params=pltpu.CompilerParams(
            dimension_semantics=("parallel",),
            vmem_limit_bytes=vmem_limit),
    )(z_p, cb_p)
    return feat[:n], codes[:, :n]


# ---------------------------------------------------------------------------
# BlockSpec helpers
# ---------------------------------------------------------------------------
def _const_spec(shape):
    nd = len(shape)
    return pl.BlockSpec(tuple(shape), lambda b, l, _n=nd: (0,) * _n)


def _layer_spec(shape):
    nd = len(shape)
    return pl.BlockSpec((1,) + tuple(shape[1:]),
                        lambda b, l, _n=nd: (l,) + (0,) * (_n - 1))


# ---------------------------------------------------------------------------
# Vision tower (synthetic deterministic params; shapes mirror the module at a
# reduced scale: hidden=32 plays the role of the 1024 branch -> 16 tokens)
# ---------------------------------------------------------------------------
# TODO(synk): pretrained-weight loading / CLIPImageProcessor preprocessing are
# host-side and out of scope; synthetic parameters are used instead.
class RQVAESIGLIPTransformerVisionTowerPallas:
    def __init__(self, key,
                 image_size=16, patch=4, channels=3,
                 hidden=32, heads=4, layers=2, mlp=64,
                 codebook_size=64, rq_depth=4,
                 batch_tile=None):
        self.image_size = image_size
        self.patch = patch
        self.channels = channels
        self.hidden = hidden
        self.heads = heads
        self.head_dim = hidden // heads
        self.layers = layers
        self.mlp = mlp
        self.codebook_size = codebook_size
        self.rq_depth = rq_depth
        # batch_tile=None -> whole batch folded into the matmul rows (weights
        # streamed once per layer).  On v7x set batch_tile=ceil(bs/2) so the
        # leading 'parallel' grid axis has size 2 for the two TensorCores.
        self.batch_tile = batch_tile
        self.grid = image_size // patch                 # "patch_size" in forward
        self.image_tokens = self.grid * self.grid
        self.eps = 1e-6                                 # SigLIP LayerNorm eps

        def nrm(k, shape, scale=0.02):
            return scale * jax.random.normal(k, shape, dtype=jnp.float32)

        keys = iter(jax.random.split(key, 4 + 6 * layers))
        d, L = hidden, layers
        p = {}
        # matmul weights stored bf16 (native MXU inputs, half the DMA bytes);
        # biases / LN params / pos / codebook stay f32.
        p["patch_w"] = nrm(next(keys), (channels * patch * patch, d)).astype(jnp.bfloat16)
        p["patch_b"] = jnp.zeros((1, d), jnp.float32)
        p["pos"] = nrm(next(keys), (self.image_tokens, d))
        p["post_ln_g"] = jnp.ones((1, d), jnp.float32)
        p["post_ln_b"] = jnp.zeros((1, d), jnp.float32)
        p["codebook"] = nrm(next(keys), (codebook_size, d), scale=1.0)

        wq, wk, wv, wo, w1, w2 = [], [], [], [], [], []
        for _ in range(L):
            wq.append(nrm(next(keys), (d, d)))
            wk.append(nrm(next(keys), (d, d)))
            wv.append(nrm(next(keys), (d, d)))
            wo.append(nrm(next(keys), (d, d)))
            w1.append(nrm(next(keys), (d, mlp)))
            w2.append(nrm(next(keys), (mlp, d)))
        p["wq"] = jnp.stack(wq).astype(jnp.bfloat16)            # [L, d, d]
        p["wk"] = jnp.stack(wk).astype(jnp.bfloat16)
        p["wv"] = jnp.stack(wv).astype(jnp.bfloat16)
        p["wo"] = jnp.stack(wo).astype(jnp.bfloat16)
        p["w1"] = jnp.stack(w1).astype(jnp.bfloat16)            # [L, d, mlp]
        p["w2"] = jnp.stack(w2).astype(jnp.bfloat16)            # [L, mlp, d]
        p["bq"] = jnp.zeros((L, 1, d), jnp.float32)
        p["bk"] = jnp.zeros((L, 1, d), jnp.float32)
        p["bv"] = jnp.zeros((L, 1, d), jnp.float32)
        p["bo"] = jnp.zeros((L, 1, d), jnp.float32)
        p["b1"] = jnp.zeros((L, 1, mlp), jnp.float32)
        p["b2"] = jnp.zeros((L, 1, d), jnp.float32)
        p["ln1_g"] = jnp.ones((L, 1, d), jnp.float32)
        p["ln1_b"] = jnp.zeros((L, 1, d), jnp.float32)
        p["ln2_g"] = jnp.ones((L, 1, d), jnp.float32)
        p["ln2_b"] = jnp.zeros((L, 1, d), jnp.float32)
        self.params = p

    # ---- fused SigLIP-ish encoder + residual quantizer ----------------------
    def _encode_image(self, images):
        # images: NCHW [bs, C, H, W]  (PyTorch layout)
        bs = images.shape[0]
        c, ph, g = self.channels, self.patch, self.grid
        S, d, L, mlp = self.image_tokens, self.hidden, self.layers, self.mlp
        cp = c * ph * ph

        # patch extraction (pure layout glue): [bs, C, g, ph, g, ph] -> [bs, S, Cp]
        x = images.reshape(bs, c, g, ph, g, ph)
        patches = jnp.transpose(x, (0, 2, 4, 1, 3, 5)).reshape(bs, S, cp)

        bt = self.batch_tile or bs
        assert bs % bt == 0, "batch must divide by batch_tile"
        n_bt = bs // bt
        R = bt * S

        p = self.params

        # explicit VMEM budget: 2x streamed per-layer weights (double-buffer)
        # + resident consts + activation scratch + IO blocks, with headroom.
        layer_keys = ("ln1_g", "ln1_b", "wq", "wk", "wv", "bq", "bk", "bv",
                      "wo", "bo", "ln2_g", "ln2_b", "w1", "b1", "w2", "b2")
        const_keys = ("patch_w", "patch_b", "pos", "post_ln_g", "post_ln_b")
        _nb = lambda a: a.size * a.dtype.itemsize
        layer_bytes = sum(_nb(p[k]) // L for k in layer_keys)
        const_bytes = sum(_nb(p[k]) for k in const_keys)
        io_bytes = 2 * (bt * S * cp * 4 + bt * S * d * 2) + R * d * 4
        vmem_limit = int(2 * layer_bytes + 2 * const_bytes + io_bytes) * 2 + (8 << 20)

        enc = pl.pallas_call(
            functools.partial(fused_encoder_kernel,
                              hidden=d, heads=self.heads,
                              head_dim=self.head_dim, eps=self.eps),
            out_shape=jax.ShapeDtypeStruct((bs, S, d), jnp.bfloat16),
            grid=(n_bt, L),
            in_specs=[
                pl.BlockSpec((bt, S, cp), lambda b, l: (b, 0, 0)),   # patches
                _const_spec((cp, d)),                                # patch_w
                _const_spec((1, d)),                                 # patch_b
                _const_spec((S, d)),                                 # pos
                _layer_spec((L, 1, d)),                              # ln1_g
                _layer_spec((L, 1, d)),                              # ln1_b
                _layer_spec((L, d, d)),                              # wq
                _layer_spec((L, d, d)),                              # wk
                _layer_spec((L, d, d)),                              # wv
                _layer_spec((L, 1, d)),                              # bq
                _layer_spec((L, 1, d)),                              # bk
                _layer_spec((L, 1, d)),                              # bv
                _layer_spec((L, d, d)),                              # wo
                _layer_spec((L, 1, d)),                              # bo
                _layer_spec((L, 1, d)),                              # ln2_g
                _layer_spec((L, 1, d)),                              # ln2_b
                _layer_spec((L, d, mlp)),                            # w1
                _layer_spec((L, 1, mlp)),                            # b1
                _layer_spec((L, mlp, d)),                            # w2
                _layer_spec((L, 1, d)),                              # b2
                _const_spec((1, d)),                                 # post_ln_g
                _const_spec((1, d)),                                 # post_ln_b
            ],
            out_specs=pl.BlockSpec((bt, S, d), lambda b, l: (b, 0, 0)),
            scratch_shapes=[pltpu.VMEM((R, d), jnp.float32)],
            compiler_params=pltpu.CompilerParams(
                dimension_semantics=("parallel", "arbitrary"),
                vmem_limit_bytes=vmem_limit),
        )(patches, p["patch_w"], p["patch_b"], p["pos"],
          p["ln1_g"], p["ln1_b"],
          p["wq"], p["wk"], p["wv"], p["bq"], p["bk"], p["bv"],
          p["wo"], p["bo"],
          p["ln2_g"], p["ln2_b"], p["w1"], p["b1"], p["w2"], p["b2"],
          p["post_ln_g"], p["post_ln_b"])

        # ---- residual quantizer (bf16 handoff, f32 math inside) --------------
        z = enc.reshape(bs * S, d)
        feat, codes = p_rq_quantize(z, p["codebook"], self.rq_depth)
        # mimic encode_image outputs: (..., tokens[bs,g,g,depth], feats[bs,g,g,dim])
        image_features = feat.reshape(bs, g, g, d)
        tokens = codes.T.reshape(bs, g, g, self.rq_depth)
        return (None, tokens, image_features)

    # ---- forward: mirrors the PyTorch module ---------------------------------
    def forward(self, images, text_vocab_size):
        output = self._encode_image(images)
        image_features, tokens = output[-1], output[-2]
        bs, patch_size, _, dim = image_features.shape
        image_features = jnp.reshape(image_features, (bs, patch_size ** 2, dim))
        tokens = jnp.reshape(tokens, (bs, patch_size ** 2, -1)) + text_vocab_size
        return image_features, tokens


# ---------------------------------------------------------------------------

if __name__ == "__main__":
    key = jax.random.PRNGKey(0)
    k_params, k_img = jax.random.split(key)

    tower = RQVAESIGLIPTransformerVisionTowerPallas(k_params)

    # small NCHW input consistent with the module's preprocessing convention
    images = jax.random.normal(k_img, (2, 3, 16, 16), dtype=jnp.float32)
    text_vocab_size = 1000

    image_features, tokens = tower.forward(images, text_vocab_size)
    image_features = jax.block_until_ready(image_features)
    tokens = jax.block_until_ready(tokens)

    assert image_features.shape == (2, tower.image_tokens, tower.hidden)
    assert tokens.shape == (2, tower.image_tokens, tower.rq_depth)
    assert tokens.dtype == jnp.int32
    assert bool(jnp.all(tokens >= text_vocab_size))
    assert bool(jnp.all(jnp.isfinite(image_features)))

    print("KERNEL_OK")
</pallas_src>

<mosaic_0001>
module attributes {stable_mosaic.version = 11 : i64} {
  func.func @fused_encoder_kernel(%arg0: i32, %arg1: i32, %arg2: memref<2x16x48xf32, #tpu.memory_space<vmem>>, %arg3: memref<48x32xbf16, #tpu.memory_space<vmem>>, %arg4: memref<1x32xf32, #tpu.memory_space<vmem>>, %arg5: memref<16x32xf32, #tpu.memory_space<vmem>>, %arg6: memref<1x1x32xf32, #tpu.memory_space<vmem>>, %arg7: memref<1x1x32xf32, #tpu.memory_space<vmem>>, %arg8: memref<1x32x32xbf16, #tpu.memory_space<vmem>>, %arg9: memref<1x32x32xbf16, #tpu.memory_space<vmem>>, %arg10: memref<1x32x32xbf16, #tpu.memory_space<vmem>>, %arg11: memref<1x1x32xf32, #tpu.memory_space<vmem>>, %arg12: memref<1x1x32xf32, #tpu.memory_space<vmem>>, %arg13: memref<1x1x32xf32, #tpu.memory_space<vmem>>, %arg14: memref<1x32x32xbf16, #tpu.memory_space<vmem>>, %arg15: memref<1x1x32xf32, #tpu.memory_space<vmem>>, %arg16: memref<1x1x32xf32, #tpu.memory_space<vmem>>, %arg17: memref<1x1x32xf32, #tpu.memory_space<vmem>>, %arg18: memref<1x32x64xbf16, #tpu.memory_space<vmem>>, %arg19: memref<1x1x64xf32, #tpu.memory_space<vmem>>, %arg20: memref<1x64x32xbf16, #tpu.memory_space<vmem>>, %arg21: memref<1x1x32xf32, #tpu.memory_space<vmem>>, %arg22: memref<1x32xf32, #tpu.memory_space<vmem>>, %arg23: memref<1x32xf32, #tpu.memory_space<vmem>>, %arg24: memref<2x16x32xbf16, #tpu.memory_space<vmem>>, %arg25: memref<32x32xf32, #tpu.memory_space<vmem>>) attributes {dimension_semantics = [#tpu.dimension_semantics<parallel>, #tpu.dimension_semantics<arbitrary>], iteration_bounds = array<i64: 1, 2>, scalar_prefetch = 0 : i64, scratch_operands = 1 : i64, tpu.core_type = #tpu.core_type<tc>, window_params = [{transform_indices = @transform_0, window_bounds = array<i64: 2, 16, 48>}, {pipeline_mode = #tpu.pipeline_mode<synchronous>, transform_indices = @transform_1, window_bounds = array<i64: 48, 32>}, {pipeline_mode = #tpu.pipeline_mode<synchronous>, transform_indices = @transform_2, window_bounds = array<i64: 1, 32>}, {pipeline_mode = #tpu.pipeline_mode<synchronous>, transform_indices = @transform_3, window_bounds = array<i64: 16, 32>}, {transform_indices = @transform_4, window_bounds = array<i64: 1, 1, 32>}, {transform_indices = @transform_5, window_bounds = array<i64: 1, 1, 32>}, {transform_indices = @transform_6, window_bounds = array<i64: 1, 32, 32>}, {transform_indices = @transform_7, window_bounds = array<i64: 1, 32, 32>}, {transform_indices = @transform_8, window_bounds = array<i64: 1, 32, 32>}, {transform_indices = @transform_9, window_bounds = array<i64: 1, 1, 32>}, {transform_indices = @transform_10, window_bounds = array<i64: 1, 1, 32>}, {transform_indices = @transform_11, window_bounds = array<i64: 1, 1, 32>}, {transform_indices = @transform_12, window_bounds = array<i64: 1, 32, 32>}, {transform_indices = @transform_13, window_bounds = array<i64: 1, 1, 32>}, {transform_indices = @transform_14, window_bounds = array<i64: 1, 1, 32>}, {transform_indices = @transform_15, window_bounds = array<i64: 1, 1, 32>}, {transform_indices = @transform_16, window_bounds = array<i64: 1, 32, 64>}, {transform_indices = @transform_17, window_bounds = array<i64: 1, 1, 64>}, {transform_indices = @transform_18, window_bounds = array<i64: 1, 64, 32>}, {transform_indices = @transform_19, window_bounds = array<i64: 1, 1, 32>}, {pipeline_mode = #tpu.pipeline_mode<synchronous>, transform_indices = @transform_20, window_bounds = array<i64: 1, 32>}, {pipeline_mode = #tpu.pipeline_mode<synchronous>, transform_indices = @transform_21, window_bounds = array<i64: 1, 32>}, {transform_indices = @transform_22, window_bounds = array<i64: 2, 16, 32>}]} {
    %c0_i32 = arith.constant 0 : i32
    %0 = arith.cmpi eq, %arg1, %c0_i32 : i32
    %1 = arith.extui %0 : i1 to i32
    %c0_i32_0 = arith.constant 0 : i32
    %2 = arith.cmpi ne, %1, %c0_i32_0 : i32
    scf.if %2 {
      %c0_92 = arith.constant 0 : index
      %c0_93 = arith.constant 0 : index
      %c0_94 = arith.constant 0 : index
      %215 = vector.load %arg2[%c0_92, %c0_93, %c0_94] : memref<2x16x48xf32, #tpu.memory_space<vmem>>, vector<2x16x48xf32>
      %216 = vector.shape_cast %215 : vector<2x16x48xf32> to vector<32x48xf32>
      %217 = arith.truncf %216 : vector<32x48xf32> to vector<32x48xbf16>
      %c0_95 = arith.constant 0 : index
      %c0_96 = arith.constant 0 : index
      %218 = vector.load %arg3[%c0_95, %c0_96] : memref<48x32xbf16, #tpu.memory_space<vmem>>, vector<48x32xbf16>
      %cst_97 = arith.constant dense<0.000000e+00> : vector<32x32xf32>
      %219 = tpu.matmul %217, %218, %cst_97 {dimension_numbers = #tpu.dot_dimension_numbers<[1], [0], [0], [1], [0, 0, 1, 1], [], []>} : vector<32x48xbf16>, vector<48x32xbf16>, vector<32x32xf32> -> vector<32x32xf32>
      %c0_98 = arith.constant 0 : index
      %c0_99 = arith.constant 0 : index
      %220 = vector.load %arg4[%c0_98, %c0_99] : memref<1x32xf32, #tpu.memory_space<vmem>>, vector<1x32xf32>
      %221 = vector.broadcast %220 : vector<1x32xf32> to vector<32x32xf32>
      %222 = arith.addf %219, %221 : vector<32x32xf32>
      %223 = vector.shape_cast %222 : vector<32x32xf32> to vector<2x16x32xf32>
      %c0_100 = arith.constant 0 : index
      %c0_101 = arith.constant 0 : index
      %224 = vector.load %arg5[%c0_100, %c0_101] : memref<16x32xf32, #tpu.memory_space<vmem>>, vector<16x32xf32>
      %225 = vector.shape_cast %224 : vector<16x32xf32> to vector<1x16x32xf32>
      %226 = vector.broadcast %225 : vector<1x16x32xf32> to vector<2x16x32xf32>
      %227 = arith.addf %223, %226 : vector<2x16x32xf32>
      %228 = vector.shape_cast %227 : vector<2x16x32xf32> to vector<32x32xf32>
      %c0_102 = arith.constant 0 : index
      %c0_103 = arith.constant 0 : index
      %229 = vector.load %arg25[%c0_102, %c0_103] : memref<32x32xf32, #tpu.memory_space<vmem>>, vector<32x32xf32>
      tpu.vector_store %arg25[%c0_102, %c0_103], %228 {strides = array<i32>} : memref<32x32xf32, #tpu.memory_space<vmem>>, vector<32x32xf32>,
    } else {
    }
    %c0 = arith.constant 0 : index
    %c0_1 = arith.constant 0 : index
    %3 = vector.load %arg25[%c0, %c0_1] : memref<32x32xf32, #tpu.memory_space<vmem>>, vector<32x32xf32>
    %c0_2 = arith.constant 0 : index
    %c0_3 = arith.constant 0 : index
    %c0_4 = arith.constant 0 : index
    %4 = vector.load %arg6[%c0_2, %c0_3, %c0_4] : memref<1x1x32xf32, #tpu.memory_space<vmem>>, vector<1x1x32xf32>
    %5 = vector.shape_cast %4 : vector<1x1x32xf32> to vector<1x32xf32>
    %c0_5 = arith.constant 0 : index
    %c0_6 = arith.constant 0 : index
    %c0_7 = arith.constant 0 : index
    %6 = vector.load %arg7[%c0_5, %c0_6, %c0_7] : memref<1x1x32xf32, #tpu.memory_space<vmem>>, vector<1x1x32xf32>
    %7 = vector.shape_cast %6 : vector<1x1x32xf32> to vector<1x32xf32>
    %cst = arith.constant dense<0.000000e+00> : vector<32xf32>
    %8 = vector.multi_reduction <add>, %3, %cst [1] : vector<32x32xf32> to vector<32xf32>
    %9 = vector.shape_cast %8 : vector<32xf32> to vector<32x1xf32>
    %cst_8 = arith.constant 3.200000e+01 : f32
    %10 = vector.broadcast %cst_8 : f32 to vector<32x1xf32>
    %11 = arith.divf %9, %10 : vector<32x1xf32>
    %12 = vector.broadcast %11 : vector<32x1xf32> to vector<32x32xf32>
    %13 = arith.subf %3, %12 : vector<32x32xf32>
    %14 = arith.mulf %13, %13 : vector<32x32xf32>
    %cst_9 = arith.constant dense<0.000000e+00> : vector<32xf32>
    %15 = vector.multi_reduction <add>, %14, %cst_9 [1] : vector<32x32xf32> to vector<32xf32>
    %16 = vector.shape_cast %15 : vector<32xf32> to vector<32x1xf32>
    %cst_10 = arith.constant 3.200000e+01 : f32
    %17 = vector.broadcast %cst_10 : f32 to vector<32x1xf32>
    %18 = arith.divf %16, %17 : vector<32x1xf32>
    %cst_11 = arith.constant 9.99999997E-7 : f32
    %19 = vector.broadcast %cst_11 : f32 to vector<32x1xf32>
    %20 = arith.addf %18, %19 : vector<32x1xf32>
    %21 = math.rsqrt %20 : vector<32x1xf32>
    %22 = vector.broadcast %21 : vector<32x1xf32> to vector<32x32xf32>
    %23 = arith.mulf %13, %22 : vector<32x32xf32>
    %24 = vector.broadcast %5 : vector<1x32xf32> to vector<32x32xf32>
    %25 = arith.mulf %23, %24 : vector<32x32xf32>
    %26 = vector.broadcast %7 : vector<1x32xf32> to vector<32x32xf32>
    %27 = arith.addf %25, %26 : vector<32x32xf32>
    %28 = arith.truncf %27 : vector<32x32xf32> to vector<32x32xbf16>
    %c0_12 = arith.constant 0 : index
    %c0_13 = arith.constant 0 : index
    %c0_14 = arith.constant 0 : index
    %29 = vector.load %arg8[%c0_12, %c0_13, %c0_14] : memref<1x32x32xbf16, #tpu.memory_space<vmem>>, vector<1x32x32xbf16>
    %30 = vector.shape_cast %29 : vector<1x32x32xbf16> to vector<32x32xbf16>
    %cst_15 = arith.constant dense<0.000000e+00> : vector<32x32xf32>
    %31 = tpu.matmul %28, %30, %cst_15 {dimension_numbers = #tpu.dot_dimension_numbers<[1], [0], [0], [1], [0, 0, 1, 1], [], []>} : vector<32x32xbf16>, vector<32x32xbf16>, vector<32x32xf32> -> vector<32x32xf32>
    %c0_16 = arith.constant 0 : index
    %c0_17 = arith.constant 0 : index
    %c0_18 = arith.constant 0 : index
    %32 = vector.load %arg11[%c0_16, %c0_17, %c0_18] : memref<1x1x32xf32, #tpu.memory_space<vmem>>, vector<1x1x32xf32>
    %33 = vector.shape_cast %32 : vector<1x1x32xf32> to vector<1x32xf32>
    %34 = vector.broadcast %33 : vector<1x32xf32> to vector<32x32xf32>
    %35 = arith.addf %31, %34 : vector<32x32xf32>
    %c0_19 = arith.constant 0 : index
    %c0_20 = arith.constant 0 : index
    %c0_21 = arith.constant 0 : index
    %36 = vector.load %arg9[%c0_19, %c0_20, %c0_21] : memref<1x32x32xbf16, #tpu.memory_space<vmem>>, vector<1x32x32xbf16>
    %37 = vector.shape_cast %36 : vector<1x32x32xbf16> to vector<32x32xbf16>
    %cst_22 = arith.constant dense<0.000000e+00> : vector<32x32xf32>
    %38 = tpu.matmul %28, %37, %cst_22 {dimension_numbers = #tpu.dot_dimension_numbers<[1], [0], [0], [1], [0, 0, 1, 1], [], []>} : vector<32x32xbf16>, vector<32x32xbf16>, vector<32x32xf32> -> vector<32x32xf32>
    %c0_23 = arith.constant 0 : index
    %c0_24 = arith.constant 0 : index
    %c0_25 = arith.constant 0 : index
    %39 = vector.load %arg12[%c0_23, %c0_24, %c0_25] : memref<1x1x32xf32, #tpu.memory_space<vmem>>, vector<1x1x32xf32>
    %40 = vector.shape_cast %39 : vector<1x1x32xf32> to vector<1x32xf32>
    %41 = vector.broadcast %40 : vector<1x32xf32> to vector<32x32xf32>
    %42 = arith.addf %38, %41 : vector<32x32xf32>
    %c0_26 = arith.constant 0 : index
    %c0_27 = arith.constant 0 : index
    %c0_28 = arith.constant 0 : index
    %43 = vector.load %arg10[%c0_26, %c0_27, %c0_28] : memref<1x32x32xbf16, #tpu.memory_space<vmem>>, vector<1x32x32xbf16>
    %44 = vector.shape_cast %43 : vector<1x32x32xbf16> to vector<32x32xbf16>
    %cst_29 = arith.constant dense<0.000000e+00> : vector<32x32xf32>
    %45 = tpu.matmul %28, %44, %cst_29 {dimension_numbers = #tpu.dot_dimension_numbers<[1], [0], [0], [1], [0, 0, 1, 1], [], []>} : vector<32x32xbf16>, vector<32x32xbf16>, vector<32x32xf32> -> vector<32x32xf32>
    %c0_30 = arith.constant 0 : index
    %c0_31 = arith.constant 0 : index
    %c0_32 = arith.constant 0 : index
    %46 = vector.load %arg13[%c0_30, %c0_31, %c0_32] : memref<1x1x32xf32, #tpu.memory_space<vmem>>, vector<1x1x32xf32>
    %47 = vector.shape_cast %46 : vector<1x1x32xf32> to vector<1x32xf32>
    %48 = vector.broadcast %47 : vector<1x32xf32> to vector<32x32xf32>
    %49 = arith.addf %45, %48 : vector<32x32xf32>
    %50 = vector.extract_strided_slice %35 {offsets = [0, 0], sizes = [32, 8], strides = [1, 1]} : vector<32x32xf32> to vector<32x8xf32>
    %51 = arith.truncf %50 : vector<32x8xf32> to vector<32x8xbf16>
    %52 = vector.shape_cast %51 : vector<32x8xbf16> to vector<2x16x8xbf16>
    %53 = vector.extract_strided_slice %42 {offsets = [0, 0], sizes = [32, 8], strides = [1, 1]} : vector<32x32xf32> to vector<32x8xf32>
    %54 = arith.truncf %53 : vector<32x8xf32> to vector<32x8xbf16>
    %55 = vector.shape_cast %54 : vector<32x8xbf16> to vector<2x16x8xbf16>
    %56 = vector.extract_strided_slice %49 {offsets = [0, 0], sizes = [32, 8], strides = [1, 1]} : vector<32x32xf32> to vector<32x8xf32>
    %57 = arith.truncf %56 : vector<32x8xf32> to vector<32x8xbf16>
    %58 = vector.shape_cast %57 : vector<32x8xbf16> to vector<2x16x8xbf16>
    "tpu.trace_start"() <{level = 10 : i32, message = "bqd,bkd->bqk"}> : () -> ()
    %cst_33 = arith.constant dense<0.000000e+00> : vector<2x16x16xf32>
    %59 = tpu.matmul %52, %55, %cst_33 {dimension_numbers = #tpu.dot_dimension_numbers<[2], [2], [1], [1], [0, 0, 0, 1, 1, 1], [0], [0]>} : vector<2x16x8xbf16>, vector<2x16x8xbf16>, vector<2x16x16xf32> -> vector<2x16x16xf32>
    "tpu.trace_stop"() : () -> ()
    %cst_34 = arith.constant 0.353553385 : f32
    %60 = vector.broadcast %cst_34 : f32 to vector<2x16x16xf32>
    %61 = arith.mulf %59, %60 : vector<2x16x16xf32>
    %cst_35 = arith.constant dense<0xFF800000> : vector<2x16xf32>
    %62 = vector.multi_reduction <maximumf>, %61, %cst_35 [2] : vector<2x16x16xf32> to vector<2x16xf32>
    %63 = vector.shape_cast %62 : vector<2x16xf32> to vector<2x16x1xf32>
    %64 = vector.broadcast %63 : vector<2x16x1xf32> to vector<2x16x16xf32>
    %65 = arith.subf %61, %64 : vector<2x16x16xf32>
    %66 = math.exp %65 : vector<2x16x16xf32>
    %cst_36 = arith.constant dense<0.000000e+00> : vector<2x16xf32>
    %67 = vector.multi_reduction <add>, %66, %cst_36 [2] : vector<2x16x16xf32> to vector<2x16xf32>
    %68 = vector.shape_cast %67 : vector<2x16xf32> to vector<2x16x1xf32>
    %69 = tpu.reciprocal %68 {approx = true} : vector<2x16x1xf32> -> vector<2x16x1xf32>
    %70 = vector.broadcast %69 : vector<2x16x1xf32> to vector<2x16x16xf32>
    %71 = arith.mulf %66, %70 : vector<2x16x16xf32>
    %72 = arith.truncf %71 : vector<2x16x16xf32> to vector<2x16x16xbf16>
    "tpu.trace_start"() <{level = 10 : i32, message = "bqk,bkd->bqd"}> : () -> ()
    %cst_37 = arith.constant dense<0.000000e+00> : vector<2x16x8xf32>
    %73 = tpu.matmul %72, %58, %cst_37 {dimension_numbers = #tpu.dot_dimension_numbers<[2], [1], [1], [2], [0, 0, 0, 1, 1, 2], [0], [0]>} : vector<2x16x16xbf16>, vector<2x16x8xbf16>, vector<2x16x8xf32> -> vector<2x16x8xf32>
    "tpu.trace_stop"() : () -> ()
    %74 = vector.extract_strided_slice %35 {offsets = [0, 8], sizes = [32, 8], strides = [1, 1]} : vector<32x32xf32> to vector<32x8xf32>
    %75 = arith.truncf %74 : vector<32x8xf32> to vector<32x8xbf16>
    %76 = vector.shape_cast %75 : vector<32x8xbf16> to vector<2x16x8xbf16>
    %77 = vector.extract_strided_slice %42 {offsets = [0, 8], sizes = [32, 8], strides = [1, 1]} : vector<32x32xf32> to vector<32x8xf32>
    %78 = arith.truncf %77 : vector<32x8xf32> to vector<32x8xbf16>
    %79 = vector.shape_cast %78 : vector<32x8xbf16> to vector<2x16x8xbf16>
    %80 = vector.extract_strided_slice %49 {offsets = [0, 8], sizes = [32, 8], strides = [1, 1]} : vector<32x32xf32> to vector<32x8xf32>
    %81 = arith.truncf %80 : vector<32x8xf32> to vector<32x8xbf16>
    %82 = vector.shape_cast %81 : vector<32x8xbf16> to vector<2x16x8xbf16>
    "tpu.trace_start"() <{level = 10 : i32, message = "bqd,bkd->bqk"}> : () -> ()
    %cst_38 = arith.constant dense<0.000000e+00> : vector<2x16x16xf32>
    %83 = tpu.matmul %76, %79, %cst_38 {dimension_numbers = #tpu.dot_dimension_numbers<[2], [2], [1], [1], [0, 0, 0, 1, 1, 1], [0], [0]>} : vector<2x16x8xbf16>, vector<2x16x8xbf16>, vector<2x16x16xf32> -> vector<2x16x16xf32>
    "tpu.trace_stop"() : () -> ()
    %cst_39 = arith.constant 0.353553385 : f32
    %84 = vector.broadcast %cst_39 : f32 to vector<2x16x16xf32>
    %85 = arith.mulf %83, %84 : vector<2x16x16xf32>
    %cst_40 = arith.constant dense<0xFF800000> : vector<2x16xf32>
    %86 = vector.multi_reduction <maximumf>, %85, %cst_40 [2] : vector<2x16x16xf32> to vector<2x16xf32>
    %87 = vector.shape_cast %86 : vector<2x16xf32> to vector<2x16x1xf32>
    %88 = vector.broadcast %87 : vector<2x16x1xf32> to vector<2x16x16xf32>
    %89 = arith.subf %85, %88 : vector<2x16x16xf32>
    %90 = math.exp %89 : vector<2x16x16xf32>
    %cst_41 = arith.constant dense<0.000000e+00> : vector<2x16xf32>
    %91 = vector.multi_reduction <add>, %90, %cst_41 [2] : vector<2x16x16xf32> to vector<2x16xf32>
    %92 = vector.shape_cast %91 : vector<2x16xf32> to vector<2x16x1xf32>
    %93 = tpu.reciprocal %92 {approx = true} : vector<2x16x1xf32> -> vector<2x16x1xf32>
    %94 = vector.broadcast %93 : vector<2x16x1xf32> to vector<2x16x16xf32>
    %95 = arith.mulf %90, %94 : vector<2x16x16xf32>
    %96 = arith.truncf %95 : vector<2x16x16xf32> to vector<2x16x16xbf16>
    "tpu.trace_start"() <{level = 10 : i32, message = "bqk,bkd->bqd"}> : () -> ()
    %cst_42 = arith.constant dense<0.000000e+00> : vector<2x16x8xf32>
    %97 = tpu.matmul %96, %82, %cst_42 {dimension_numbers = #tpu.dot_dimension_numbers<[2], [1], [1], [2], [0, 0, 0, 1, 1, 2], [0], [0]>} : vector<2x16x16xbf16>, vector<2x16x8xbf16>, vector<2x16x8xf32> -> vector<2x16x8xf32>
    "tpu.trace_stop"() : () -> ()
    %98 = vector.extract_strided_slice %35 {offsets = [0, 16], sizes = [32, 8], strides = [1, 1]} : vector<32x32xf32> to vector<32x8xf32>
    %99 = arith.truncf %98 : vector<32x8xf32> to vector<32x8xbf16>
    %100 = vector.shape_cast %99 : vector<32x8xbf16> to vector<2x16x8xbf16>
    %101 = vector.extract_strided_slice %42 {offsets = [0, 16], sizes = [32, 8], strides = [1, 1]} : vector<32x32xf32> to vector<32x8xf32>
    %102 = arith.truncf %101 : vector<32x8xf32> to vector<32x8xbf16>
    %103 = vector.shape_cast %102 : vector<32x8xbf16> to vector<2x16x8xbf16>
    %104 = vector.extract_strided_slice %49 {offsets = [0, 16], sizes = [32, 8], strides = [1, 1]} : vector<32x32xf32> to vector<32x8xf32>
    %105 = arith.truncf %104 : vector<32x8xf32> to vector<32x8xbf16>
    %106 = vector.shape_cast %105 : vector<32x8xbf16> to vector<2x16x8xbf16>
    "tpu.trace_start"() <{level = 10 : i32, message = "bqd,bkd->bqk"}> : () -> ()
    %cst_43 = arith.constant dense<0.000000e+00> : vector<2x16x16xf32>
    %107 = tpu.matmul %100, %103, %cst_43 {dimension_numbers = #tpu.dot_dimension_numbers<[2], [2], [1], [1], [0, 0, 0, 1, 1, 1], [0], [0]>} : vector<2x16x8xbf16>, vector<2x16x8xbf16>, vector<2x16x16xf32> -> vector<2x16x16xf32>
    "tpu.trace_stop"() : () -> ()
    %cst_44 = arith.constant 0.353553385 : f32
    %108 = vector.broadcast %cst_44 : f32 to vector<2x16x16xf32>
    %109 = arith.mulf %107, %108 : vector<2x16x16xf32>
    %cst_45 = arith.constant dense<0xFF800000> : vector<2x16xf32>
    %110 = vector.multi_reduction <maximumf>, %109, %cst_45 [2] : vector<2x16x16xf32> to vector<2x16xf32>
    %111 = vector.shape_cast %110 : vector<2x16xf32> to vector<2x16x1xf32>
    %112 = vector.broadcast %111 : vector<2x16x1xf32> to vector<2x16x16xf32>
    %113 = arith.subf %109, %112 : vector<2x16x16xf32>
    %114 = math.exp %113 : vector<2x16x16xf32>
    %cst_46 = arith.constant dense<0.000000e+00> : vector<2x16xf32>
    %115 = vector.multi_reduction <add>, %114, %cst_46 [2] : vector<2x16x16xf32> to vector<2x16xf32>
    %116 = vector.shape_cast %115 : vector<2x16xf32> to vector<2x16x1xf32>
    %117 = tpu.reciprocal %116 {approx = true} : vector<2x16x1xf32> -> vector<2x16x1xf32>
    %118 = vector.broadcast %117 : vector<2x16x1xf32> to vector<2x16x16xf32>
    %119 = arith.mulf %114, %118 : vector<2x16x16xf32>
    %120 = arith.truncf %119 : vector<2x16x16xf32> to vector<2x16x16xbf16>
    "tpu.trace_start"() <{level = 10 : i32, message = "bqk,bkd->bqd"}> : () -> ()
    %cst_47 = arith.constant dense<0.000000e+00> : vector<2x16x8xf32>
    %121 = tpu.matmul %120, %106, %cst_47 {dimension_numbers = #tpu.dot_dimension_numbers<[2], [1], [1], [2], [0, 0, 0, 1, 1, 2], [0], [0]>} : vector<2x16x16xbf16>, vector<2x16x8xbf16>, vector<2x16x8xf32> -> vector<2x16x8xf32>
    "tpu.trace_stop"() : () -> ()
    %122 = vector.extract_strided_slice %35 {offsets = [0, 24], sizes = [32, 8], strides = [1, 1]} : vector<32x32xf32> to vector<32x8xf32>
    %123 = arith.truncf %122 : vector<32x8xf32> to vector<32x8xbf16>
    %124 = vector.shape_cast %123 : vector<32x8xbf16> to vector<2x16x8xbf16>
    %125 = vector.extract_strided_slice %42 {offsets = [0, 24], sizes = [32, 8], strides = [1, 1]} : vector<32x32xf32> to vector<32x8xf32>
    %126 = arith.truncf %125 : vector<32x8xf32> to vector<32x8xbf16>
    %127 = vector.shape_cast %126 : vector<32x8xbf16> to vector<2x16x8xbf16>
    %128 = vector.extract_strided_slice %49 {offsets = [0, 24], sizes = [32, 8], strides = [1, 1]} : vector<32x32xf32> to vector<32x8xf32>
    %129 = arith.truncf %128 : vector<32x8xf32> to vector<32x8xbf16>
    %130 = vector.shape_cast %129 : vector<32x8xbf16> to vector<2x16x8xbf16>
    "tpu.trace_start"() <{level = 10 : i32, message = "bqd,bkd->bqk"}> : () -> ()
    %cst_48 = arith.constant dense<0.000000e+00> : vector<2x16x16xf32>
    %131 = tpu.matmul %124, %127, %cst_48 {dimension_numbers = #tpu.dot_dimension_numbers<[2], [2], [1], [1], [0, 0, 0, 1, 1, 1], [0], [0]>} : vector<2x16x8xbf16>, vector<2x16x8xbf16>, vector<2x16x16xf32> -> vector<2x16x16xf32>
    "tpu.trace_stop"() : () -> ()
    %cst_49 = arith.constant 0.353553385 : f32
    %132 = vector.broadcast %cst_49 : f32 to vector<2x16x16xf32>
    %133 = arith.mulf %131, %132 : vector<2x16x16xf32>
    %cst_50 = arith.constant dense<0xFF800000> : vector<2x16xf32>
    %134 = vector.multi_reduction <maximumf>, %133, %cst_50 [2] : vector<2x16x16xf32> to vector<2x16xf32>
    %135 = vector.shape_cast %134 : vector<2x16xf32> to vector<2x16x1xf32>
    %136 = vector.broadcast %135 : vector<2x16x1xf32> to vector<2x16x16xf32>
    %137 = arith.subf %133, %136 : vector<2x16x16xf32>
    %138 = math.exp %137 : vector<2x16x16xf32>
    %cst_51 = arith.constant dense<0.000000e+00> : vector<2x16xf32>
    %139 = vector.multi_reduction <add>, %138, %cst_51 [2] : vector<2x16x16xf32> to vector<2x16xf32>
    %140 = vector.shape_cast %139 : vector<2x16xf32> to vector<2x16x1xf32>
    %141 = tpu.reciprocal %140 {approx = true} : vector<2x16x1xf32> -> vector<2x16x1xf32>
    %142 = vector.broadcast %141 : vector<2x16x1xf32> to vector<2x16x16xf32>
    %143 = arith.mulf %138, %142 : vector<2x16x16xf32>
    %144 = arith.truncf %143 : vector<2x16x16xf32> to vector<2x16x16xbf16>
    "tpu.trace_start"() <{level = 10 : i32, message = "bqk,bkd->bqd"}> : () -> ()
    %cst_52 = arith.constant dense<0.000000e+00> : vector<2x16x8xf32>
    %145 = tpu.matmul %144, %130, %cst_52 {dimension_numbers = #tpu.dot_dimension_numbers<[2], [1], [1], [2], [0, 0, 0, 1, 1, 2], [0], [0]>} : vector<2x16x16xbf16>, vector<2x16x8xbf16>, vector<2x16x8xf32> -> vector<2x16x8xf32>
    "tpu.trace_stop"() : () -> ()
    %146 = tpu.concatenate %73, %97, %121, %145 in 2 : vector<2x16x8xf32>, vector<2x16x8xf32>, vector<2x16x8xf32>, vector<2x16x8xf32> -> vector<2x16x32xf32>
    %147 = vector.shape_cast %146 : vector<2x16x32xf32> to vector<32x32xf32>
    %148 = arith.truncf %147 : vector<32x32xf32> to vector<32x32xbf16>
    %c0_53 = arith.constant 0 : index
    %c0_54 = arith.constant 0 : index
    %c0_55 = arith.constant 0 : index
    %149 = vector.load %arg14[%c0_53, %c0_54, %c0_55] : memref<1x32x32xbf16, #tpu.memory_space<vmem>>, vector<1x32x32xbf16>
    %150 = vector.shape_cast %149 : vector<1x32x32xbf16> to vector<32x32xbf16>
    %cst_56 = arith.constant dense<0.000000e+00> : vector<32x32xf32>
    %151 = tpu.matmul %148, %150, %cst_56 {dimension_numbers = #tpu.dot_dimension_numbers<[1], [0], [0], [1], [0, 0, 1, 1], [], []>} : vector<32x32xbf16>, vector<32x32xbf16>, vector<32x32xf32> -> vector<32x32xf32>
    %152 = arith.addf %3, %151 : vector<32x32xf32>
    %c0_57 = arith.constant 0 : index
    %c0_58 = arith.constant 0 : index
    %c0_59 = arith.constant 0 : index
    %153 = vector.load %arg15[%c0_57, %c0_58, %c0_59] : memref<1x1x32xf32, #tpu.memory_space<vmem>>, vector<1x1x32xf32>
    %154 = vector.shape_cast %153 : vector<1x1x32xf32> to vector<1x32xf32>
    %155 = vector.broadcast %154 : vector<1x32xf32> to vector<32x32xf32>
    %156 = arith.addf %152, %155 : vector<32x32xf32>
    %c0_60 = arith.constant 0 : index
    %c0_61 = arith.constant 0 : index
    %c0_62 = arith.constant 0 : index
    %157 = vector.load %arg16[%c0_60, %c0_61, %c0_62] : memref<1x1x32xf32, #tpu.memory_space<vmem>>, vector<1x1x32xf32>
    %158 = vector.shape_cast %157 : vector<1x1x32xf32> to vector<1x32xf32>
    %c0_63 = arith.constant 0 : index
    %c0_64 = arith.constant 0 : index
    %c0_65 = arith.constant 0 : index
    %159 = vector.load %arg17[%c0_63, %c0_64, %c0_65] : memref<1x1x32xf32, #tpu.memory_space<vmem>>, vector<1x1x32xf32>
    %160 = vector.shape_cast %159 : vector<1x1x32xf32> to vector<1x32xf32>
    %cst_66 = arith.constant dense<0.000000e+00> : vector<32xf32>
    %161 = vector.multi_reduction <add>, %156, %cst_66 [1] : vector<32x32xf32> to vector<32xf32>
    %162 = vector.shape_cast %161 : vector<32xf32> to vector<32x1xf32>
    %cst_67 = arith.constant 3.200000e+01 : f32
    %163 = vector.broadcast %cst_67 : f32 to vector<32x1xf32>
    %164 = arith.divf %162, %163 : vector<32x1xf32>
    %165 = vector.broadcast %164 : vector<32x1xf32> to vector<32x32xf32>
    %166 = arith.subf %156, %165 : vector<32x32xf32>
    %167 = arith.mulf %166, %166 : vector<32x32xf32>
    %cst_68 = arith.constant dense<0.000000e+00> : vector<32xf32>
    %168 = vector.multi_reduction <add>, %167, %cst_68 [1] : vector<32x32xf32> to vector<32xf32>
    %169 = vector.shape_cast %168 : vector<32xf32> to vector<32x1xf32>
    %cst_69 = arith.constant 3.200000e+01 : f32
    %170 = vector.broadcast %cst_69 : f32 to vector<32x1xf32>
    %171 = arith.divf %169, %170 : vector<32x1xf32>
    %cst_70 = arith.constant 9.99999997E-7 : f32
    %172 = vector.broadcast %cst_70 : f32 to vector<32x1xf32>
    %173 = arith.addf %171, %172 : vector<32x1xf32>
    %174 = math.rsqrt %173 : vector<32x1xf32>
    %175 = vector.broadcast %174 : vector<32x1xf32> to vector<32x32xf32>
    %176 = arith.mulf %166, %175 : vector<32x32xf32>
    %177 = vector.broadcast %158 : vector<1x32xf32> to vector<32x32xf32>
    %178 = arith.mulf %176, %177 : vector<32x32xf32>
    %179 = vector.broadcast %160 : vector<1x32xf32> to vector<32x32xf32>
    %180 = arith.addf %178, %179 : vector<32x32xf32>
    %181 = arith.truncf %180 : vector<32x32xf32> to vector<32x32xbf16>
    %c0_71 = arith.constant 0 : index
    %c0_72 = arith.constant 0 : index
    %c0_73 = arith.constant 0 : index
    %182 = vector.load %arg18[%c0_71, %c0_72, %c0_73] : memref<1x32x64xbf16, #tpu.memory_space<vmem>>, vector<1x32x64xbf16>
    %183 = vector.shape_cast %182 : vector<1x32x64xbf16> to vector<32x64xbf16>
    %cst_74 = arith.constant dense<0.000000e+00> : vector<32x64xf32>
    %184 = tpu.matmul %181, %183, %cst_74 {dimension_numbers = #tpu.dot_dimension_numbers<[1], [0], [0], [1], [0, 0, 1, 1], [], []>} : vector<32x32xbf16>, vector<32x64xbf16>, vector<32x64xf32> -> vector<32x64xf32>
    %c0_75 = arith.constant 0 : index
    %c0_76 = arith.constant 0 : index
    %c0_77 = arith.constant 0 : index
    %185 = vector.load %arg19[%c0_75, %c0_76, %c0_77] : memref<1x1x64xf32, #tpu.memory_space<vmem>>, vector<1x1x64xf32>
    %186 = vector.shape_cast %185 : vector<1x1x64xf32> to vector<1x64xf32>
    %187 = vector.broadcast %186 : vector<1x64xf32> to vector<32x64xf32>
    %188 = arith.addf %184, %187 : vector<32x64xf32>
    %cst_78 = arith.constant 5.000000e-01 : f32
    %189 = vector.broadcast %cst_78 : f32 to vector<32x64xf32>
    %190 = arith.mulf %189, %188 : vector<32x64xf32>
    %cst_79 = arith.constant 4.471500e-02 : f32
    %191 = vector.broadcast %cst_79 : f32 to vector<32x64xf32>
    %192 = arith.mulf %191, %188 : vector<32x64xf32>
    %193 = arith.mulf %192, %188 : vector<32x64xf32>
    %194 = arith.mulf %193, %188 : vector<32x64xf32>
    %195 = arith.addf %188, %194 : vector<32x64xf32>
    %cst_80 = arith.constant 0.797884583 : f32
    %196 = vector.broadcast %cst_80 : f32 to vector<32x64xf32>
    %197 = arith.mulf %196, %195 : vector<32x64xf32>
    %198 = math.tanh %197 : vector<32x64xf32>
    %cst_81 = arith.constant 1.000000e+00 : f32
    %199 = vector.broadcast %cst_81 : f32 to vector<32x64xf32>
    %200 = arith.addf %199, %198 : vector<32x64xf32>
    %201 = arith.mulf %190, %200 : vector<32x64xf32>
    %202 = arith.truncf %201 : vector<32x64xf32> to vector<32x64xbf16>
    %c0_82 = arith.constant 0 : index
    %c0_83 = arith.constant 0 : index
    %c0_84 = arith.constant 0 : index
    %203 = vector.load %arg20[%c0_82, %c0_83, %c0_84] : memref<1x64x32xbf16, #tpu.memory_space<vmem>>, vector<1x64x32xbf16>
    %204 = vector.shape_cast %203 : vector<1x64x32xbf16> to vector<64x32xbf16>
    %cst_85 = arith.constant dense<0.000000e+00> : vector<32x32xf32>
    %205 = tpu.matmul %202, %204, %cst_85 {dimension_numbers = #tpu.dot_dimension_numbers<[1], [0], [0], [1], [0, 0, 1, 1], [], []>} : vector<32x64xbf16>, vector<64x32xbf16>, vector<32x32xf32> -> vector<32x32xf32>
    %206 = arith.addf %156, %205 : vector<32x32xf32>
    %c0_86 = arith.constant 0 : index
    %c0_87 = arith.constant 0 : index
    %c0_88 = arith.constant 0 : index
    %207 = vector.load %arg21[%c0_86, %c0_87, %c0_88] : memref<1x1x32xf32, #tpu.memory_space<vmem>>, vector<1x1x32xf32>
    %208 = vector.shape_cast %207 : vector<1x1x32xf32> to vector<1x32xf32>
    %209 = vector.broadcast %208 : vector<1x32xf32> to vector<32x32xf32>
    %210 = arith.addf %206, %209 : vector<32x32xf32>
    %c0_89 = arith.constant 0 : index
    %c0_90 = arith.constant 0 : index
    %211 = vector.load %arg25[%c0_89, %c0_90] : memref<32x32xf32, #tpu.memory_space<vmem>>, vector<32x32xf32>
    tpu.vector_store %arg25[%c0_89, %c0_90], %210 {strides = array<i32>} : memref<32x32xf32, #tpu.memory_space<vmem>>, vector<32x32xf32>,
    %c1_i32 = arith.constant 1 : i32
    %212 = arith.cmpi eq, %arg1, %c1_i32 : i32
    %213 = arith.extui %212 : i1 to i32
    %c0_i32_91 = arith.constant 0 : i32
    %214 = arith.cmpi ne, %213, %c0_i32_91 : i32
    scf.if %214 {
      %c0_92 = arith.constant 0 : index
      %c0_93 = arith.constant 0 : index
      %215 = vector.load %arg22[%c0_92, %c0_93] : memref<1x32xf32, #tpu.memory_space<vmem>>, vector<1x32xf32>
      %c0_94 = arith.constant 0 : index
      %c0_95 = arith.constant 0 : index
      %216 = vector.load %arg23[%c0_94, %c0_95] : memref<1x32xf32, #tpu.memory_space<vmem>>, vector<1x32xf32>
      %cst_96 = arith.constant dense<0.000000e+00> : vector<32xf32>
      %217 = vector.multi_reduction <add>, %210, %cst_96 [1] : vector<32x32xf32> to vector<32xf32>
      %218 = vector.shape_cast %217 : vector<32xf32> to vector<32x1xf32>
      %cst_97 = arith.constant 3.200000e+01 : f32
      %219 = vector.broadcast %cst_97 : f32 to vector<32x1xf32>
      %220 = arith.divf %218, %219 : vector<32x1xf32>
      %221 = vector.broadcast %220 : vector<32x1xf32> to vector<32x32xf32>
      %222 = arith.subf %210, %221 : vector<32x32xf32>
      %223 = arith.mulf %222, %222 : vector<32x32xf32>
      %cst_98 = arith.constant dense<0.000000e+00> : vector<32xf32>
      %224 = vector.multi_reduction <add>, %223, %cst_98 [1] : vector<32x32xf32> to vector<32xf32>
      %225 = vector.shape_cast %224 : vector<32xf32> to vector<32x1xf32>
      %cst_99 = arith.constant 3.200000e+01 : f32
      %226 = vector.broadcast %cst_99 : f32 to vector<32x1xf32>
      %227 = arith.divf %225, %226 : vector<32x1xf32>
      %cst_100 = arith.constant 9.99999997E-7 : f32
      %228 = vector.broadcast %cst_100 : f32 to vector<32x1xf32>
      %229 = arith.addf %227, %228 : vector<32x1xf32>
      %230 = math.rsqrt %229 : vector<32x1xf32>
      %231 = vector.broadcast %230 : vector<32x1xf32> to vector<32x32xf32>
      %232 = arith.mulf %222, %231 : vector<32x32xf32>
      %233 = vector.broadcast %215 : vector<1x32xf32> to vector<32x32xf32>
      %234 = arith.mulf %232, %233 : vector<32x32xf32>
      %235 = vector.broadcast %216 : vector<1x32xf32> to vector<32x32xf32>
      %236 = arith.addf %234, %235 : vector<32x32xf32>
      %237 = vector.shape_cast %236 : vector<32x32xf32> to vector<2x16x32xf32>
      %238 = arith.truncf %237 : vector<2x16x32xf32> to vector<2x16x32xbf16>
      %c0_101 = arith.constant 0 : index
      %c0_102 = arith.constant 0 : index
      %c0_103 = arith.constant 0 : index
      %239 = vector.load %arg24[%c0_101, %c0_102, %c0_103] : memref<2x16x32xbf16, #tpu.memory_space<vmem>>, vector<2x16x32xbf16>
      tpu.vector_store %arg24[%c0_101, %c0_102, %c0_103], %238 {strides = array<i32>} : memref<2x16x32xbf16, #tpu.memory_space<vmem>>, vector<2x16x32xbf16>,
    } else {
    }
    return
  }
  func.func @transform_0(%arg0: i32, %arg1: i32) -> (i32, i32, i32) {
    %c0_i32 = arith.constant 0 : i32
    %c0_i32_0 = arith.constant 0 : i32
    %c0_i32_1 = arith.constant 0 : i32
    return %arg0, %c0_i32, %c0_i32_0 : i32, i32, i32
  }
  func.func @transform_1(%arg0: i32, %arg1: i32) -> (i32, i32) {
    %c0_i32 = arith.constant 0 : i32
    %c0_i32_0 = arith.constant 0 : i32
    %c0_i32_1 = arith.constant 0 : i32
    return %c0_i32, %c0_i32_0 : i32, i32
  }
  func.func @transform_2(%arg0: i32, %arg1: i32) -> (i32, i32) {
    %c0_i32 = arith.constant 0 : i32
    %c0_i32_0 = arith.constant 0 : i32
    %c0_i32_1 = arith.constant 0 : i32
    return %c0_i32, %c0_i32_0 : i32, i32
  }
  func.func @transform_3(%arg0: i32, %arg1: i32) -> (i32, i32) {
    %c0_i32 = arith.constant 0 : i32
    %c0_i32_0 = arith.constant 0 : i32
    %c0_i32_1 = arith.constant 0 : i32
    return %c0_i32, %c0_i32_0 : i32, i32
  }
  func.func @transform_4(%arg0: i32, %arg1: i32) -> (i32, i32, i32) {
    %c0_i32 = arith.constant 0 : i32
    %c0_i32_0 = arith.constant 0 : i32
    %c0_i32_1 = arith.constant 0 : i32
    return %arg1, %c0_i32, %c0_i32_0 : i32, i32, i32
  }
  func.func @transform_5(%arg0: i32, %arg1: i32) -> (i32, i32, i32) {
    %c0_i32 = arith.constant 0 : i32
    %c0_i32_0 = arith.constant 0 : i32
    %c0_i32_1 = arith.constant 0 : i32
    return %arg1, %c0_i32, %c0_i32_0 : i32, i32, i32
  }
  func.func @transform_6(%arg0: i32, %arg1: i32) -> (i32, i32, i32) {
    %c0_i32 = arith.constant 0 : i32
    %c0_i32_0 = arith.constant 0 : i32
    %c0_i32_1 = arith.constant 0 : i32
    return %arg1, %c0_i32, %c0_i32_0 : i32, i32, i32
  }
  func.func @transform_7(%arg0: i32, %arg1: i32) -> (i32, i32, i32) {
    %c0_i32 = arith.constant 0 : i32
    %c0_i32_0 = arith.constant 0 : i32
    %c0_i32_1 = arith.constant 0 : i32
    return %arg1, %c0_i32, %c0_i32_0 : i32, i32, i32
  }
  func.func @transform_8(%arg0: i32, %arg1: i32) -> (i32, i32, i32) {
    %c0_i32 = arith.constant 0 : i32
    %c0_i32_0 = arith.constant 0 : i32
    %c0_i32_1 = arith.constant 0 : i32
    return %arg1, %c0_i32, %c0_i32_0 : i32, i32, i32
  }
  func.func @transform_9(%arg0: i32, %arg1: i32) -> (i32, i32, i32) {
    %c0_i32 = arith.constant 0 : i32
    %c0_i32_0 = arith.constant 0 : i32
    %c0_i32_1 = arith.constant 0 : i32
    return %arg1, %c0_i32, %c0_i32_0 : i32, i32, i32
  }
  func.func @transform_10(%arg0: i32, %arg1: i32) -> (i32, i32, i32) {
    %c0_i32 = arith.constant 0 : i32
    %c0_i32_0 = arith.constant 0 : i32
    %c0_i32_1 = arith.constant 0 : i32
    return %arg1, %c0_i32, %c0_i32_0 : i32, i32, i32
  }
  func.func @transform_11(%arg0: i32, %arg1: i32) -> (i32, i32, i32) {
    %c0_i32 = arith.constant 0 : i32
    %c0_i32_0 = arith.constant 0 : i32
    %c0_i32_1 = arith.constant 0 : i32
    return %arg1, %c0_i32, %c0_i32_0 : i32, i32, i32
  }
  func.func @transform_12(%arg0: i32, %arg1: i32) -> (i32, i32, i32) {
    %c0_i32 = arith.constant 0 : i32
    %c0_i32_0 = arith.constant 0 : i32
    %c0_i32_1 = arith.constant 0 : i32
    return %arg1, %c0_i32, %c0_i32_0 : i32, i32, i32
  }
  func.func @transform_13(%arg0: i32, %arg1: i32) -> (i32, i32, i32) {
    %c0_i32 = arith.constant 0 : i32
    %c0_i32_0 = arith.constant 0 : i32
    %c0_i32_1 = arith.constant 0 : i32
    return %arg1, %c0_i32, %c0_i32_0 : i32, i32, i32
  }
  func.func @transform_14(%arg0: i32, %arg1: i32) -> (i32, i32, i32) {
    %c0_i32 = arith.constant 0 : i32
    %c0_i32_0 = arith.constant 0 : i32
    %c0_i32_1 = arith.constant 0 : i32
    return %arg1, %c0_i32, %c0_i32_0 : i32, i32, i32
  }
  func.func @transform_15(%arg0: i32, %arg1: i32) -> (i32, i32, i32) {
    %c0_i32 = arith.constant 0 : i32
    %c0_i32_0 = arith.constant 0 : i32
    %c0_i32_1 = arith.constant 0 : i32
    return %arg1, %c0_i32, %c0_i32_0 : i32, i32, i32
  }
  func.func @transform_16(%arg0: i32, %arg1: i32) -> (i32, i32, i32) {
    %c0_i32 = arith.constant 0 : i32
    %c0_i32_0 = arith.constant 0 : i32
    %c0_i32_1 = arith.constant 0 : i32
    return %arg1, %c0_i32, %c0_i32_0 : i32, i32, i32
  }
  func.func @transform_17(%arg0: i32, %arg1: i32) -> (i32, i32, i32) {
    %c0_i32 = arith.constant 0 : i32
    %c0_i32_0 = arith.constant 0 : i32
    %c0_i32_1 = arith.constant 0 : i32
    return %arg1, %c0_i32, %c0_i32_0 : i32, i32, i32
  }
  func.func @transform_18(%arg0: i32, %arg1: i32) -> (i32, i32, i32) {
    %c0_i32 = arith.constant 0 : i32
    %c0_i32_0 = arith.constant 0 : i32
    %c0_i32_1 = arith.constant 0 : i32
    return %arg1, %c0_i32, %c0_i32_0 : i32, i32, i32
  }
  func.func @transform_19(%arg0: i32, %arg1: i32) -> (i32, i32, i32) {
    %c0_i32 = arith.constant 0 : i32
    %c0_i32_0 = arith.constant 0 : i32
    %c0_i32_1 = arith.constant 0 : i32
    return %arg1, %c0_i32, %c0_i32_0 : i32, i32, i32
  }
  func.func @transform_20(%arg0: i32, %arg1: i32) -> (i32, i32) {
    %c0_i32 = arith.constant 0 : i32
    %c0_i32_0 = arith.constant 0 : i32
    %c0_i32_1 = arith.constant 0 : i32
    return %c0_i32, %c0_i32_0 : i32, i32
  }
  func.func @transform_21(%arg0: i32, %arg1: i32) -> (i32, i32) {
    %c0_i32 = arith.constant 0 : i32
    %c0_i32_0 = arith.constant 0 : i32
    %c0_i32_1 = arith.constant 0 : i32
    return %c0_i32, %c0_i32_0 : i32, i32
  }
  func.func @transform_22(%arg0: i32, %arg1: i32) -> (i32, i32, i32) {
    %c0_i32 = arith.constant 0 : i32
    %c0_i32_0 = arith.constant 0 : i32
    %c0_i32_1 = arith.constant 0 : i32
    return %arg0, %c0_i32, %c0_i32_0 : i32, i32, i32
  }
}

</mosaic_0001>

<llo_original>
// kernel: tpu_custom_call.1
$region0: #{tpu_custom_call.1}
  #allocation0 [shape = 'u32[]', space=smem, size = 0x4, offset = 0x4, fixed_abs, tag = 'smem constant byte address 0x4 - core index']
  #allocation1 [shape = 'u32[144,128]{1,0:T(1,128)}', space=vmem, size = 0x12000, scoped, tag = 'internal scratch']
  #allocation2 [shape = 'f32[32,32]{1,0:T(8,128)}', space=vmem, size = 0x4000, scoped, tag = 'scratch operand']
  %s0 = inlined_call_operand.vmem [shape: f32[2,16,48], index: 0, kind: input, shape index: {}]
  %s1 = inlined_call_operand.vmem [shape: bf16[48,32], index: 1, kind: input, shape index: {}]
  %s2 = inlined_call_operand.hbm [shape: f32[1,32], index: 2, kind: input, shape index: {}]
  %s3 = inlined_call_operand.hbm [shape: f32[16,32], index: 3, kind: input, shape index: {}]
  %s4 = inlined_call_operand.hbm [shape: f32[2,1,32], index: 4, kind: input, shape index: {}]
  %s5 = inlined_call_operand.hbm [shape: f32[2,1,32], index: 5, kind: input, shape index: {}]
  %s6 = inlined_call_operand.vmem [shape: bf16[2,32,32], index: 6, kind: input, shape index: {}]
  %s7 = inlined_call_operand.vmem [shape: bf16[2,32,32], index: 7, kind: input, shape index: {}]
  %s8 = inlined_call_operand.vmem [shape: bf16[2,32,32], index: 8, kind: input, shape index: {}]
  %s9 = inlined_call_operand.hbm [shape: f32[2,1,32], index: 9, kind: input, shape index: {}]
  %s10 = inlined_call_operand.hbm [shape: f32[2,1,32], index: 10, kind: input, shape index: {}]
  %s11 = inlined_call_operand.hbm [shape: f32[2,1,32], index: 11, kind: input, shape index: {}]
  %s12 = inlined_call_operand.hbm [shape: bf16[2,32,32], index: 12, kind: input, shape index: {}]
  %s13 = inlined_call_operand.hbm [shape: f32[2,1,32], index: 13, kind: input, shape index: {}]
  %s14 = inlined_call_operand.hbm [shape: f32[2,1,32], index: 14, kind: input, shape index: {}]
  %s15 = inlined_call_operand.hbm [shape: f32[2,1,32], index: 15, kind: input, shape index: {}]
  %s16 = inlined_call_operand.vmem [shape: bf16[2,32,64], index: 16, kind: input, shape index: {}]
  %s17 = inlined_call_operand.vmem [shape: f32[2,1,64], index: 17, kind: input, shape index: {}]
  %s18 = inlined_call_operand.vmem [shape: bf16[2,64,32], index: 18, kind: input, shape index: {}]
  %s19 = inlined_call_operand.vmem [shape: f32[2,1,32], index: 19, kind: input, shape index: {}]
  %s20 = inlined_call_operand.vmem [shape: f32[1,32], index: 20, kind: input, shape index: {}]
  %s21 = inlined_call_operand.vmem [shape: f32[1,32], index: 21, kind: input, shape index: {}]
  %s22 = inlined_call_operand.hbm [shape: bf16[2,16,32], index: 22, kind: output, shape index: {}]
  %s23 = sld [smem:[#allocation0]]
  $region173: #{tpu_custom_call.1} parent=0
    _
  %s25 = ssub.s32 1, %s23
  %s26 = scalar_select 0, %s25, %s23
  $region1: #{tpu_custom_call.1} parent=0
    #allocation3 [shape = 'u8[512]{0}', space=vmem, size = 0x400, scoped, tag = 'input window, operand 2, single buffered']
    #allocation4 [shape = 's32[2]{0}', space=sflag, size = 0x8, scoped, tag = 'scoped memory for tpu_custom_call.1']
    #allocation5 [shape = 's32[2]{0}', space=sflag, size = 0x8, scoped, tag = 'scoped memory for tpu_custom_call.1']
    #allocation6 [shape = 'u8[8192]{0}', space=vmem, size = 0x2000, scoped, tag = 'input window, operand 3, single buffered']
    #allocation7 [shape = 's32[1]{0}', space=sflag, size = 0x4, scoped, tag = 'scoped memory for tpu_custom_call.1']
    #allocation8 [shape = 'u8[1024]{0}', space=vmem, size = 0x400, scoped, tag = 'input window, operand 4']
    #allocation9 [shape = 'u8[1024]{0}', space=vmem, size = 0x400, scoped, tag = 'input window, operand 5']
    #allocation10 [shape = 'u8[1024]{0}', space=vmem, size = 0x400, scoped, tag = 'input window, operand 9']
    #allocation11 [shape = 'u8[1024]{0}', space=vmem, size = 0x400, scoped, tag = 'input window, operand 10']
    #allocation12 [shape = 'u8[1024]{0}', space=vmem, size = 0x400, scoped, tag = 'input window, operand 11']
    #allocation13 [shape = 'u8[16384]{0}', space=vmem, size = 0x4000, scoped, tag = 'input window, operand 12']
    #allocation14 [shape = 'u8[1024]{0}', space=vmem, size = 0x400, scoped, tag = 'input window, operand 13']
    #allocation15 [shape = 'u8[1024]{0}', space=vmem, size = 0x400, scoped, tag = 'input window, operand 14']
    #allocation16 [shape = 'u8[1024]{0}', space=vmem, size = 0x400, scoped, tag = 'input window, operand 15']
    #allocation17 [shape = 'u8[8192]{0}', space=vmem, size = 0x2000, scoped, tag = 'output window, operand 0, single buffered']
    %27 = vsyncpa [#allocation4], 0
    %28 = vsyncpa [#allocation7], 0
    %29 = vsyncpa [#allocation5], 0
    loop: start=0, step=1, limit=4
    $region2: #{tpu_custom_call.1} parent=1 // loop_pre_header
      _
    $region3: #{tpu_custom_call.1} parent=1 // loop_header
      %s31 = sphi 0, %s35
      %p32 = scmp.ge.s32.totalorder %s31, 4
      %s38 = sphi 0, %s50
      %s39 = sphi 0, %s46
      %s40 = sphi 0, %s38
      %s41 = sphi 0, %s39
      %s42 = sphi 0, %s40
      %s43 = sphi 0, %s41
      %s53 = sphi 0, %s55
      %s56 = sphi 0, %s53
      %s57 = sphi 0, %s56
      %s73 = sphi 0, %s57
      %s77 = sphi 0, %s77
      %s79 = sphi 0, %s77
      %s80 = sphi 0, %s79
      %s94 = sphi 0, %s80
      %s98 = sphi 0, %s98
      %s100 = sphi 0, %s98
      %s101 = sphi 0, %s100
      %s115 = sphi 0, %s101
      %s119 = sphi 0, %s119
      %s121 = sphi 0, %s119
      %s122 = sphi 0, %s121
      %s136 = sphi 0, %s122
      %s142 = sphi 0, %s144
      %s145 = sphi 0, %s142
      %s146 = sphi 0, %s145
      %s162 = sphi 0, %s146
      %s168 = sphi 0, %s170
      %s171 = sphi 0, %s168
      %s172 = sphi 0, %s171
      %s188 = sphi 0, %s172
      %s194 = sphi 0, %s196
      %s197 = sphi 0, %s194
      %s198 = sphi 0, %s197
      %s214 = sphi 0, %s198
      %s220 = sphi 0, %s222
      %s223 = sphi 0, %s220
      %s224 = sphi 0, %s223
      %s240 = sphi 0, %s224
      %s246 = sphi 0, %s248
      %s249 = sphi 0, %s246
      %s250 = sphi 0, %s249
      %s266 = sphi 0, %s250
      %s272 = sphi 0, %s274
      %s275 = sphi 0, %s272
      %s276 = sphi 0, %s275
      %s292 = sphi 0, %s276
      %s298 = sphi 0, %s300
      %s301 = sphi 0, %s298
      %s302 = sphi 0, %s301
      %s318 = sphi 0, %s302
      %s324 = sphi 0, %s326
      %s327 = sphi 0, %s324
      %s328 = sphi 0, %s327
      %s344 = sphi 0, %s328
      %s350 = sphi 0, %s352
      %s353 = sphi 0, %s350
      %s354 = sphi 0, %s353
      %s370 = sphi 0, %s354
      %s376 = sphi 0, %s378
      %s379 = sphi 0, %s376
      %s380 = sphi 0, %s379
      %s396 = sphi 0, %s380
      %s402 = sphi 0, %s404
      %s405 = sphi 0, %s402
      %s406 = sphi 0, %s405
      %s422 = sphi 0, %s406
      %s428 = sphi 0, %s430
      %s431 = sphi 0, %s428
      %s432 = sphi 0, %s431
      %s448 = sphi 0, %s432
      %s454 = sphi 0, %s456
      %s457 = sphi 0, %s454
      %s458 = sphi 0, %s457
      %s474 = sphi 0, %s458
      %s480 = sphi 0, %s482
      %s483 = sphi 0, %s480
      %s484 = sphi 0, %s483
      %s500 = sphi 0, %s484
      %s506 = sphi 0, %s508
      %s509 = sphi 0, %s506
      %s510 = sphi 0, %s509
      %s526 = sphi 0, %s510
      %s532 = sphi 0, %s534
      %s535 = sphi 0, %s532
      %s536 = sphi 0, %s535
      %s552 = sphi 0, %s536
      %s556 = sphi 0, %s556
      %s558 = sphi 0, %s556
      %s559 = sphi 0, %s558
      %s573 = sphi 0, %s559
      %s577 = sphi 0, %s577
      %s579 = sphi 0, %s577
      %s580 = sphi 0, %s579
      %s594 = sphi 0, %s580
      %s600 = sphi 0, %s602
      %s603 = sphi 0, %s600
      %s604 = sphi 0, %s603
      %s620 = sphi 0, %s604
    $region4: #{tpu_custom_call.1} parent=1 // loop_header_branch
      %34 = sbr.rel (%p32) target = $region8
    $region5: #{tpu_custom_call.1} parent=1 // loop_body
      %s36 = ssub.s32 %s31, 1
      %s37 = ssub.s32 %s31, 2
      %s44 = sadd.s32 1, %s39
      %p45 = scmp.ge.s32.totalorder %s44, 2
      %s46 = scalar_select %p45, 0, %s44
      %s47 = sadd.s32 1, %s38
      %s48 = scalar_select %p45, %s47, %s38
      %p49 = scmp.ge.s32.totalorder %s48, 1
      %s50 = scalar_select %p49, 0, %s48
      %s51 = ssub.s32 %s38, %s50
      %p52 = scmp.eq.s32.totalorder %s51, 0
      %s54 = sadd.s32 %s53, 1
      %s55 = scalar_select %p52, %s53, %s54
      %p58 = pneg %p52
      %p59 = scmp.eq.s32.totalorder %s31, 1
      %p60 = por %p58, %p59
      %p61 = scmp.ne.s32.totalorder %s53, %s56
      %p62 = scmp.eq.s32.totalorder %s31, 0
      %p63 = por %p61, %p62
      %p64 = scmp.ne.s32.totalorder %s53, %s56
      %p65 = scmp.eq.s32.totalorder %s36, 1
      %p66 = por %p64, %p65
      %p67 = scmp.ne.s32.totalorder %s56, %s57
      %p68 = scmp.eq.s32.totalorder %s36, 0
      %p69 = por %p67, %p68
      %p70 = scmp.ne.s32.totalorder %s56, %s57
      %p71 = scmp.eq.s32.totalorder %s37, 1
      %p72 = por %p70, %p71
      %p74 = scmp.ne.s32.totalorder %s57, %s73
      %p75 = scmp.eq.s32.totalorder %s37, 0
      %p76 = por %p74, %p75
      %s78 = sadd.s32 %s77, 1
      %p81 = scmp.eq.s32.totalorder %s31, 1
      %p82 = scmp.ne.s32.totalorder %s77, %s79
      %p83 = scmp.eq.s32.totalorder %s31, 0
      %p84 = por %p82, %p83
      %p85 = scmp.ne.s32.totalorder %s77, %s79
      %p86 = scmp.eq.s32.totalorder %s36, 1
      %p87 = por %p85, %p86
      %p88 = scmp.ne.s32.totalorder %s79, %s80
      %p89 = scmp.eq.s32.totalorder %s36, 0
      %p90 = por %p88, %p89
      %p91 = scmp.ne.s32.totalorder %s79, %s80
      %p92 = scmp.eq.s32.totalorder %s37, 1
      %p93 = por %p91, %p92
      %p95 = scmp.ne.s32.totalorder %s80, %s94
      %p96 = scmp.eq.s32.totalorder %s37, 0
      %p97 = por %p95, %p96
      %s99 = sadd.s32 %s98, 1
      %p102 = scmp.eq.s32.totalorder %s31, 1
      %p103 = scmp.ne.s32.totalorder %s98, %s100
      %p104 = scmp.eq.s32.totalorder %s31, 0
      %p105 = por %p103, %p104
      %p106 = scmp.ne.s32.totalorder %s98, %s100
      %p107 = scmp.eq.s32.totalorder %s36, 1
      %p108 = por %p106, %p107
      %p109 = scmp.ne.s32.totalorder %s100, %s101
      %p110 = scmp.eq.s32.totalorder %s36, 0
      %p111 = por %p109, %p110
      %p112 = scmp.ne.s32.totalorder %s100, %s101
      %p113 = scmp.eq.s32.totalorder %s37, 1
      %p114 = por %p112, %p113
      %p116 = scmp.ne.s32.totalorder %s101, %s115
      %p117 = scmp.eq.s32.totalorder %s37, 0
      %p118 = por %p116, %p117
      %s120 = sadd.s32 %s119, 1
      %p123 = scmp.eq.s32.totalorder %s31, 1
      %p124 = scmp.ne.s32.totalorder %s119, %s121
      %p125 = scmp.eq.s32.totalorder %s31, 0
      %p126 = por %p124, %p125
      %p127 = scmp.ne.s32.totalorder %s119, %s121
      %p128 = scmp.eq.s32.totalorder %s36, 1
      %p129 = por %p127, %p128
      %p130 = scmp.ne.s32.totalorder %s121, %s122
      %p131 = scmp.eq.s32.totalorder %s36, 0
      %p132 = por %p130, %p131
      %p133 = scmp.ne.s32.totalorder %s121, %s122
      %p134 = scmp.eq.s32.totalorder %s37, 1
      %p135 = por %p133, %p134
      %p137 = scmp.ne.s32.totalorder %s122, %s136
      %p138 = scmp.eq.s32.totalorder %s37, 0
      %p139 = por %p137, %p138
      %s140 = ssub.s32 %s39, %s46
      %p141 = scmp.eq.s32.totalorder %s140, 0
      %s143 = sadd.s32 %s142, 1
      %s144 = scalar_select %p141, %s142, %s143
      %p147 = pneg %p141
      %p148 = scmp.eq.s32.totalorder %s31, 1
      %p149 = por %p147, %p148
      %p150 = scmp.ne.s32.totalorder %s142, %s145
      %p151 = scmp.eq.s32.totalorder %s31, 0
      %p152 = por %p150, %p151
      %p153 = scmp.ne.s32.totalorder %s142, %s145
      %p154 = scmp.eq.s32.totalorder %s36, 1
      %p155 = por %p153, %p154
      %p156 = scmp.ne.s32.totalorder %s145, %s146
      %p157 = scmp.eq.s32.totalorder %s36, 0
      %p158 = por %p156, %p157
      %p159 = scmp.ne.s32.totalorder %s145, %s146
      %p160 = scmp.eq.s32.totalorder %s37, 1
      %p161 = por %p159, %p160
      %p163 = scmp.ne.s32.totalorder %s146, %s162
      %p164 = scmp.eq.s32.totalorder %s37, 0
      %p165 = por %p163, %p164
      %s166 = ssub.s32 %s39, %s46
      %p167 = scmp.eq.s32.totalorder %s166, 0
      %s169 = sadd.s32 %s168, 1
      %s170 = scalar_select %p167, %s168, %s169
      %p173 = pneg %p167
      %p174 = scmp.eq.s32.totalorder %s31, 1
      %p175 = por %p173, %p174
      %p176 = scmp.ne.s32.totalorder %s168, %s171
      %p177 = scmp.eq.s32.totalorder %s31, 0
      %p178 = por %p176, %p177
      %p179 = scmp.ne.s32.totalorder %s168, %s171
      %p180 = scmp.eq.s32.totalorder %s36, 1
      %p181 = por %p179, %p180
      %p182 = scmp.ne.s32.totalorder %s171, %s172
      %p183 = scmp.eq.s32.totalorder %s36, 0
      %p184 = por %p182, %p183
      %p185 = scmp.ne.s32.totalorder %s171, %s172
      %p186 = scmp.eq.s32.totalorder %s37, 1
      %p187 = por %p185, %p186
      %p189 = scmp.ne.s32.totalorder %s172, %s188
      %p190 = scmp.eq.s32.totalorder %s37, 0
      %p191 = por %p189, %p190
      %s192 = ssub.s32 %s39, %s46
      %p193 = scmp.eq.s32.totalorder %s192, 0
      %s195 = sadd.s32 %s194, 1
      %s196 = scalar_select %p193, %s194, %s195
      %p199 = pneg %p193
      %p200 = scmp.eq.s32.totalorder %s31, 1
      %p201 = por %p199, %p200
      %p202 = scmp.ne.s32.totalorder %s194, %s197
      %p203 = scmp.eq.s32.totalorder %s31, 0
      %p204 = por %p202, %p203
      %p205 = scmp.ne.s32.totalorder %s194, %s197
      %p206 = scmp.eq.s32.totalorder %s36, 1
      %p207 = por %p205, %p206
      %p208 = scmp.ne.s32.totalorder %s197, %s198
      %p209 = scmp.eq.s32.totalorder %s36, 0
      %p210 = por %p208, %p209
      %p211 = scmp.ne.s32.totalorder %s197, %s198
      %p212 = scmp.eq.s32.totalorder %s37, 1
      %p213 = por %p211, %p212
      %p215 = scmp.ne.s32.totalorder %s198, %s214
      %p216 = scmp.eq.s32.totalorder %s37, 0
      %p217 = por %p215, %p216
      %s218 = ssub.s32 %s39, %s46
      %p219 = scmp.eq.s32.totalorder %s218, 0
      %s221 = sadd.s32 %s220, 1
      %s222 = scalar_select %p219, %s220, %s221
      %p225 = pneg %p219
      %p226 = scmp.eq.s32.totalorder %s31, 1
      %p227 = por %p225, %p226
      %p228 = scmp.ne.s32.totalorder %s220, %s223
      %p229 = scmp.eq.s32.totalorder %s31, 0
      %p230 = por %p228, %p229
      %p231 = scmp.ne.s32.totalorder %s220, %s223
      %p232 = scmp.eq.s32.totalorder %s36, 1
      %p233 = por %p231, %p232
      %p234 = scmp.ne.s32.totalorder %s223, %s224
      %p235 = scmp.eq.s32.totalorder %s36, 0
      %p236 = por %p234, %p235
      %p237 = scmp.ne.s32.totalorder %s223, %s224
      %p238 = scmp.eq.s32.totalorder %s37, 1
      %p239 = por %p237, %p238
      %p241 = scmp.ne.s32.totalorder %s224, %s240
      %p242 = scmp.eq.s32.totalorder %s37, 0
      %p243 = por %p241, %p242
      %s244 = ssub.s32 %s39, %s46
      %p245 = scmp.eq.s32.totalorder %s244, 0
      %s247 = sadd.s32 %s246, 1
      %s248 = scalar_select %p245, %s246, %s247
      %p251 = pneg %p245
      %p252 = scmp.eq.s32.totalorder %s31, 1
      %p253 = por %p251, %p252
      %p254 = scmp.ne.s32.totalorder %s246, %s249
      %p255 = scmp.eq.s32.totalorder %s31, 0
      %p256 = por %p254, %p255
      %p257 = scmp.ne.s32.totalorder %s246, %s249
      %p258 = scmp.eq.s32.totalorder %s36, 1
      %p259 = por %p257, %p258
      %p260 = scmp.ne.s32.totalorder %s249, %s250
      %p261 = scmp.eq.s32.totalorder %s36, 0
      %p262 = por %p260, %p261
      %p263 = scmp.ne.s32.totalorder %s249, %s250
      %p264 = scmp.eq.s32.totalorder %s37, 1
      %p265 = por %p263, %p264
      %p267 = scmp.ne.s32.totalorder %s250, %s266
      %p268 = scmp.eq.s32.totalorder %s37, 0
      %p269 = por %p267, %p268
      %s270 = ssub.s32 %s39, %s46
      %p271 = scmp.eq.s32.totalorder %s270, 0
      %s273 = sadd.s32 %s272, 1
      %s274 = scalar_select %p271, %s272, %s273
      %p277 = pneg %p271
      %p278 = scmp.eq.s32.totalorder %s31, 1
      %p279 = por %p277, %p278
      %p280 = scmp.ne.s32.totalorder %s272, %s275
      %p281 = scmp.eq.s32.totalorder %s31, 0
      %p282 = por %p280, %p281
      %p283 = scmp.ne.s32.totalorder %s272, %s275
      %p284 = scmp.eq.s32.totalorder %s36, 1
      %p285 = por %p283, %p284
      %p286 = scmp.ne.s32.totalorder %s275, %s276
      %p287 = scmp.eq.s32.totalorder %s36, 0
      %p288 = por %p286, %p287
      %p289 = scmp.ne.s32.totalorder %s275, %s276
      %p290 = scmp.eq.s32.totalorder %s37, 1
      %p291 = por %p289, %p290
      %p293 = scmp.ne.s32.totalorder %s276, %s292
      %p294 = scmp.eq.s32.totalorder %s37, 0
      %p295 = por %p293, %p294
      %s296 = ssub.s32 %s39, %s46
      %p297 = scmp.eq.s32.totalorder %s296, 0
      %s299 = sadd.s32 %s298, 1
      %s300 = scalar_select %p297, %s298, %s299
      %p303 = pneg %p297
      %p304 = scmp.eq.s32.totalorder %s31, 1
      %p305 = por %p303, %p304
      %p306 = scmp.ne.s32.totalorder %s298, %s301
      %p307 = scmp.eq.s32.totalorder %s31, 0
      %p308 = por %p306, %p307
      %p309 = scmp.ne.s32.totalorder %s298, %s301
      %p310 = scmp.eq.s32.totalorder %s36, 1
      %p311 = por %p309, %p310
      %p312 = scmp.ne.s32.totalorder %s301, %s302
      %p313 = scmp.eq.s32.totalorder %s36, 0
      %p314 = por %p312, %p313
      %p315 = scmp.ne.s32.totalorder %s301, %s302
      %p316 = scmp.eq.s32.totalorder %s37, 1
      %p317 = por %p315, %p316
      %p319 = scmp.ne.s32.totalorder %s302, %s318
      %p320 = scmp.eq.s32.totalorder %s37, 0
      %p321 = por %p319, %p320
      %s322 = ssub.s32 %s39, %s46
      %p323 = scmp.eq.s32.totalorder %s322, 0
      %s325 = sadd.s32 %s324, 1
      %s326 = scalar_select %p323, %s324, %s325
      %p329 = pneg %p323
      %p330 = scmp.eq.s32.totalorder %s31, 1
      %p331 = por %p329, %p330
      %p332 = scmp.ne.s32.totalorder %s324, %s327
      %p333 = scmp.eq.s32.totalorder %s31, 0
      %p334 = por %p332, %p333
      %p335 = scmp.ne.s32.totalorder %s324, %s327
      %p336 = scmp.eq.s32.totalorder %s36, 1
      %p337 = por %p335, %p336
      %p338 = scmp.ne.s32.totalorder %s327, %s328
      %p339 = scmp.eq.s32.totalorder %s36, 0
      %p340 = por %p338, %p339
      %p341 = scmp.ne.s32.totalorder %s327, %s328
      %p342 = scmp.eq.s32.totalorder %s37, 1
      %p343 = por %p341, %p342
      %p345 = scmp.ne.s32.totalorder %s328, %s344
      %p346 = scmp.eq.s32.totalorder %s37, 0
      %p347 = por %p345, %p346
      %s348 = ssub.s32 %s39, %s46
      %p349 = scmp.eq.s32.totalorder %s348, 0
      %s351 = sadd.s32 %s350, 1
      %s352 = scalar_select %p349, %s350, %s351
      %p355 = pneg %p349
      %p356 = scmp.eq.s32.totalorder %s31, 1
      %p357 = por %p355, %p356
      %p358 = scmp.ne.s32.totalorder %s350, %s353
      %p359 = scmp.eq.s32.totalorder %s31, 0
      %p360 = por %p358, %p359
      %p361 = scmp.ne.s32.totalorder %s350, %s353
      %p362 = scmp.eq.s32.totalorder %s36, 1
      %p363 = por %p361, %p362
      %p364 = scmp.ne.s32.totalorder %s353, %s354
      %p365 = scmp.eq.s32.totalorder %s36, 0
      %p366 = por %p364, %p365
      %p367 = scmp.ne.s32.totalorder %s353, %s354
      %p368 = scmp.eq.s32.totalorder %s37, 1
      %p369 = por %p367, %p368
      %p371 = scmp.ne.s32.totalorder %s354, %s370
      %p372 = scmp.eq.s32.totalorder %s37, 0
      %p373 = por %p371, %p372
      %s374 = ssub.s32 %s39, %s46
      %p375 = scmp.eq.s32.totalorder %s374, 0
      %s377 = sadd.s32 %s376, 1
      %s378 = scalar_select %p375, %s376, %s377
      %p381 = pneg %p375
      %p382 = scmp.eq.s32.totalorder %s31, 1
      %p383 = por %p381, %p382
      %p384 = scmp.ne.s32.totalorder %s376, %s379
      %p385 = scmp.eq.s32.totalorder %s31, 0
      %p386 = por %p384, %p385
      %p387 = scmp.ne.s32.totalorder %s376, %s379
      %p388 = scmp.eq.s32.totalorder %s36, 1
      %p389 = por %p387, %p388
      %p390 = scmp.ne.s32.totalorder %s379, %s380
      %p391 = scmp.eq.s32.totalorder %s36, 0
      %p392 = por %p390, %p391
      %p393 = scmp.ne.s32.totalorder %s379, %s380
      %p394 = scmp.eq.s32.totalorder %s37, 1
      %p395 = por %p393, %p394
      %p397 = scmp.ne.s32.totalorder %s380, %s396
      %p398 = scmp.eq.s32.totalorder %s37, 0
      %p399 = por %p397, %p398
      %s400 = ssub.s32 %s39, %s46
      %p401 = scmp.eq.s32.totalorder %s400, 0
      %s403 = sadd.s32 %s402, 1
      %s404 = scalar_select %p401, %s402, %s403
      %p407 = pneg %p401
      %p408 = scmp.eq.s32.totalorder %s31, 1
      %p409 = por %p407, %p408
      %p410 = scmp.ne.s32.totalorder %s402, %s405
      %p411 = scmp.eq.s32.totalorder %s31, 0
      %p412 = por %p410, %p411
      %p413 = scmp.ne.s32.totalorder %s402, %s405
      %p414 = scmp.eq.s32.totalorder %s36, 1
      %p415 = por %p413, %p414
      %p416 = scmp.ne.s32.totalorder %s405, %s406
      %p417 = scmp.eq.s32.totalorder %s36, 0
      %p418 = por %p416, %p417
      %p419 = scmp.ne.s32.totalorder %s405, %s406
      %p420 = scmp.eq.s32.totalorder %s37, 1
      %p421 = por %p419, %p420
      %p423 = scmp.ne.s32.totalorder %s406, %s422
      %p424 = scmp.eq.s32.totalorder %s37, 0
      %p425 = por %p423, %p424
      %s426 = ssub.s32 %s39, %s46
      %p427 = scmp.eq.s32.totalorder %s426, 0
      %s429 = sadd.s32 %s428, 1
      %s430 = scalar_select %p427, %s428, %s429
      %p433 = pneg %p427
      %p434 = scmp.eq.s32.totalorder %s31, 1
      %p435 = por %p433, %p434
      %p436 = scmp.ne.s32.totalorder %s428, %s431
      %p437 = scmp.eq.s32.totalorder %s31, 0
      %p438 = por %p436, %p437
      %p439 = scmp.ne.s32.totalorder %s428, %s431
      %p440 = scmp.eq.s32.totalorder %s36, 1
      %p441 = por %p439, %p440
      %p442 = scmp.ne.s32.totalorder %s431, %s432
      %p443 = scmp.eq.s32.totalorder %s36, 0
      %p444 = por %p442, %p443
      %p445 = scmp.ne.s32.totalorder %s431, %s432
      %p446 = scmp.eq.s32.totalorder %s37, 1
      %p447 = por %p445, %p446
      %p449 = scmp.ne.s32.totalorder %s432, %s448
      %p450 = scmp.eq.s32.totalorder %s37, 0
      %p451 = por %p449, %p450
      %s452 = ssub.s32 %s39, %s46
      %p453 = scmp.eq.s32.totalorder %s452, 0
      %s455 = sadd.s32 %s454, 1
      %s456 = scalar_select %p453, %s454, %s455
      %p459 = pneg %p453
      %p460 = scmp.eq.s32.totalorder %s31, 1
      %p461 = por %p459, %p460
      %p462 = scmp.ne.s32.totalorder %s454, %s457
      %p463 = scmp.eq.s32.totalorder %s31, 0
      %p464 = por %p462, %p463
      %p465 = scmp.ne.s32.totalorder %s454, %s457
      %p466 = scmp.eq.s32.totalorder %s36, 1
      %p467 = por %p465, %p466
      %p468 = scmp.ne.s32.totalorder %s457, %s458
      %p469 = scmp.eq.s32.totalorder %s36, 0
      %p470 = por %p468, %p469
      %p471 = scmp.ne.s32.totalorder %s457, %s458
      %p472 = scmp.eq.s32.totalorder %s37, 1
      %p473 = por %p471, %p472
      %p475 = scmp.ne.s32.totalorder %s458, %s474
      %p476 = scmp.eq.s32.totalorder %s37, 0
      %p477 = por %p475, %p476
      %s478 = ssub.s32 %s39, %s46
      %p479 = scmp.eq.s32.totalorder %s478, 0
      %s481 = sadd.s32 %s480, 1
      %s482 = scalar_select %p479, %s480, %s481
      %p485 = pneg %p479
      %p486 = scmp.eq.s32.totalorder %s31, 1
      %p487 = por %p485, %p486
      %p488 = scmp.ne.s32.totalorder %s480, %s483
      %p489 = scmp.eq.s32.totalorder %s31, 0
      %p490 = por %p488, %p489
      %p491 = scmp.ne.s32.totalorder %s480, %s483
      %p492 = scmp.eq.s32.totalorder %s36, 1
      %p493 = por %p491, %p492
      %p494 = scmp.ne.s32.totalorder %s483, %s484
      %p495 = scmp.eq.s32.totalorder %s36, 0
      %p496 = por %p494, %p495
      %p497 = scmp.ne.s32.totalorder %s483, %s484
      %p498 = scmp.eq.s32.totalorder %s37, 1
      %p499 = por %p497, %p498
      %p501 = scmp.ne.s32.totalorder %s484, %s500
      %p502 = scmp.eq.s32.totalorder %s37, 0
      %p503 = por %p501, %p502
      %s504 = ssub.s32 %s39, %s46
      %p505 = scmp.eq.s32.totalorder %s504, 0
      %s507 = sadd.s32 %s506, 1
      %s508 = scalar_select %p505, %s506, %s507
      %p511 = pneg %p505
      %p512 = scmp.eq.s32.totalorder %s31, 1
      %p513 = por %p511, %p512
      %p514 = scmp.ne.s32.totalorder %s506, %s509
      %p515 = scmp.eq.s32.totalorder %s31, 0
      %p516 = por %p514, %p515
      %p517 = scmp.ne.s32.totalorder %s506, %s509
      %p518 = scmp.eq.s32.totalorder %s36, 1
      %p519 = por %p517, %p518
      %p520 = scmp.ne.s32.totalorder %s509, %s510
      %p521 = scmp.eq.s32.totalorder %s36, 0
      %p522 = por %p520, %p521
      %p523 = scmp.ne.s32.totalorder %s509, %s510
      %p524 = scmp.eq.s32.totalorder %s37, 1
      %p525 = por %p523, %p524
      %p527 = scmp.ne.s32.totalorder %s510, %s526
      %p528 = scmp.eq.s32.totalorder %s37, 0
      %p529 = por %p527, %p528
      %s530 = ssub.s32 %s39, %s46
      %p531 = scmp.eq.s32.totalorder %s530, 0
      %s533 = sadd.s32 %s532, 1
      %s534 = scalar_select %p531, %s532, %s533
      %p537 = pneg %p531
      %p538 = scmp.eq.s32.totalorder %s31, 1
      %p539 = por %p537, %p538
      %p540 = scmp.ne.s32.totalorder %s532, %s535
      %p541 = scmp.eq.s32.totalorder %s31, 0
      %p542 = por %p540, %p541
      %p543 = scmp.ne.s32.totalorder %s532, %s535
      %p544 = scmp.eq.s32.totalorder %s36, 1
      %p545 = por %p543, %p544
      %p546 = scmp.ne.s32.totalorder %s535, %s536
      %p547 = scmp.eq.s32.totalorder %s36, 0
      %p548 = por %p546, %p547
      %p549 = scmp.ne.s32.totalorder %s535, %s536
      %p550 = scmp.eq.s32.totalorder %s37, 1
      %p551 = por %p549, %p550
      %p553 = scmp.ne.s32.totalorder %s536, %s552
      %p554 = scmp.eq.s32.totalorder %s37, 0
      %p555 = por %p553, %p554
      %s557 = sadd.s32 %s556, 1
      %p560 = scmp.eq.s32.totalorder %s31, 1
      %p561 = scmp.ne.s32.totalorder %s556, %s558
      %p562 = scmp.eq.s32.totalorder %s31, 0
      %p563 = por %p561, %p562
      %p564 = scmp.ne.s32.totalorder %s556, %s558
      %p565 = scmp.eq.s32.totalorder %s36, 1
      %p566 = por %p564, %p565
      %p567 = scmp.ne.s32.totalorder %s558, %s559
      %p568 = scmp.eq.s32.totalorder %s36, 0
      %p569 = por %p567, %p568
      %p570 = scmp.ne.s32.totalorder %s558, %s559
      %p571 = scmp.eq.s32.totalorder %s37, 1
      %p572 = por %p570, %p571
      %p574 = scmp.ne.s32.totalorder %s559, %s573
      %p575 = scmp.eq.s32.totalorder %s37, 0
      %p576 = por %p574, %p575
      %s578 = sadd.s32 %s577, 1
      %p581 = scmp.eq.s32.totalorder %s31, 1
      %p582 = scmp.ne.s32.totalorder %s577, %s579
      %p583 = scmp.eq.s32.totalorder %s31, 0
      %p584 = por %p582, %p583
      %p585 = scmp.ne.s32.totalorder %s577, %s579
      %p586 = scmp.eq.s32.totalorder %s36, 1
      %p587 = por %p585, %p586
      %p588 = scmp.ne.s32.totalorder %s579, %s580
      %p589 = scmp.eq.s32.totalorder %s36, 0
      %p590 = por %p588, %p589
      %p591 = scmp.ne.s32.totalorder %s579, %s580
      %p592 = scmp.eq.s32.totalorder %s37, 1
      %p593 = por %p591, %p592
      %p595 = scmp.ne.s32.totalorder %s580, %s594
      %p596 = scmp.eq.s32.totalorder %s37, 0
      %p597 = por %p595, %p596
      %s598 = ssub.s32 %s38, %s50
      %p599 = scmp.eq.s32.totalorder %s598, 0
      %s601 = sadd.s32 %s600, 1
      %s602 = scalar_select %p599, %s600, %s601
      %p605 = pneg %p599
      %p606 = scmp.eq.s32.totalorder %s31, 1
      %p607 = por %p605, %p606
      %p608 = scmp.ne.s32.totalorder %s600, %s603
      %p609 = scmp.eq.s32.totalorder %s31, 0
      %p610 = por %p608, %p609
      %p611 = scmp.ne.s32.totalorder %s600, %s603
      %p612 = scmp.eq.s32.totalorder %s36, 1
      %p613 = por %p611, %p612
      %p614 = scmp.ne.s32.totalorder %s603, %s604
      %p615 = scmp.eq.s32.totalorder %s36, 0
      %p616 = por %p614, %p615
      %p617 = scmp.ne.s32.totalorder %s603, %s604
      %p618 = scmp.eq.s32.totalorder %s37, 1
      %p619 = por %p617, %p618
      %p621 = scmp.ne.s32.totalorder %s604, %s620
      %p622 = scmp.eq.s32.totalorder %s37, 0
      %p623 = por %p621, %p622
      %p624 = scmp.le.s32.totalorder 1, %s31
      %p625 = scmp.lt.s32.totalorder %s31, 3
      %p626 = pnand %p624, %p625
      %p627 = pneg %p626
      // Predicated region
      $region9: #{tpu_custom_call.1} parent=5 // pred_check
        _
      $region10: #{tpu_custom_call.1} parent=5 // pred_check_branch
        %629 = sbr.rel (%p626) target = $region12
      $region11: #{tpu_custom_call.1} parent=5 // pred_region
        %s630 = ssub.s32 %s31, 1
        // Predicated region
        $region13: #{tpu_custom_call.1} parent=11 // pred_check
          %p631 = pneg %p69
        $region14: #{tpu_custom_call.1} parent=11 // pred_check_branch
          %633 = sbr.rel (%p631) target = $region16
        $region15: #{tpu_custom_call.1} parent=11 // pred_region
          %s634 = smul.u32 2, %s40
          %p635 = scmp.lt.s32.totalorder %s634, 1
          %s636 = scalar_select %p635, %s634, 1
          %s637 = smul.addr %s636, 2
          %s638 = smul.addr %s637, 8
          %s639 = scalar_lea.vmem %s0, %s638
          %s640 = smul.u32 2, %s40
        $region16: #{tpu_custom_call.1} parent=11 // pred_fallthru
          _
        // Predicated region
        $region17: #{tpu_custom_call.1} parent=11 // pred_check
          %p641 = pneg %p90
        $region18: #{tpu_custom_call.1} parent=11 // pred_check_branch
          %643 = sbr.rel (%p641) target = $region20
        $region19: #{tpu_custom_call.1} parent=11 // pred_region
          _
        $region20: #{tpu_custom_call.1} parent=11 // pred_fallthru
          _
        // Predicated region
        $region21: #{tpu_custom_call.1} parent=11 // pred_check
          %p644 = pneg %p111
        $region22: #{tpu_custom_call.1} parent=11 // pred_check_branch
          %646 = sbr.rel (%p644) target = $region24
        $region23: #{tpu_custom_call.1} parent=11 // pred_region
          %s648 = ssub.s32 16, 16
          %649 = vsyncadd [#allocation4], %s648
          %s651 = sshll.u32 [#allocation3], 4
          %s652 = int_to_ptr.vmem [resolvable:$true] %s651
          %654 = dma.hbm_to_vmem [thread:$0]  %s2, 16, %s652, [#allocation4]
        $region24: #{tpu_custom_call.1} parent=11 // pred_fallthru
          _
        // Predicated region
        $region25: #{tpu_custom_call.1} parent=11 // pred_check
          %p655 = pneg %p132
        $region26: #{tpu_custom_call.1} parent=11 // pred_check_branch
          %657 = sbr.rel (%p655) target = $region28
        $region27: #{tpu_custom_call.1} parent=11 // pred_region
          %s659 = ssub.s32 256, 256
          %660 = vsyncadd [#allocation7], %s659
          %s661 = sshll.u32 [#allocation6], 4
          %s662 = int_to_ptr.vmem [resolvable:$true] %s661
          %667 = dma.hbm_to_vmem [thread:$0]  %s3, 256, %s662, [#allocation7], 128, 128, 8
        $region28: #{tpu_custom_call.1} parent=11 // pred_fallthru
          _
        // Predicated region
        $region29: #{tpu_custom_call.1} parent=11 // pred_check
          %p668 = pneg %p569
        $region30: #{tpu_custom_call.1} parent=11 // pred_check_branch
          %670 = sbr.rel (%p668) target = $region32
        $region31: #{tpu_custom_call.1} parent=11 // pred_region
          _
        $region32: #{tpu_custom_call.1} parent=11 // pred_fallthru
          _
        // Predicated region
        $region33: #{tpu_custom_call.1} parent=11 // pred_check
          %p671 = pneg %p590
        $region34: #{tpu_custom_call.1} parent=11 // pred_check_branch
          %673 = sbr.rel (%p671) target = $region36
        $region35: #{tpu_custom_call.1} parent=11 // pred_region
          _
        $region36: #{tpu_custom_call.1} parent=11 // pred_fallthru
          _
      $region12: #{tpu_custom_call.1} parent=5 // pred_fallthru
        _
      %p674 = scmp.lt.s32.totalorder %s31, 2
      // Predicated region
      $region37: #{tpu_custom_call.1} parent=5 // pred_check
        %p675 = pneg %p674
      $region38: #{tpu_custom_call.1} parent=5 // pred_check_branch
        %677 = sbr.rel (%p675) target = $region40
      $region39: #{tpu_custom_call.1} parent=5 // pred_region
        // Predicated region
        $region41: #{tpu_custom_call.1} parent=39 // pred_check
          %p678 = pneg %p152
        $region42: #{tpu_custom_call.1} parent=39 // pred_check_branch
          %680 = sbr.rel (%p678) target = $region44
        $region43: #{tpu_custom_call.1} parent=39 // pred_region
          %s681 = sand.u32 %s31, 1
          %s682 = scalar_lea.sflag [#allocation4], %s681
          %s683 = sand.u32 %s142, 1
          %s684 = scalar_lea.vmem [#allocation8], %s683
          %s686 = ssub.s32 16, 16
          %687 = vsyncadd %s682, %s686
          %s688 = smul.addr %s39, 16
          %s689 = scalar_lea.hbm %s4, %s688
          %s691 = sshll.u32 %s684, 4
          %s692 = int_to_ptr.vmem [resolvable:$true] %s691
          %694 = dma.hbm_to_vmem [thread:$0]  %s689, 16, %s692, %s682
        $region44: #{tpu_custom_call.1} parent=39 // pred_fallthru
          _
        // Predicated region
        $region45: #{tpu_custom_call.1} parent=39 // pred_check
          %p695 = pneg %p178
        $region46: #{tpu_custom_call.1} parent=39 // pred_check_branch
          %697 = sbr.rel (%p695) target = $region48
        $region47: #{tpu_custom_call.1} parent=39 // pred_region
          %s698 = sand.u32 %s31, 1
          %s699 = scalar_lea.sflag [#allocation4], %s698
          %s700 = sand.u32 %s168, 1
          %s701 = scalar_lea.vmem [#allocation9], %s700
          %s703 = ssub.s32 16, 16
          %704 = vsyncadd %s699, %s703
          %s705 = smul.addr %s39, 16
          %s706 = scalar_lea.hbm %s5, %s705
          %s708 = sshll.u32 %s701, 4
          %s709 = int_to_ptr.vmem [resolvable:$true] %s708
          %711 = dma.hbm_to_vmem [thread:$0]  %s706, 16, %s709, %s699
        $region48: #{tpu_custom_call.1} parent=39 // pred_fallthru
          _
        // Predicated region
        $region49: #{tpu_custom_call.1} parent=39 // pred_check
          %p712 = pneg %p204
        $region50: #{tpu_custom_call.1} parent=39 // pred_check_branch
          %714 = sbr.rel (%p712) target = $region52
        $region51: #{tpu_custom_call.1} parent=39 // pred_region
          %p715 = scmp.lt.s32.totalorder %s39, 1
          %s716 = scalar_select %p715, %s39, 1
          %s717 = smul.addr %s716, 4
          %s718 = smul.addr %s717, 4
          %s719 = scalar_lea.vmem %s6, %s718
        $region52: #{tpu_custom_call.1} parent=39 // pred_fallthru
          _
        // Predicated region
        $region53: #{tpu_custom_call.1} parent=39 // pred_check
          %p720 = pneg %p230
        $region54: #{tpu_custom_call.1} parent=39 // pred_check_branch
          %722 = sbr.rel (%p720) target = $region56
        $region55: #{tpu_custom_call.1} parent=39 // pred_region
          %p723 = scmp.lt.s32.totalorder %s39, 1
          %s724 = scalar_select %p723, %s39, 1
          %s725 = smul.addr %s724, 4
          %s726 = smul.addr %s725, 4
          %s727 = scalar_lea.vmem %s7, %s726
        $region56: #{tpu_custom_call.1} parent=39 // pred_fallthru
          _
        // Predicated region
        $region57: #{tpu_custom_call.1} parent=39 // pred_check
          %p728 = pneg %p256
        $region58: #{tpu_custom_call.1} parent=39 // pred_check_branch
          %730 = sbr.rel (%p728) target = $region60
        $region59: #{tpu_custom_call.1} parent=39 // pred_region
          %p731 = scmp.lt.s32.totalorder %s39, 1
          %s732 = scalar_select %p731, %s39, 1
          %s733 = smul.addr %s732, 4
          %s734 = smul.addr %s733, 4
          %s735 = scalar_lea.vmem %s8, %s734
        $region60: #{tpu_custom_call.1} parent=39 // pred_fallthru
          _
        // Predicated region
        $region61: #{tpu_custom_call.1} parent=39 // pred_check
          %p736 = pneg %p282
        $region62: #{tpu_custom_call.1} parent=39 // pred_check_branch
          %738 = sbr.rel (%p736) target = $region64
        $region63: #{tpu_custom_call.1} parent=39 // pred_region
          %s739 = sand.u32 %s31, 1
          %s740 = scalar_lea.sflag [#allocation4], %s739
          %s741 = sand.u32 %s272, 1
          %s742 = scalar_lea.vmem [#allocation10], %s741
          %s744 = ssub.s32 16, 16
          %745 = vsyncadd %s740, %s744
          %s746 = smul.addr %s39, 16
          %s747 = scalar_lea.hbm %s9, %s746
          %s749 = sshll.u32 %s742, 4
          %s750 = int_to_ptr.vmem [resolvable:$true] %s749
          %752 = dma.hbm_to_vmem [thread:$0]  %s747, 16, %s750, %s740
        $region64: #{tpu_custom_call.1} parent=39 // pred_fallthru
          _
        // Predicated region
        $region65: #{tpu_custom_call.1} parent=39 // pred_check
          %p753 = pneg %p308
        $region66: #{tpu_custom_call.1} parent=39 // pred_check_branch
          %755 = sbr.rel (%p753) target = $region68
        $region67: #{tpu_custom_call.1} parent=39 // pred_region
          %s756 = sand.u32 %s31, 1
          %s757 = scalar_lea.sflag [#allocation4], %s756
          %s758 = sand.u32 %s298, 1
          %s759 = scalar_lea.vmem [#allocation11], %s758
          %s761 = ssub.s32 16, 16
          %762 = vsyncadd %s757, %s761
          %s763 = smul.addr %s39, 16
          %s764 = scalar_lea.hbm %s10, %s763
          %s766 = sshll.u32 %s759, 4
          %s767 = int_to_ptr.vmem [resolvable:$true] %s766
          %769 = dma.hbm_to_vmem [thread:$0]  %s764, 16, %s767, %s757
        $region68: #{tpu_custom_call.1} parent=39 // pred_fallthru
          _
        // Predicated region
        $region69: #{tpu_custom_call.1} parent=39 // pred_check
          %p770 = pneg %p334
        $region70: #{tpu_custom_call.1} parent=39 // pred_check_branch
          %772 = sbr.rel (%p770) target = $region72
        $region71: #{tpu_custom_call.1} parent=39 // pred_region
          %s773 = sand.u32 %s31, 1
          %s774 = scalar_lea.sflag [#allocation4], %s773
          %s775 = sand.u32 %s324, 1
          %s776 = scalar_lea.vmem [#allocation12], %s775
          %s778 = ssub.s32 16, 16
          %779 = vsyncadd %s774, %s778
          %s780 = smul.addr %s39, 16
          %s781 = scalar_lea.hbm %s11, %s780
          %s783 = sshll.u32 %s776, 4
          %s784 = int_to_ptr.vmem [resolvable:$true] %s783
          %786 = dma.hbm_to_vmem [thread:$0]  %s781, 16, %s784, %s774
        $region72: #{tpu_custom_call.1} parent=39 // pred_fallthru
          _
        // Predicated region
        $region73: #{tpu_custom_call.1} parent=39 // pred_check
          %p787 = pneg %p360
        $region74: #{tpu_custom_call.1} parent=39 // pred_check_branch
          %789 = sbr.rel (%p787) target = $region76
        $region75: #{tpu_custom_call.1} parent=39 // pred_region
          %s790 = sand.u32 %s31, 1
          %s791 = scalar_lea.sflag [#allocation4], %s790
          %s792 = sand.u32 %s350, 1
          %s793 = smul.addr %s792, 16
          %s794 = scalar_lea.vmem [#allocation13], %s793
          %s796 = ssub.s32 256, 256
          %797 = vsyncadd %s791, %s796
          %s798 = smul.addr %s39, 4
          %s799 = smul.addr %s798, 64
          %s800 = scalar_lea.hbm %s12, %s799
          %s801 = sshll.u32 %s794, 4
          %s802 = int_to_ptr.vmem [resolvable:$true] %s801
          %807 = dma.hbm_to_vmem [thread:$0]  %s800, 256, %s802, %s791, 64, 64, 4
        $region76: #{tpu_custom_call.1} parent=39 // pred_fallthru
          _
        // Predicated region
        $region77: #{tpu_custom_call.1} parent=39 // pred_check
          %p808 = pneg %p386
        $region78: #{tpu_custom_call.1} parent=39 // pred_check_branch
          %810 = sbr.rel (%p808) target = $region80
        $region79: #{tpu_custom_call.1} parent=39 // pred_region
          %s811 = sand.u32 %s31, 1
          %s812 = scalar_lea.sflag [#allocation4], %s811
          %s813 = sand.u32 %s376, 1
          %s814 = scalar_lea.vmem [#allocation14], %s813
          %s816 = ssub.s32 16, 16
          %817 = vsyncadd %s812, %s816
          %s818 = smul.addr %s39, 16
          %s819 = scalar_lea.hbm %s13, %s818
          %s821 = sshll.u32 %s814, 4
          %s822 = int_to_ptr.vmem [resolvable:$true] %s821
          %824 = dma.hbm_to_vmem [thread:$0]  %s819, 16, %s822, %s812
        $region80: #{tpu_custom_call.1} parent=39 // pred_fallthru
          _
        // Predicated region
        $region81: #{tpu_custom_call.1} parent=39 // pred_check
          %p825 = pneg %p412
        $region82: #{tpu_custom_call.1} parent=39 // pred_check_branch
          %827 = sbr.rel (%p825) target = $region84
        $region83: #{tpu_custom_call.1} parent=39 // pred_region
          %s828 = sand.u32 %s31, 1
          %s829 = scalar_lea.sflag [#allocation4], %s828
          %s830 = sand.u32 %s402, 1
          %s831 = scalar_lea.vmem [#allocation15], %s830
          %s833 = ssub.s32 16, 16
          %834 = vsyncadd %s829, %s833
          %s835 = smul.addr %s39, 16
          %s836 = scalar_lea.hbm %s14, %s835
          %s838 = sshll.u32 %s831, 4
          %s839 = int_to_ptr.vmem [resolvable:$true] %s838
          %841 = dma.hbm_to_vmem [thread:$0]  %s836, 16, %s839, %s829
        $region84: #{tpu_custom_call.1} parent=39 // pred_fallthru
          _
        // Predicated region
        $region85: #{tpu_custom_call.1} parent=39 // pred_check
          %p842 = pneg %p438
        $region86: #{tpu_custom_call.1} parent=39 // pred_check_branch
          %844 = sbr.rel (%p842) target = $region88
        $region87: #{tpu_custom_call.1} parent=39 // pred_region
          %s845 = sand.u32 %s31, 1
          %s846 = scalar_lea.sflag [#allocation4], %s845
          %s847 = sand.u32 %s428, 1
          %s848 = scalar_lea.vmem [#allocation16], %s847
          %s850 = ssub.s32 16, 16
          %851 = vsyncadd %s846, %s850
          %s852 = smul.addr %s39, 16
          %s853 = scalar_lea.hbm %s15, %s852
          %s855 = sshll.u32 %s848, 4
          %s856 = int_to_ptr.vmem [resolvable:$true] %s855
          %858 = dma.hbm_to_vmem [thread:$0]  %s853, 16, %s856, %s846
        $region88: #{tpu_custom_call.1} parent=39 // pred_fallthru
          _
        // Predicated region
        $region89: #{tpu_custom_call.1} parent=39 // pred_check
          %p859 = pneg %p464
        $region90: #{tpu_custom_call.1} parent=39 // pred_check_branch
          %861 = sbr.rel (%p859) target = $region92
        $region91: #{tpu_custom_call.1} parent=39 // pred_region
          %p862 = scmp.lt.s32.totalorder %s39, 1
          %s863 = scalar_select %p862, %s39, 1
          %s864 = smul.addr %s863, 4
          %s865 = smul.addr %s864, 4
          %s866 = scalar_lea.vmem %s16, %s865
        $region92: #{tpu_custom_call.1} parent=39 // pred_fallthru
          _
        // Predicated region
        $region93: #{tpu_custom_call.1} parent=39 // pred_check
          %p867 = pneg %p490
        $region94: #{tpu_custom_call.1} parent=39 // pred_check_branch
          %869 = sbr.rel (%p867) target = $region96
        $region95: #{tpu_custom_call.1} parent=39 // pred_region
          %p870 = scmp.lt.s32.totalorder %s39, 1
          %s871 = scalar_select %p870, %s39, 1
          %s872 = scalar_lea.vmem %s17, %s871
        $region96: #{tpu_custom_call.1} parent=39 // pred_fallthru
          _
        // Predicated region
        $region97: #{tpu_custom_call.1} parent=39 // pred_check
          %p873 = pneg %p516
        $region98: #{tpu_custom_call.1} parent=39 // pred_check_branch
          %875 = sbr.rel (%p873) target = $region100
        $region99: #{tpu_custom_call.1} parent=39 // pred_region
          %p876 = scmp.lt.s32.totalorder %s39, 1
          %s877 = scalar_select %p876, %s39, 1
          %s878 = smul.addr %s877, 8
          %s879 = smul.addr %s878, 4
          %s880 = scalar_lea.vmem %s18, %s879
        $region100: #{tpu_custom_call.1} parent=39 // pred_fallthru
          _
        // Predicated region
        $region101: #{tpu_custom_call.1} parent=39 // pred_check
          %p881 = pneg %p542
        $region102: #{tpu_custom_call.1} parent=39 // pred_check_branch
          %883 = sbr.rel (%p881) target = $region104
        $region103: #{tpu_custom_call.1} parent=39 // pred_region
          %p884 = scmp.lt.s32.totalorder %s39, 1
          %s885 = scalar_select %p884, %s39, 1
          %s886 = scalar_lea.vmem %s19, %s885
        $region104: #{tpu_custom_call.1} parent=39 // pred_fallthru
          _
      $region40: #{tpu_custom_call.1} parent=5 // pred_fallthru
        _
      %p887 = scmp.le.s32.totalorder 1, %s31
      %p888 = scmp.lt.s32.totalorder %s31, 3
      %p889 = pnand %p887, %p888
      %p890 = pneg %p889
      // Predicated region
      $region105: #{tpu_custom_call.1} parent=5 // pred_check
        _
      $region106: #{tpu_custom_call.1} parent=5 // pred_check_branch
        %892 = sbr.rel (%p889) target = $region108
      $region107: #{tpu_custom_call.1} parent=5 // pred_region
        %s893 = ssub.s32 %s31, 1
        // Predicated region
        $region109: #{tpu_custom_call.1} parent=107 // pred_check
          %p894 = pneg %p111
        $region110: #{tpu_custom_call.1} parent=107 // pred_check_branch
          %896 = sbr.rel (%p894) target = $region112
        $region111: #{tpu_custom_call.1} parent=107 // pred_region
          %897 = dma.done [#allocation4], 16
        $region112: #{tpu_custom_call.1} parent=107 // pred_fallthru
          _
        // Predicated region
        $region113: #{tpu_custom_call.1} parent=107 // pred_check
          %p898 = pneg %p132
        $region114: #{tpu_custom_call.1} parent=107 // pred_check_branch
          %900 = sbr.rel (%p898) target = $region116
        $region115: #{tpu_custom_call.1} parent=107 // pred_region
          %901 = dma.done [#allocation7], 256
        $region116: #{tpu_custom_call.1} parent=107 // pred_fallthru
          _
        %s902 = sand.u32 %s36, 1
        %s903 = scalar_lea.sflag [#allocation4], %s902
        %s904 = sand.u32 %s145, 1
        %s905 = scalar_lea.vmem [#allocation8], %s904
        // Predicated region
        $region117: #{tpu_custom_call.1} parent=107 // pred_check
          %p906 = pneg %p158
        $region118: #{tpu_custom_call.1} parent=107 // pred_check_branch
          %908 = sbr.rel (%p906) target = $region120
        $region119: #{tpu_custom_call.1} parent=107 // pred_region
          %909 = dma.done %s903, 16
        $region120: #{tpu_custom_call.1} parent=107 // pred_fallthru
          _
        %s910 = sand.u32 %s36, 1
        %s911 = scalar_lea.sflag [#allocation4], %s910
        %s912 = sand.u32 %s171, 1
        %s913 = scalar_lea.vmem [#allocation9], %s912
        // Predicated region
        $region121: #{tpu_custom_call.1} parent=107 // pred_check
          %p914 = pneg %p184
        $region122: #{tpu_custom_call.1} parent=107 // pred_check_branch
          %916 = sbr.rel (%p914) target = $region124
        $region123: #{tpu_custom_call.1} parent=107 // pred_region
          %917 = dma.done %s911, 16
        $region124: #{tpu_custom_call.1} parent=107 // pred_fallthru
          _
        %s918 = sand.u32 %s36, 1
        %s919 = scalar_lea.sflag [#allocation4], %s918
        %s920 = sand.u32 %s275, 1
        %s921 = scalar_lea.vmem [#allocation10], %s920
        // Predicated region
        $region125: #{tpu_custom_call.1} parent=107 // pred_check
          %p922 = pneg %p288
        $region126: #{tpu_custom_call.1} parent=107 // pred_check_branch
          %924 = sbr.rel (%p922) target = $region128
        $region127: #{tpu_custom_call.1} parent=107 // pred_region
          %925 = dma.done %s919, 16
        $region128: #{tpu_custom_call.1} parent=107 // pred_fallthru
          _
        %s926 = sand.u32 %s36, 1
        %s927 = scalar_lea.sflag [#allocation4], %s926
        %s928 = sand.u32 %s301, 1
        %s929 = scalar_lea.vmem [#allocation11], %s928
        // Predicated region
        $region129: #{tpu_custom_call.1} parent=107 // pred_check
          %p930 = pneg %p314
        $region130: #{tpu_custom_call.1} parent=107 // pred_check_branch
          %932 = sbr.rel (%p930) target = $region132
        $region131: #{tpu_custom_call.1} parent=107 // pred_region
          %933 = dma.done %s927, 16
        $region132: #{tpu_custom_call.1} parent=107 // pred_fallthru
          _
        %s934 = sand.u32 %s36, 1
        %s935 = scalar_lea.sflag [#allocation4], %s934
        %s936 = sand.u32 %s327, 1
        %s937 = scalar_lea.vmem [#allocation12], %s936
        // Predicated region
        $region133: #{tpu_custom_call.1} parent=107 // pred_check
          %p938 = pneg %p340
        $region134: #{tpu_custom_call.1} parent=107 // pred_check_branch
          %940 = sbr.rel (%p938) target = $region136
        $region135: #{tpu_custom_call.1} parent=107 // pred_region
          %941 = dma.done %s935, 16
        $region136: #{tpu_custom_call.1} parent=107 // pred_fallthru
          _
        %s942 = sand.u32 %s36, 1
        %s943 = scalar_lea.sflag [#allocation4], %s942
        %s944 = sand.u32 %s353, 1
        %s945 = smul.addr %s944, 16
        %s946 = scalar_lea.vmem [#allocation13], %s945
        // Predicated region
        $region137: #{tpu_custom_call.1} parent=107 // pred_check
          %p947 = pneg %p366
        $region138: #{tpu_custom_call.1} parent=107 // pred_check_branch
          %949 = sbr.rel (%p947) target = $region140
        $region139: #{tpu_custom_call.1} parent=107 // pred_region
          %950 = dma.done %s943, 256
        $region140: #{tpu_custom_call.1} parent=107 // pred_fallthru
          _
        %s951 = sand.u32 %s36, 1
        %s952 = scalar_lea.sflag [#allocation4], %s951
        %s953 = sand.u32 %s379, 1
        %s954 = scalar_lea.vmem [#allocation14], %s953
        // Predicated region
        $region141: #{tpu_custom_call.1} parent=107 // pred_check
          %p955 = pneg %p392
        $region142: #{tpu_custom_call.1} parent=107 // pred_check_branch
          %957 = sbr.rel (%p955) target = $region144
        $region143: #{tpu_custom_call.1} parent=107 // pred_region
          %958 = dma.done %s952, 16
        $region144: #{tpu_custom_call.1} parent=107 // pred_fallthru
          _
        %s959 = sand.u32 %s36, 1
        %s960 = scalar_lea.sflag [#allocation4], %s959
        %s961 = sand.u32 %s405, 1
        %s962 = scalar_lea.vmem [#allocation15], %s961
        // Predicated region
        $region145: #{tpu_custom_call.1} parent=107 // pred_check
          %p963 = pneg %p418
        $region146: #{tpu_custom_call.1} parent=107 // pred_check_branch
          %965 = sbr.rel (%p963) target = $region148
        $region147: #{tpu_custom_call.1} parent=107 // pred_region
          %966 = dma.done %s960, 16
        $region148: #{tpu_custom_call.1} parent=107 // pred_fallthru
          _
        %s967 = sand.u32 %s36, 1
        %s968 = scalar_lea.sflag [#allocation4], %s967
        %s969 = sand.u32 %s431, 1
        %s970 = scalar_lea.vmem [#allocation16], %s969
        // Predicated region
        $region149: #{tpu_custom_call.1} parent=107 // pred_check
          %p971 = pneg %p444
        $region150: #{tpu_custom_call.1} parent=107 // pred_check_branch
          %973 = sbr.rel (%p971) target = $region152
        $region151: #{tpu_custom_call.1} parent=107 // pred_region
          %974 = dma.done %s968, 16
        $region152: #{tpu_custom_call.1} parent=107 // pred_fallthru
          _
        %s975 = smul.u32 2, %s40
        %p976 = scmp.lt.s32.totalorder %s975, 1
        %s977 = scalar_select %p976, %s975, 1
        %s978 = smul.addr %s977, 2
        %s979 = smul.addr %s978, 8
        %s980 = scalar_lea.vmem %s0, %s979
        %p981 = pneg %p69
        %p982 = pneg %p66
        %p983 = pneg %p90
        %p984 = pneg %p87
        %p985 = pneg %p111
        %p986 = pneg %p108
        %p987 = pneg %p132
        %p988 = pneg %p129
        %s989 = sand.u32 %s36, 1
        %s990 = scalar_lea.sflag [#allocation4], %s989
        %s991 = sand.u32 %s145, 1
        %s992 = scalar_lea.vmem [#allocation8], %s991
        %p993 = pneg %p158
        %p994 = pneg %p155
        %s995 = sand.u32 %s36, 1
        %s996 = scalar_lea.sflag [#allocation4], %s995
        %s997 = sand.u32 %s171, 1
        %s998 = scalar_lea.vmem [#allocation9], %s997
        %p999 = pneg %p184
        %p1000 = pneg %p181
        %p1001 = scmp.lt.s32.totalorder %s41, 1
        %s1002 = scalar_select %p1001, %s41, 1
        %s1003 = smul.addr %s1002, 4
        %s1004 = smul.addr %s1003, 4
        %s1005 = scalar_lea.vmem %s6, %s1004
        %p1006 = pneg %p210
        %p1007 = pneg %p207
        %p1008 = scmp.lt.s32.totalorder %s41, 1
        %s1009 = scalar_select %p1008, %s41, 1
        %s1010 = smul.addr %s1009, 4
        %s1011 = smul.addr %s1010, 4
        %s1012 = scalar_lea.vmem %s7, %s1011
        %p1013 = pneg %p236
        %p1014 = pneg %p233
        %p1015 = scmp.lt.s32.totalorder %s41, 1
        %s1016 = scalar_select %p1015, %s41, 1
        %s1017 = smul.addr %s1016, 4
        %s1018 = smul.addr %s1017, 4
        %s1019 = scalar_lea.vmem %s8, %s1018
        %p1020 = pneg %p262
        %p1021 = pneg %p259
        %s1022 = sand.u32 %s36, 1
        %s1023 = scalar_lea.sflag [#allocation4], %s1022
        %s1024 = sand.u32 %s275, 1
        %s1025 = scalar_lea.vmem [#allocation10], %s1024
        %p1026 = pneg %p288
        %p1027 = pneg %p285
        %s1028 = sand.u32 %s36, 1
        %s1029 = scalar_lea.sflag [#allocation4], %s1028
        %s1030 = sand.u32 %s301, 1
        %s1031 = scalar_lea.vmem [#allocation11], %s1030
        %p1032 = pneg %p314
        %p1033 = pneg %p311
        %s1034 = sand.u32 %s36, 1
        %s1035 = scalar_lea.sflag [#allocation4], %s1034
        %s1036 = sand.u32 %s327, 1
        %s1037 = scalar_lea.vmem [#allocation12], %s1036
        %p1038 = pneg %p340
        %p1039 = pneg %p337
        %s1040 = sand.u32 %s36, 1
        %s1041 = scalar_lea.sflag [#allocation4], %s1040
        %s1042 = sand.u32 %s353, 1
        %s1043 = smul.addr %s1042, 16
        %s1044 = scalar_lea.vmem [#allocation13], %s1043
        %p1045 = pneg %p366
        %p1046 = pneg %p363
        %s1047 = sand.u32 %s36, 1
        %s1048 = scalar_lea.sflag [#allocation4], %s1047
        %s1049 = sand.u32 %s379, 1
        %s1050 = scalar_lea.vmem [#allocation14], %s1049
        %p1051 = pneg %p392
        %p1052 = pneg %p389
        %s1053 = sand.u32 %s36, 1
        %s1054 = scalar_lea.sflag [#allocation4], %s1053
        %s1055 = sand.u32 %s405, 1
        %s1056 = scalar_lea.vmem [#allocation15], %s1055
        %p1057 = pneg %p418
        %p1058 = pneg %p415
        %s1059 = sand.u32 %s36, 1
        %s1060 = scalar_lea.sflag [#allocation4], %s1059
        %s1061 = sand.u32 %s431, 1
        %s1062 = scalar_lea.vmem [#allocation16], %s1061
        %p1063 = pneg %p444
        %p1064 = pneg %p441
        %p1065 = scmp.lt.s32.totalorder %s41, 1
        %s1066 = scalar_select %p1065, %s41, 1
        %s1067 = smul.addr %s1066, 4
        %s1068 = smul.addr %s1067, 4
        %s1069 = scalar_lea.vmem %s16, %s1068
        %p1070 = pneg %p470
        %p1071 = pneg %p467
        %p1072 = scmp.lt.s32.totalorder %s41, 1
        %s1073 = scalar_select %p1072, %s41, 1
        %s1074 = scalar_lea.vmem %s17, %s1073
        %p1075 = pneg %p496
        %p1076 = pneg %p493
        %p1077 = scmp.lt.s32.totalorder %s41, 1
        %s1078 = scalar_select %p1077, %s41, 1
        %s1079 = smul.addr %s1078, 8
        %s1080 = smul.addr %s1079, 4
        %s1081 = scalar_lea.vmem %s18, %s1080
        %p1082 = pneg %p522
        %p1083 = pneg %p519
        %p1084 = scmp.lt.s32.totalorder %s41, 1
        %s1085 = scalar_select %p1084, %s41, 1
        %s1086 = scalar_lea.vmem %s19, %s1085
        %p1087 = pneg %p548
        %p1088 = pneg %p545
        %p1089 = pneg %p569
        %p1090 = pneg %p566
        %p1091 = pneg %p590
        %p1092 = pneg %p587
        %p1093 = pneg %p616
        %p1094 = pneg %p613
        %s1095 = smul.u32 2, %s40
        %p1096 = scmp.lt.s32.totalorder %s1095, 1
        %s1097 = scalar_select %p1096, %s1095, 1
        %s1098 = smul.addr %s1097, 2
        %s1099 = smul.addr %s1098, 8
        %s1100 = scalar_lea.vmem %s0, %s1099
        %s1101 = smul.u32 2, %s40
        %p1102 = scmp.lt.s32.totalorder %s41, 1
        %s1103 = scalar_select %p1102, %s41, 1
        %s1104 = smul.addr %s1103, 4
        %s1105 = smul.addr %s1104, 4
        %s1106 = scalar_lea.vmem %s6, %s1105
        %p1107 = scmp.lt.s32.totalorder %s41, 1
        %s1108 = scalar_select %p1107, %s41, 1
        %s1109 = smul.addr %s1108, 4
        %s1110 = smul.addr %s1109, 4
        %s1111 = scalar_lea.vmem %s7, %s1110
        %p1112 = scmp.lt.s32.totalorder %s41, 1
        %s1113 = scalar_select %p1112, %s41, 1
        %s1114 = smul.addr %s1113, 4
        %s1115 = smul.addr %s1114, 4
        %s1116 = scalar_lea.vmem %s8, %s1115
        %p1117 = scmp.lt.s32.totalorder %s41, 1
        %s1118 = scalar_select %p1117, %s41, 1
        %s1119 = smul.addr %s1118, 4
        %s1120 = smul.addr %s1119, 4
        %s1121 = scalar_lea.vmem %s16, %s1120
        %p1122 = scmp.lt.s32.totalorder %s41, 1
        %s1123 = scalar_select %p1122, %s41, 1
        %s1124 = scalar_lea.vmem %s17, %s1123
        %p1125 = scmp.lt.s32.totalorder %s41, 1
        %s1126 = scalar_select %p1125, %s41, 1
        %s1127 = smul.addr %s1126, 8
        %s1128 = smul.addr %s1127, 4
        %s1129 = scalar_lea.vmem %s18, %s1128
        %p1130 = scmp.lt.s32.totalorder %s41, 1
        %s1131 = scalar_select %p1130, %s41, 1
        %s1132 = scalar_lea.vmem %s19, %s1131
        %s1133 = smul.u32 2, %s40
        %p1135 = scmp.eq.s32.totalorder %s41, 0
        // Predicated region
        $region153: #{tpu_custom_call.1} parent=107 // pred_check
          %p1136 = pneg %p1135
        $region154: #{tpu_custom_call.1} parent=107 // pred_check_branch
          %1138 = sbr.rel (%p1136) target = $region156
        $region155: #{tpu_custom_call.1} parent=107 // pred_region
          %v1139 = vld [vmem:[%s1100] sm:$0xff]
          %v1140 = vld [vmem:[%s1100 + $0x8] sm:$0xff]
          %v1141 = vld [vmem:[%s1100 + $0x10] sm:$0xff]
          %v1142 = vld [vmem:[%s1100 + $0x18] sm:$0xff]
          %v1143 = vpack.c.bf16 %v1140, %v1139
          %v1144 = vpack.c.bf16 %v1142, %v1141
          %v1145 = vld [vmem:[%s1] sm:$0xf]
          %v1146 = vld [vmem:[%s1 + $0x4] sm:$0xf]
          %v1147 = vld [vmem:[%s1 + $0x8] sm:$0xf]
          %v1148 = vld [vmem:[%s1 + $0xc] sm:$0xf]
          %v1149 = vld [vmem:[%s1 + $0x10] sm:$0xf]
          %v1150 = vld [vmem:[%s1 + $0x14] sm:$0xf]
          %v1151 = vld [vmem:[#allocation3] sm:$0x1]
          %v1153 = vlaneseq
          %v1154 = vshrl.u32 %v1153, 7
          %v1155 = vsub.s32 0, %v1154
          %v1156 = vrot.slane %v1151, %v1155
          %v1164 = vunpack.c.l.b16 %v1145
          %v1165 = vunpack.c.l.b16 %v1146
          %v1166 = vunpack.c.l.b16 %v1147
          %v1167 = vunpack.c.l.b16 %v1148
          %v1168 = vunpack.c.l.b16 %v1149
          %v1169 = vunpack.c.l.b16 %v1150
          %v1170 = vpack.c.b16 %v1165, %v1164
          %v1171 = vpack.c.b16 %v1167, %v1166
          %v1172 = vpack.c.b16 %v1169, %v1168
          %vm1176 = vcmask 392192
          %v1178 = vsel %vm1176, %v1143, 0
          %v1181 = vsel %vm1176, %v1144, 0
          %1183 = vmatprep.subr.bf16.mxu0 0
          %1184 = vmatpush1.bf16.msra.mxu0 %v1170
          %1185 = vmatprep.subr.bf16.mxu0 0
          %1186 = vmatpush1.bf16.msra.mxu0 %v1171
          %1187 = vmatprep.subr.bf16.mxu0 0
          %1188 = vmatpush1.bf16.msra.mxu0 %v1172
          %1189 = vmatprep.subr.bf16.mxu0 0
          %1190 = vmatpush1.bf16.msra.mxu0 0
          %1191 = vmatprep.subr.bf16.mxu0 0
          %1192 = vmatpush1.bf16.msra.mxu0 0
          %1193 = vmatprep.subr.bf16.mxu0 0
          %1194 = vmatpush1.bf16.msra.mxu0 0
          %1195 = vmatprep.subr.bf16.mxu0 0
          %1196 = vmatpush1.bf16.msra.mxu0 0
          %1197 = vmatprep.subr.bf16.mxu0 0
          %1198 = vmatpush1.bf16.msra.mxu0 0
          %1199 = vmatprep.subr.bf16.mxu0 0
          %1200 = vmatpush1.bf16.msra.mxu0 0
          %1201 = vmatprep.subr.bf16.mxu0 0
          %1202 = vmatpush1.bf16.msra.mxu0 0
          %1203 = vmatprep.subr.bf16.mxu0 0
          %1204 = vmatpush1.bf16.msra.mxu0 0
          %1205 = vmatprep.subr.bf16.mxu0 0
          %1206 = vmatpush1.bf16.msra.mxu0 0
          %1207 = vmatprep.subr.bf16.mxu0 0
          %1208 = vmatpush1.bf16.msra.mxu0 0
          %1209 = vmatprep.subr.bf16.mxu0 0
          %1210 = vmatpush1.bf16.msra.mxu0 0
          %1211 = vmatprep.subr.bf16.mxu0 0
          %1212 = vmatpush1.bf16.msra.mxu0 0
          %1213 = vmatprep.subr.bf16.mxu0 0
          %1214 = vmatpush1.bf16.msra.mxu0 0
          %1215 = vmatprep.mubr.bf16.mxu0 0
          %1216 = vmatmul.mubr.bf16.gmra.mrb[0].mxu0 %v1178
          %v1217 = vpop.f32.mrb[0].mxu0
          %v1218 = vadd.f32 %v1156, %v1217
          %v1219 = vpop.f32.mrb[0].mxu0
          %v1220 = vpop.f32.mrb[0].mxu0
          %v1221 = vadd.f32 %v1156, %v1220
          %v1222 = vpop.f32.mrb[0].mxu0
          %1223 = vmatprep.mubr.bf16.mxu0 0
          %1224 = vmatmul.mubr.bf16.gmra.mrb[0].mxu0 %v1181
          %v1225 = vpop.f32.mrb[0].mxu0
          %v1226 = vadd.f32 %v1156, %v1225
          %v1227 = vpop.f32.mrb[0].mxu0
          %v1228 = vpop.f32.mrb[0].mxu0
          %v1229 = vadd.f32 %v1156, %v1228
          %v1230 = vpop.f32.mrb[0].mxu0
          %1231 = vdwg.mxu0
          %v1232 = vld [vmem:[#allocation6] sm:$0xff]
          %v1233 = vld [vmem:[#allocation6 + $0x8] sm:$0xff]
          %v1234 = vadd.f32 %v1218, %v1232
          %v1235 = vadd.f32 %v1221, %v1233
          %v1236 = vadd.f32 %v1226, %v1232
          %v1237 = vadd.f32 %v1229, %v1233
          %vm1238 = vcmask 261120
          %1239 = vst.msk [vmem:[#allocation2] sm:$0xff] %vm1238, %v1234
          %1240 = vst.msk [vmem:[#allocation2 + $0x8] sm:$0xff] %vm1238, %v1235
          %1241 = vst.msk [vmem:[#allocation2 + $0x10] sm:$0xff] %vm1238, %v1236
          %1242 = vst.msk [vmem:[#allocation2 + $0x18] sm:$0xff] %vm1238, %v1237
        $region156: #{tpu_custom_call.1} parent=107 // pred_fallthru
          _
        %v1243 = vld [vmem:[#allocation2] sm:$0xff]
        %v1244 = vld [vmem:[#allocation2 + $0x8] sm:$0xff]
        %v1245 = vld [vmem:[#allocation2 + $0x10] sm:$0xff]
        %v1246 = vld [vmem:[#allocation2 + $0x18] sm:$0xff]
        %v1247 = vld [vmem:[%s905] sm:$0x1]
        %v1248 = vld [vmem:[%s913] sm:$0x1]
        %vm1249 = vcmask 261120
        %v1250 = vsel %vm1249, %v1243, 0.0
        %1251 = vadd.xlane.f32.xlu0 %v1250
        %v1252 = vpop.xlane.xlu0 %1251
        %v1253 = vsel %vm1249, %v1244, 0.0
        %1254 = vadd.xlane.f32.xlu0 %v1253
        %v1255 = vpop.xlane.xlu0 %1254
        %v1256 = vsel %vm1249, %v1245, 0.0
        %1257 = vadd.xlane.f32.xlu0 %v1256
        %v1258 = vpop.xlane.xlu0 %1257
        %v1259 = vsel %vm1249, %v1246, 0.0
        %1260 = vadd.xlane.f32.xlu0 %v1259
        %v1261 = vpop.xlane.xlu0 %1260
        %v1262 = vrcp.pop 32.0
        %v1263 = vmul.f32 %v1252, %v1262
        %v1264 = vmul.f32 %v1255, %v1262
        %v1265 = vmul.f32 %v1258, %v1262
        %v1266 = vmul.f32 %v1261, %v1262
        %v1267 = vsub.f32 %v1243, %v1263
        %v1268 = vsub.f32 %v1244, %v1264
        %v1269 = vsub.f32 %v1245, %v1265
        %v1270 = vsub.f32 %v1246, %v1266
        %v1271 = vmul.f32 %v1267, %v1267
        %v1272 = vmul.f32 %v1268, %v1268
        %v1273 = vmul.f32 %v1269, %v1269
        %v1274 = vmul.f32 %v1270, %v1270
        %v1275 = vsel %vm1249, %v1271, 0.0
        %1276 = vadd.xlane.f32.xlu0 %v1275
        %v1277 = vpop.xlane.xlu0 %1276
        %v1278 = vsel %vm1249, %v1272, 0.0
        %1279 = vadd.xlane.f32.xlu0 %v1278
        %v1280 = vpop.xlane.xlu0 %1279
        %v1281 = vsel %vm1249, %v1273, 0.0
        %1282 = vadd.xlane.f32.xlu0 %v1281
        %v1283 = vpop.xlane.xlu0 %1282
        %v1284 = vsel %vm1249, %v1274, 0.0
        %1285 = vadd.xlane.f32.xlu0 %v1284
        %v1286 = vpop.xlane.xlu0 %1285
        %v1287 = vmul.f32 %v1277, %v1262
        %v1288 = vmul.f32 %v1280, %v1262
        %v1289 = vmul.f32 %v1283, %v1262
        %v1290 = vmul.f32 %v1286, %v1262
        %v1291 = vadd.f32 %v1287, 1e-06
        %v1292 = vadd.f32 %v1288, 1e-06
        %v1293 = vadd.f32 %v1289, 1e-06
        %v1294 = vadd.f32 %v1290, 1e-06
        %v1295 = vrsqrt.pop %v1291
        %v1296 = vrsqrt.pop %v1292
        %v1297 = vrsqrt.pop %v1293
        %v1298 = vrsqrt.pop %v1294
        %v1299 = vmul.f32 %v1267, %v1295
        %v1300 = vmul.f32 %v1268, %v1296
        %v1301 = vmul.f32 %v1269, %v1297
        %v1302 = vmul.f32 %v1270, %v1298
        %v1304 = vlaneseq
        %v1305 = vshrl.u32 %v1304, 7
        %v1306 = vsub.s32 0, %v1305
        %v1307 = vrot.slane %v1247, %v1306
        %v1309 = vmul.f32 %v1299, %v1307
        %v1310 = vmul.f32 %v1300, %v1307
        %v1311 = vmul.f32 %v1301, %v1307
        %v1312 = vmul.f32 %v1302, %v1307
        %v1314 = vlaneseq
        %v1315 = vshrl.u32 %v1314, 7
        %v1316 = vsub.s32 0, %v1315
        %v1317 = vrot.slane %v1248, %v1316
        %v1319 = vadd.f32 %v1309, %v1317
        %v1320 = vadd.f32 %v1310, %v1317
        %v1321 = vadd.f32 %v1311, %v1317
        %v1322 = vadd.f32 %v1312, %v1317
        %v1323 = vpack.c.bf16 %v1320, %v1319
        %v1324 = vpack.c.bf16 %v1322, %v1321
        %v1325 = vld [vmem:[%s1106] sm:$0xf]
        %v1326 = vld [vmem:[%s1106 + $0x4] sm:$0xf]
        %v1327 = vld [vmem:[%s1106 + $0x8] sm:$0xf]
        %v1328 = vld [vmem:[%s1106 + $0xc] sm:$0xf]
        %v1329 = vld [vmem:[%s921] sm:$0x1]
        %v1331 = vlaneseq
        %v1332 = vshrl.u32 %v1331, 7
        %v1333 = vsub.s32 0, %v1332
        %v1334 = vrot.slane %v1329, %v1333
        %v1340 = vunpack.c.l.b16 %v1325
        %v1341 = vunpack.c.l.b16 %v1326
        %v1342 = vunpack.c.l.b16 %v1327
        %v1343 = vunpack.c.l.b16 %v1328
        %v1344 = vpack.c.b16 %v1341, %v1340
        %v1345 = vpack.c.b16 %v1343, %v1342
        %v1349 = vsel %vm1249, %v1323, 0
        %v1352 = vsel %vm1249, %v1324, 0
        %1354 = vmatprep.subr.bf16.mxu0 0
        %1355 = vmatpush1.bf16.msra.mxu0 %v1344
        %1356 = vmatprep.subr.bf16.mxu0 0
        %1357 = vmatpush1.bf16.msra.mxu0 %v1345
        %1358 = vmatprep.subr.bf16.mxu0 0
        %1359 = vmatpush1.bf16.msra.mxu0 0
        %1360 = vmatprep.subr.bf16.mxu0 0
        %1361 = vmatpush1.bf16.msra.mxu0 0
        %1362 = vmatprep.subr.bf16.mxu0 0
        %1363 = vmatpush1.bf16.msra.mxu0 0
        %1364 = vmatprep.subr.bf16.mxu0 0
        %1365 = vmatpush1.bf16.msra.mxu0 0
        %1366 = vmatprep.subr.bf16.mxu0 0
        %1367 = vmatpush1.bf16.msra.mxu0 0
        %1368 = vmatprep.subr.bf16.mxu0 0
        %1369 = vmatpush1.bf16.msra.mxu0 0
        %1370 = vmatprep.subr.bf16.mxu0 0
        %1371 = vmatpush1.bf16.msra.mxu0 0
        %1372 = vmatprep.subr.bf16.mxu0 0
        %1373 = vmatpush1.bf16.msra.mxu0 0
        %1374 = vmatprep.subr.bf16.mxu0 0
        %1375 = vmatpush1.bf16.msra.mxu0 0
        %1376 = vmatprep.subr.bf16.mxu0 0
        %1377 = vmatpush1.bf16.msra.mxu0 0
        %1378 = vmatprep.subr.bf16.mxu0 0
        %1379 = vmatpush1.bf16.msra.mxu0 0
        %1380 = vmatprep.subr.bf16.mxu0 0
        %1381 = vmatpush1.bf16.msra.mxu0 0
        %1382 = vmatprep.subr.bf16.mxu0 0
        %1383 = vmatpush1.bf16.msra.mxu0 0
        %1384 = vmatprep.subr.bf16.mxu0 0
        %1385 = vmatpush1.bf16.msra.mxu0 0
        %1386 = vmatprep.mubr.bf16.mxu0 0
        %1387 = vmatmul.mubr.bf16.gmra.mrb[0].mxu0 %v1349
        %v1388 = vpop.f32.mrb[0].mxu0
        %v1389 = vadd.f32 %v1334, %v1388
        %v1390 = vpop.f32.mrb[0].mxu0
        %v1391 = vpop.f32.mrb[0].mxu0
        %v1392 = vadd.f32 %v1334, %v1391
        %v1393 = vpop.f32.mrb[0].mxu0
        %1394 = vmatprep.mubr.bf16.mxu0 0
        %1395 = vmatmul.mubr.bf16.gmra.mrb[0].mxu0 %v1352
        %v1396 = vpop.f32.mrb[0].mxu0
        %v1397 = vadd.f32 %v1334, %v1396
        %v1398 = vpop.f32.mrb[0].mxu0
        %v1399 = vpop.f32.mrb[0].mxu0
        %v1400 = vadd.f32 %v1334, %v1399
        %v1401 = vpop.f32.mrb[0].mxu0
        %1402 = vdwg.mxu0
        %v1403 = vld [vmem:[%s1111] sm:$0xf]
        %v1404 = vld [vmem:[%s1111 + $0x4] sm:$0xf]
        %v1405 = vld [vmem:[%s1111 + $0x8] sm:$0xf]
        %v1406 = vld [vmem:[%s1111 + $0xc] sm:$0xf]
        %v1407 = vld [vmem:[%s929] sm:$0x1]
        %v1409 = vlaneseq
        %v1410 = vshrl.u32 %v1409, 7
        %v1411 = vsub.s32 0, %v1410
        %v1412 = vrot.slane %v1407, %v1411
        %v1418 = vunpack.c.l.b16 %v1403
        %v1419 = vunpack.c.l.b16 %v1404
        %v1420 = vunpack.c.l.b16 %v1405
        %v1421 = vunpack.c.l.b16 %v1406
        %v1422 = vpack.c.b16 %v1419, %v1418
        %v1423 = vpack.c.b16 %v1421, %v1420
        %1426 = vmatprep.subr.bf16.mxu0 0
        %1427 = vmatpush1.bf16.msra.mxu0 %v1422
        %1428 = vmatprep.subr.bf16.mxu0 0
        %1429 = vmatpush1.bf16.msra.mxu0 %v1423
        %1430 = vmatprep.subr.bf16.mxu0 0
        %1431 = vmatpush1.bf16.msra.mxu0 0
        %1432 = vmatprep.subr.bf16.mxu0 0
        %1433 = vmatpush1.bf16.msra.mxu0 0
        %1434 = vmatprep.subr.bf16.mxu0 0
        %1435 = vmatpush1.bf16.msra.mxu0 0
        %1436 = vmatprep.subr.bf16.mxu0 0
        %1437 = vmatpush1.bf16.msra.mxu0 0
        %1438 = vmatprep.subr.bf16.mxu0 0
        %1439 = vmatpush1.bf16.msra.mxu0 0
        %1440 = vmatprep.subr.bf16.mxu0 0
        %1441 = vmatpush1.bf16.msra.mxu0 0
        %1442 = vmatprep.subr.bf16.mxu0 0
        %1443 = vmatpush1.bf16.msra.mxu0 0
        %1444 = vmatprep.subr.bf16.mxu0 0
        %1445 = vmatpush1.bf16.msra.mxu0 0
        %1446 = vmatprep.subr.bf16.mxu0 0
        %1447 = vmatpush1.bf16.msra.mxu0 0
        %1448 = vmatprep.subr.bf16.mxu0 0
        %1449 = vmatpush1.bf16.msra.mxu0 0
        %1450 = vmatprep.subr.bf16.mxu0 0
        %1451 = vmatpush1.bf16.msra.mxu0 0
        %1452 = vmatprep.subr.bf16.mxu0 0
        %1453 = vmatpush1.bf16.msra.mxu0 0
        %1454 = vmatprep.subr.bf16.mxu0 0
        %1455 = vmatpush1.bf16.msra.mxu0 0
        %1456 = vmatprep.subr.bf16.mxu0 0
        %1457 = vmatpush1.bf16.msra.mxu0 0
        %1458 = vmatprep.mubr.bf16.mxu0 0
        %1459 = vmatmul.mubr.bf16.gmra.mrb[0].mxu0 %v1349
        %v1460 = vpop.f32.mrb[0].mxu0
        %v1461 = vadd.f32 %v1412, %v1460
        %v1462 = vpop.f32.mrb[0].mxu0
        %v1463 = vpop.f32.mrb[0].mxu0
        %v1464 = vadd.f32 %v1412, %v1463
        %v1465 = vpop.f32.mrb[0].mxu0
        %1466 = vmatprep.mubr.bf16.mxu0 0
        %1467 = vmatmul.mubr.bf16.gmra.mrb[0].mxu0 %v1352
        %v1468 = vpop.f32.mrb[0].mxu0
        %v1469 = vadd.f32 %v1412, %v1468
        %v1470 = vpop.f32.mrb[0].mxu0
        %v1471 = vpop.f32.mrb[0].mxu0
        %v1472 = vadd.f32 %v1412, %v1471
        %v1473 = vpop.f32.mrb[0].mxu0
        %1474 = vdwg.mxu0
        %v1475 = vld [vmem:[%s1116] sm:$0xf]
        %v1476 = vld [vmem:[%s1116 + $0x4] sm:$0xf]
        %v1477 = vld [vmem:[%s1116 + $0x8] sm:$0xf]
        %v1478 = vld [vmem:[%s1116 + $0xc] sm:$0xf]
        %v1479 = vld [vmem:[%s937] sm:$0x1]
        %v1481 = vlaneseq
        %v1482 = vshrl.u32 %v1481, 7
        %v1483 = vsub.s32 0, %v1482
        %v1484 = vrot.slane %v1479, %v1483
        %v1490 = vunpack.c.l.b16 %v1475
        %v1491 = vunpack.c.l.b16 %v1476
        %v1492 = vunpack.c.l.b16 %v1477
        %v1493 = vunpack.c.l.b16 %v1478
        %v1494 = vpack.c.b16 %v1491, %v1490
        %v1495 = vpack.c.b16 %v1493, %v1492
        %1498 = vmatprep.subr.bf16.mxu0 0
        %1499 = vmatpush1.bf16.msra.mxu0 %v1494
        %1500 = vmatprep.subr.bf16.mxu0 0
        %1501 = vmatpush1.bf16.msra.mxu0 %v1495
        %1502 = vmatprep.subr.bf16.mxu0 0
        %1503 = vmatpush1.bf16.msra.mxu0 0
        %1504 = vmatprep.subr.bf16.mxu0 0
        %1505 = vmatpush1.bf16.msra.mxu0 0
        %1506 = vmatprep.subr.bf16.mxu0 0
        %1507 = vmatpush1.bf16.msra.mxu0 0
        %1508 = vmatprep.subr.bf16.mxu0 0
        %1509 = vmatpush1.bf16.msra.mxu0 0
        %1510 = vmatprep.subr.bf16.mxu0 0
        %1511 = vmatpush1.bf16.msra.mxu0 0
        %1512 = vmatprep.subr.bf16.mxu0 0
        %1513 = vmatpush1.bf16.msra.mxu0 0
        %1514 = vmatprep.subr.bf16.mxu0 0
        %1515 = vmatpush1.bf16.msra.mxu0 0
        %1516 = vmatprep.subr.bf16.mxu0 0
        %1517 = vmatpush1.bf16.msra.mxu0 0
        %1518 = vmatprep.subr.bf16.mxu0 0
        %1519 = vmatpush1.bf16.msra.mxu0 0
        %1520 = vmatprep.subr.bf16.mxu0 0
        %1521 = vmatpush1.bf16.msra.mxu0 0
        %1522 = vmatprep.subr.bf16.mxu0 0
        %1523 = vmatpush1.bf16.msra.mxu0 0
        %1524 = vmatprep.subr.bf16.mxu0 0
        %1525 = vmatpush1.bf16.msra.mxu0 0
        %1526 = vmatprep.subr.bf16.mxu0 0
        %1527 = vmatpush1.bf16.msra.mxu0 0
        %1528 = vmatprep.subr.bf16.mxu0 0
        %1529 = vmatpush1.bf16.msra.mxu0 0
        %1530 = vmatprep.mubr.bf16.mxu0 0
        %1531 = vmatmul.mubr.bf16.gmra.mrb[0].mxu0 %v1349
        %v1532 = vpop.f32.mrb[0].mxu0
        %v1533 = vadd.f32 %v1484, %v1532
        %v1534 = vpop.f32.mrb[0].mxu0
        %v1535 = vpop.f32.mrb[0].mxu0
        %v1536 = vadd.f32 %v1484, %v1535
        %v1537 = vpop.f32.mrb[0].mxu0
        %1538 = vmatprep.mubr.bf16.mxu0 0
        %1539 = vmatmul.mubr.bf16.gmra.mrb[0].mxu0 %v1352
        %v1540 = vpop.f32.mrb[0].mxu0
        %v1541 = vadd.f32 %v1484, %v1540
        %v1542 = vpop.f32.mrb[0].mxu0
        %v1543 = vpop.f32.mrb[0].mxu0
        %v1544 = vadd.f32 %v1484, %v1543
        %v1545 = vpop.f32.mrb[0].mxu0
        %1546 = vdwg.mxu0
        %v1547 = vpack.c.bf16 %v1392, %v1389
        %v1548 = vpack.c.bf16 %v1400, %v1397
        %v1549 = vpack.c.bf16 %v1464, %v1461
        %v1550 = vpack.c.bf16 %v1472, %v1469
        %v1551 = vpack.c.bf16 %v1536, %v1533
        %v1552 = vpack.c.bf16 %v1544, %v1541
        %vm1553 = vcmask 64512
        %v1555 = vsel %vm1553, %v1547, 0
        %v1558 = vsel %vm1553, %v1549, 0
        %1560 = vmatprep.subr.bf16.mxu0 0
        %1561 = vmatpush1.bf16.xpose.msra.mxu0 %v1558
        %1562 = vmatprep.subr.bf16.mxu0 0
        %1563 = vmatpush1.bf16.xpose.msra.mxu0 0
        %1564 = vmatprep.subr.bf16.mxu0 0
        %1565 = vmatpush1.bf16.xpose.msra.mxu0 0
        %1566 = vmatprep.subr.bf16.mxu0 0
        %1567 = vmatpush1.bf16.xpose.msra.mxu0 0
        %1568 = vmatprep.subr.bf16.mxu0 0
        %1569 = vmatpush1.bf16.xpose.msra.mxu0 0
        %1570 = vmatprep.subr.bf16.mxu0 0
        %1571 = vmatpush1.bf16.xpose.msra.mxu0 0
        %1572 = vmatprep.subr.bf16.mxu0 0
        %1573 = vmatpush1.bf16.xpose.msra.mxu0 0
        %1574 = vmatprep.subr.bf16.mxu0 0
        %1575 = vmatpush1.bf16.xpose.msra.mxu0 0
        %1576 = vmatprep.subr.bf16.mxu0 0
        %1577 = vmatpush1.bf16.xpose.msra.mxu0 0
        %1578 = vmatprep.subr.bf16.mxu0 0
        %1579 = vmatpush1.bf16.xpose.msra.mxu0 0
        %1580 = vmatprep.subr.bf16.mxu0 0
        %1581 = vmatpush1.bf16.xpose.msra.mxu0 0
        %1582 = vmatprep.subr.bf16.mxu0 0
        %1583 = vmatpush1.bf16.xpose.msra.mxu0 0
        %1584 = vmatprep.subr.bf16.mxu0 0
        %1585 = vmatpush1.bf16.xpose.msra.mxu0 0
        %1586 = vmatprep.subr.bf16.mxu0 0
        %1587 = vmatpush1.bf16.xpose.msra.mxu0 0
        %1588 = vmatprep.subr.bf16.mxu0 0
        %1589 = vmatpush1.bf16.xpose.msra.mxu0 0
        %1590 = vmatprep.subr.bf16.mxu0 0
        %1591 = vmatpush1.bf16.xpose.msra.mxu0 0
        %1592 = vmatprep.mubr.bf16.mxu0 0
        %1593 = vmatmul.mubr.bf16.gmra.mrb[0].mxu0 %v1555
        %v1594 = vpop.f32.mrb[0].mxu0
        %v1595 = vadd.f32 0.0, %v1594
        %v1596 = vpop.f32.mrb[0].mxu0
        %v1597 = vpop.f32.mrb[0].mxu0
        %v1598 = vadd.f32 0.0, %v1597
        %v1599 = vpop.f32.mrb[0].mxu0
        %1600 = vdwg.mxu0
        %v1602 = vsel %vm1553, %v1548, 0
        %v1605 = vsel %vm1553, %v1550, 0
        %1607 = vmatprep.subr.bf16.mxu0 0
        %1608 = vmatpush1.bf16.xpose.msra.mxu0 %v1605
        %1609 = vmatprep.subr.bf16.mxu0 0
        %1610 = vmatpush1.bf16.xpose.msra.mxu0 0
        %1611 = vmatprep.subr.bf16.mxu0 0
        %1612 = vmatpush1.bf16.xpose.msra.mxu0 0
        %1613 = vmatprep.subr.bf16.mxu0 0
        %1614 = vmatpush1.bf16.xpose.msra.mxu0 0
        %1615 = vmatprep.subr.bf16.mxu0 0
        %1616 = vmatpush1.bf16.xpose.msra.mxu0 0
        %1617 = vmatprep.subr.bf16.mxu0 0
        %1618 = vmatpush1.bf16.xpose.msra.mxu0 0
        %1619 = vmatprep.subr.bf16.mxu0 0
        %1620 = vmatpush1.bf16.xpose.msra.mxu0 0
        %1621 = vmatprep.subr.bf16.mxu0 0
        %1622 = vmatpush1.bf16.xpose.msra.mxu0 0
        %1623 = vmatprep.subr.bf16.mxu0 0
        %1624 = vmatpush1.bf16.xpose.msra.mxu0 0
        %1625 = vmatprep.subr.bf16.mxu0 0
        %1626 = vmatpush1.bf16.xpose.msra.mxu0 0
        %1627 = vmatprep.subr.bf16.mxu0 0
        %1628 = vmatpush1.bf16.xpose.msra.mxu0 0
        %1629 = vmatprep.subr.bf16.mxu0 0
        %1630 = vmatpush1.bf16.xpose.msra.mxu0 0
        %1631 = vmatprep.subr.bf16.mxu0 0
        %1632 = vmatpush1.bf16.xpose.msra.mxu0 0
        %1633 = vmatprep.subr.bf16.mxu0 0
        %1634 = vmatpush1.bf16.xpose.msra.mxu0 0
        %1635 = vmatprep.subr.bf16.mxu0 0
        %1636 = vmatpush1.bf16.xpose.msra.mxu0 0
        %1637 = vmatprep.subr.bf16.mxu0 0
        %1638 = vmatpush1.bf16.xpose.msra.mxu0 0
        %1639 = vmatprep.mubr.bf16.mxu0 0
        %1640 = vmatmul.mubr.bf16.gmra.mrb[0].mxu0 %v1602
        %v1641 = vpop.f32.mrb[0].mxu0
        %v1642 = vadd.f32 0.0, %v1641
        %v1643 = vpop.f32.mrb[0].mxu0
        %v1644 = vpop.f32.mrb[0].mxu0
        %v1645 = vadd.f32 0.0, %v1644
        %v1646 = vpop.f32.mrb[0].mxu0
        %1647 = vdwg.mxu0
        %v1648 = vmul.f32 %v1595, 0.35355338
        %v1649 = vmul.f32 %v1598, 0.35355338
        %v1650 = vmul.f32 %v1642, 0.35355338
        %v1651 = vmul.f32 %v1645, 0.35355338
        %vm1652 = vcmask 130048
        %v1653 = vsel %vm1652, %v1648, -inf
        %1654 = vmax.xlane.f32.xlu0 %v1653
        %v1655 = vpop.xlane.xlu0 %1654
        %v1656 = vsel %vm1652, %v1649, -inf
        %1657 = vmax.xlane.f32.xlu0 %v1656
        %v1658 = vpop.xlane.xlu0 %1657
        %v1659 = vsel %vm1652, %v1650, -inf
        %1660 = vmax.xlane.f32.xlu0 %v1659
        %v1661 = vpop.xlane.xlu0 %1660
        %v1662 = vsel %vm1652, %v1651, -inf
        %1663 = vmax.xlane.f32.xlu0 %v1662
        %v1664 = vpop.xlane.xlu0 %1663
        %v1665 = vsub.f32 %v1648, %v1655
        %v1666 = vsub.f32 %v1649, %v1658
        %v1667 = vsub.f32 %v1650, %v1661
        %v1668 = vsub.f32 %v1651, %v1664
        %v1669 = vmul.f32 %v1665, 1.442695
        %v1670 = vpow.pop %v1669
        %v1671 = vmul.f32 %v1666, 1.442695
        %v1672 = vpow.pop %v1671
        %v1673 = vmul.f32 %v1667, 1.442695
        %v1674 = vpow.pop %v1673
        %v1675 = vmul.f32 %v1668, 1.442695
        %v1676 = vpow.pop %v1675
        %v1677 = vsel %vm1652, %v1670, 0.0
        %1678 = vadd.xlane.f32.xlu0 %v1677
        %v1679 = vpop.xlane.xlu0 %1678
        %v1680 = vsel %vm1652, %v1672, 0.0
        %1681 = vadd.xlane.f32.xlu0 %v1680
        %v1682 = vpop.xlane.xlu0 %1681
        %v1683 = vsel %vm1652, %v1674, 0.0
        %1684 = vadd.xlane.f32.xlu0 %v1683
        %v1685 = vpop.xlane.xlu0 %1684
        %v1686 = vsel %vm1652, %v1676, 0.0
        %1687 = vadd.xlane.f32.xlu0 %v1686
        %v1688 = vpop.xlane.xlu0 %1687
        %v1689 = vrcp.pop %v1679
        %v1690 = vrcp.pop %v1682
        %v1691 = vrcp.pop %v1685
        %v1692 = vrcp.pop %v1688
        %v1693 = vmul.f32 %v1670, %v1689
        %v1694 = vmul.f32 %v1672, %v1690
        %v1695 = vmul.f32 %v1674, %v1691
        %v1696 = vmul.f32 %v1676, %v1692
        %v1697 = vpack.c.bf16 %v1694, %v1693
        %v1698 = vpack.c.bf16 %v1696, %v1695
        %v1700 = vsel %vm1652, %v1697, 0
        %1702 = vmatprep.subr.bf16.mxu0 0
        %1703 = vmatpush1.bf16.msra.mxu0 %v1551
        %1704 = vmatprep.subr.bf16.mxu0 0
        %1705 = vmatpush1.bf16.msra.mxu0 0
        %1706 = vmatprep.subr.bf16.mxu0 0
        %1707 = vmatpush1.bf16.msra.mxu0 0
        %1708 = vmatprep.subr.bf16.mxu0 0
        %1709 = vmatpush1.bf16.msra.mxu0 0
        %1710 = vmatprep.subr.bf16.mxu0 0
        %1711 = vmatpush1.bf16.msra.mxu0 0
        %1712 = vmatprep.subr.bf16.mxu0 0
        %1713 = vmatpush1.bf16.msra.mxu0 0
        %1714 = vmatprep.subr.bf16.mxu0 0
        %1715 = vmatpush1.bf16.msra.mxu0 0
        %1716 = vmatprep.subr.bf16.mxu0 0
        %1717 = vmatpush1.bf16.msra.mxu0 0
        %1718 = vmatprep.subr.bf16.mxu0 0
        %1719 = vmatpush1.bf16.msra.mxu0 0
        %1720 = vmatprep.subr.bf16.mxu0 0
        %1721 = vmatpush1.bf16.msra.mxu0 0
        %1722 = vmatprep.subr.bf16.mxu0 0
        %1723 = vmatpush1.bf16.msra.mxu0 0
        %1724 = vmatprep.subr.bf16.mxu0 0
        %1725 = vmatpush1.bf16.msra.mxu0 0
        %1726 = vmatprep.subr.bf16.mxu0 0
        %1727 = vmatpush1.bf16.msra.mxu0 0
        %1728 = vmatprep.subr.bf16.mxu0 0
        %1729 = vmatpush1.bf16.msra.mxu0 0
        %1730 = vmatprep.subr.bf16.mxu0 0
        %1731 = vmatpush1.bf16.msra.mxu0 0
        %1732 = vmatprep.subr.bf16.mxu0 0
        %1733 = vmatpush1.bf16.msra.mxu0 0
        %1734 = vmatprep.mubr.bf16.mxu0 0
        %1735 = vmatmul.mubr.bf16.gmra.mrb[0].mxu0 %v1700
        %v1736 = vpop.f32.mrb[0].mxu0
        %v1737 = vadd.f32 0.0, %v1736
        %v1738 = vpop.f32.mrb[0].mxu0
        %v1739 = vpop.f32.mrb[0].mxu0
        %v1740 = vadd.f32 0.0, %v1739
        %v1741 = vpop.f32.mrb[0].mxu0
        %1742 = vdwg.mxu0
        %v1744 = vsel %vm1652, %v1698, 0
        %1746 = vmatprep.subr.bf16.mxu0 0
        %1747 = vmatpush1.bf16.msra.mxu0 %v1552
        %1748 = vmatprep.subr.bf16.mxu0 0
        %1749 = vmatpush1.bf16.msra.mxu0 0
        %1750 = vmatprep.subr.bf16.mxu0 0
        %1751 = vmatpush1.bf16.msra.mxu0 0
        %1752 = vmatprep.subr.bf16.mxu0 0
        %1753 = vmatpush1.bf16.msra.mxu0 0
        %1754 = vmatprep.subr.bf16.mxu0 0
        %1755 = vmatpush1.bf16.msra.mxu0 0
        %1756 = vmatprep.subr.bf16.mxu0 0
        %1757 = vmatpush1.bf16.msra.mxu0 0
        %1758 = vmatprep.subr.bf16.mxu0 0
        %1759 = vmatpush1.bf16.msra.mxu0 0
        %1760 = vmatprep.subr.bf16.mxu0 0
        %1761 = vmatpush1.bf16.msra.mxu0 0
        %1762 = vmatprep.subr.bf16.mxu0 0
        %1763 = vmatpush1.bf16.msra.mxu0 0
        %1764 = vmatprep.subr.bf16.mxu0 0
        %1765 = vmatpush1.bf16.msra.mxu0 0
        %1766 = vmatprep.subr.bf16.mxu0 0
        %1767 = vmatpush1.bf16.msra.mxu0 0
        %1768 = vmatprep.subr.bf16.mxu0 0
        %1769 = vmatpush1.bf16.msra.mxu0 0
        %1770 = vmatprep.subr.bf16.mxu0 0
        %1771 = vmatpush1.bf16.msra.mxu0 0
        %1772 = vmatprep.subr.bf16.mxu0 0
        %1773 = vmatpush1.bf16.msra.mxu0 0
        %1774 = vmatprep.subr.bf16.mxu0 0
        %1775 = vmatpush1.bf16.msra.mxu0 0
        %1776 = vmatprep.subr.bf16.mxu0 0
        %1777 = vmatpush1.bf16.msra.mxu0 0
        %1778 = vmatprep.mubr.bf16.mxu0 0
        %1779 = vmatmul.mubr.bf16.gmra.mrb[0].mxu0 %v1744
        %v1780 = vpop.f32.mrb[0].mxu0
        %v1781 = vadd.f32 0.0, %v1780
        %v1782 = vpop.f32.mrb[0].mxu0
        %v1783 = vpop.f32.mrb[0].mxu0
        %v1784 = vadd.f32 0.0, %v1783
        %v1785 = vpop.f32.mrb[0].mxu0
        %1786 = vdwg.mxu0
        %1788 = vrot.lane.b32.xlu0 %v1547, 120
        %v1789 = vpop.permute.xlu0 %1788
        %1791 = vrot.lane.b32.xlu0 %v1549, 120
        %v1792 = vpop.permute.xlu0 %1791
        %v1794 = vsel %vm1553, %v1789, 0
        %v1797 = vsel %vm1553, %v1792, 0
        %1799 = vmatprep.subr.bf16.mxu0 0
        %1800 = vmatpush1.bf16.xpose.msra.mxu0 %v1797
        %1801 = vmatprep.subr.bf16.mxu0 0
        %1802 = vmatpush1.bf16.xpose.msra.mxu0 0
        %1803 = vmatprep.subr.bf16.mxu0 0
        %1804 = vmatpush1.bf16.xpose.msra.mxu0 0
        %1805 = vmatprep.subr.bf16.mxu0 0
        %1806 = vmatpush1.bf16.xpose.msra.mxu0 0
        %1807 = vmatprep.subr.bf16.mxu0 0
        %1808 = vmatpush1.bf16.xpose.msra.mxu0 0
        %1809 = vmatprep.subr.bf16.mxu0 0
        %1810 = vmatpush1.bf16.xpose.msra.mxu0 0
        %1811 = vmatprep.subr.bf16.mxu0 0
        %1812 = vmatpush1.bf16.xpose.msra.mxu0 0
        %1813 = vmatprep.subr.bf16.mxu0 0
        %1814 = vmatpush1.bf16.xpose.msra.mxu0 0
        %1815 = vmatprep.subr.bf16.mxu0 0
        %1816 = vmatpush1.bf16.xpose.msra.mxu0 0
        %1817 = vmatprep.subr.bf16.mxu0 0
        %1818 = vmatpush1.bf16.xpose.msra.mxu0 0
        %1819 = vmatprep.subr.bf16.mxu0 0
        %1820 = vmatpush1.bf16.xpose.msra.mxu0 0
        %1821 = vmatprep.subr.bf16.mxu0 0
        %1822 = vmatpush1.bf16.xpose.msra.mxu0 0
        %1823 = vmatprep.subr.bf16.mxu0 0
        %1824 = vmatpush1.bf16.xpose.msra.mxu0 0
        %1825 = vmatprep.subr.bf16.mxu0 0
        %1826 = vmatpush1.bf16.xpose.msra.mxu0 0
        %1827 = vmatprep.subr.bf16.mxu0 0
        %1828 = vmatpush1.bf16.xpose.msra.mxu0 0
        %1829 = vmatprep.subr.bf16.mxu0 0
        %1830 = vmatpush1.bf16.xpose.msra.mxu0 0
        %1831 = vmatprep.mubr.bf16.mxu0 0
        %1832 = vmatmul.mubr.bf16.gmra.mrb[0].mxu0 %v1794
        %v1833 = vpop.f32.mrb[0].mxu0
        %v1834 = vadd.f32 0.0, %v1833
        %v1835 = vpop.f32.mrb[0].mxu0
        %v1836 = vpop.f32.mrb[0].mxu0
        %v1837 = vadd.f32 0.0, %v1836
        %v1838 = vpop.f32.mrb[0].mxu0
        %1839 = vdwg.mxu0
        %1841 = vrot.lane.b32.xlu0 %v1548, 120
        %v1842 = vpop.permute.xlu0 %1841
        %1844 = vrot.lane.b32.xlu0 %v1550, 120
        %v1845 = vpop.permute.xlu0 %1844
        %v1847 = vsel %vm1553, %v1842, 0
        %v1850 = vsel %vm1553, %v1845, 0
        %1852 = vmatprep.subr.bf16.mxu0 0
        %1853 = vmatpush1.bf16.xpose.msra.mxu0 %v1850
        %1854 = vmatprep.subr.bf16.mxu0 0
        %1855 = vmatpush1.bf16.xpose.msra.mxu0 0
        %1856 = vmatprep.subr.bf16.mxu0 0
        %1857 = vmatpush1.bf16.xpose.msra.mxu0 0
        %1858 = vmatprep.subr.bf16.mxu0 0
        %1859 = vmatpush1.bf16.xpose.msra.mxu0 0
        %1860 = vmatprep.subr.bf16.mxu0 0
        %1861 = vmatpush1.bf16.xpose.msra.mxu0 0
        %1862 = vmatprep.subr.bf16.mxu0 0
        %1863 = vmatpush1.bf16.xpose.msra.mxu0 0
        %1864 = vmatprep.subr.bf16.mxu0 0
        %1865 = vmatpush1.bf16.xpose.msra.mxu0 0
        %1866 = vmatprep.subr.bf16.mxu0 0
        %1867 = vmatpush1.bf16.xpose.msra.mxu0 0
        %1868 = vmatprep.subr.bf16.mxu0 0
        %1869 = vmatpush1.bf16.xpose.msra.mxu0 0
        %1870 = vmatprep.subr.bf16.mxu0 0
        %1871 = vmatpush1.bf16.xpose.msra.mxu0 0
        %1872 = vmatprep.subr.bf16.mxu0 0
        %1873 = vmatpush1.bf16.xpose.msra.mxu0 0
        %1874 = vmatprep.subr.bf16.mxu0 0
        %1875 = vmatpush1.bf16.xpose.msra.mxu0 0
        %1876 = vmatprep.subr.bf16.mxu0 0
        %1877 = vmatpush1.bf16.xpose.msra.mxu0 0
        %1878 = vmatprep.subr.bf16.mxu0 0
        %1879 = vmatpush1.bf16.xpose.msra.mxu0 0
        %1880 = vmatprep.subr.bf16.mxu0 0
        %1881 = vmatpush1.bf16.xpose.msra.mxu0 0
        %1882 = vmatprep.subr.bf16.mxu0 0
        %1883 = vmatpush1.bf16.xpose.msra.mxu0 0
        %1884 = vmatprep.mubr.bf16.mxu0 0
        %1885 = vmatmul.mubr.bf16.gmra.mrb[0].mxu0 %v1847
        %v1886 = vpop.f32.mrb[0].mxu0
        %v1887 = vadd.f32 0.0, %v1886
        %v1888 = vpop.f32.mrb[0].mxu0
        %v1889 = vpop.f32.mrb[0].mxu0
        %v1890 = vadd.f32 0.0, %v1889
        %v1891 = vpop.f32.mrb[0].mxu0
        %1892 = vdwg.mxu0
        %v1893 = vmul.f32 %v1834, 0.35355338
        %v1894 = vmul.f32 %v1837, 0.35355338
        %v1895 = vmul.f32 %v1887, 0.35355338
        %v1896 = vmul.f32 %v1890, 0.35355338
        %v1897 = vsel %vm1652, %v1893, -inf
        %1898 = vmax.xlane.f32.xlu0 %v1897
        %v1899 = vpop.xlane.xlu0 %1898
        %v1900 = vsel %vm1652, %v1894, -inf
        %1901 = vmax.xlane.f32.xlu0 %v1900
        %v1902 = vpop.xlane.xlu0 %1901
        %v1903 = vsel %vm1652, %v1895, -inf
        %1904 = vmax.xlane.f32.xlu0 %v1903
        %v1905 = vpop.xlane.xlu0 %1904
        %v1906 = vsel %vm1652, %v1896, -inf
        %1907 = vmax.xlane.f32.xlu0 %v1906
        %v1908 = vpop.xlane.xlu0 %1907
        %v1909 = vsub.f32 %v1893, %v1899
        %v1910 = vsub.f32 %v1894, %v1902
        %v1911 = vsub.f32 %v1895, %v1905
        %v1912 = vsub.f32 %v1896, %v1908
        %v1913 = vmul.f32 %v1909, 1.442695
        %v1914 = vpow.pop %v1913
        %v1915 = vmul.f32 %v1910, 1.442695
        %v1916 = vpow.pop %v1915
        %v1917 = vmul.f32 %v1911, 1.442695
        %v1918 = vpow.pop %v1917
        %v1919 = vmul.f32 %v1912, 1.442695
        %v1920 = vpow.pop %v1919
        %v1921 = vsel %vm1652, %v1914, 0.0
        %1922 = vadd.xlane.f32.xlu0 %v1921
        %v1923 = vpop.xlane.xlu0 %1922
        %v1924 = vsel %vm1652, %v1916, 0.0
        %1925 = vadd.xlane.f32.xlu0 %v1924
        %v1926 = vpop.xlane.xlu0 %1925
        %v1927 = vsel %vm1652, %v1918, 0.0
        %1928 = vadd.xlane.f32.xlu0 %v1927
        %v1929 = vpop.xlane.xlu0 %1928
        %v1930 = vsel %vm1652, %v1920, 0.0
        %1931 = vadd.xlane.f32.xlu0 %v1930
        %v1932 = vpop.xlane.xlu0 %1931
        %v1933 = vrcp.pop %v1923
        %v1934 = vrcp.pop %v1926
        %v1935 = vrcp.pop %v1929
        %v1936 = vrcp.pop %v1932
        %v1937 = vmul.f32 %v1914, %v1933
        %v1938 = vmul.f32 %v1916, %v1934
        %v1939 = vmul.f32 %v1918, %v1935
        %v1940 = vmul.f32 %v1920, %v1936
        %v1941 = vpack.c.bf16 %v1938, %v1937
        %v1942 = vpack.c.bf16 %v1940, %v1939
        %1944 = vrot.lane.b32.xlu0 %v1551, 120
        %v1945 = vpop.permute.xlu0 %1944
        %v1948 = vsel %vm1652, %v1941, 0
        %1950 = vmatprep.subr.bf16.mxu0 0
        %1951 = vmatpush1.bf16.msra.mxu0 %v1945
        %1952 = vmatprep.subr.bf16.mxu0 0
        %1953 = vmatpush1.bf16.msra.mxu0 0
        %1954 = vmatprep.subr.bf16.mxu0 0
        %1955 = vmatpush1.bf16.msra.mxu0 0
        %1956 = vmatprep.subr.bf16.mxu0 0
        %1957 = vmatpush1.bf16.msra.mxu0 0
        %1958 = vmatprep.subr.bf16.mxu0 0
        %1959 = vmatpush1.bf16.msra.mxu0 0
        %1960 = vmatprep.subr.bf16.mxu0 0
        %1961 = vmatpush1.bf16.msra.mxu0 0
        %1962 = vmatprep.subr.bf16.mxu0 0
        %1963 = vmatpush1.bf16.msra.mxu0 0
        %1964 = vmatprep.subr.bf16.mxu0 0
        %1965 = vmatpush1.bf16.msra.mxu0 0
        %1966 = vmatprep.subr.bf16.mxu0 0
        %1967 = vmatpush1.bf16.msra.mxu0 0
        %1968 = vmatprep.subr.bf16.mxu0 0
        %1969 = vmatpush1.bf16.msra.mxu0 0
        %1970 = vmatprep.subr.bf16.mxu0 0
        %1971 = vmatpush1.bf16.msra.mxu0 0
        %1972 = vmatprep.subr.bf16.mxu0 0
        %1973 = vmatpush1.bf16.msra.mxu0 0
        %1974 = vmatprep.subr.bf16.mxu0 0
        %1975 = vmatpush1.bf16.msra.mxu0 0
        %1976 = vmatprep.subr.bf16.mxu0 0
        %1977 = vmatpush1.bf16.msra.mxu0 0
        %1978 = vmatprep.subr.bf16.mxu0 0
        %1979 = vmatpush1.bf16.msra.mxu0 0
        %1980 = vmatprep.subr.bf16.mxu0 0
        %1981 = vmatpush1.bf16.msra.mxu0 0
        %1982 = vmatprep.mubr.bf16.mxu0 0
        %1983 = vmatmul.mubr.bf16.gmra.mrb[0].mxu0 %v1948
        %v1984 = vpop.f32.mrb[0].mxu0
        %v1985 = vadd.f32 0.0, %v1984
        %v1986 = vpop.f32.mrb[0].mxu0
        %v1987 = vpop.f32.mrb[0].mxu0
        %v1988 = vadd.f32 0.0, %v1987
        %v1989 = vpop.f32.mrb[0].mxu0
        %1990 = vdwg.mxu0
        %1992 = vrot.lane.b32.xlu0 %v1552, 120
        %v1993 = vpop.permute.xlu0 %1992
        %v1996 = vsel %vm1652, %v1942, 0
        %1998 = vmatprep.subr.bf16.mxu0 0
        %1999 = vmatpush1.bf16.msra.mxu0 %v1993
        %2000 = vmatprep.subr.bf16.mxu0 0
        %2001 = vmatpush1.bf16.msra.mxu0 0
        %2002 = vmatprep.subr.bf16.mxu0 0
        %2003 = vmatpush1.bf16.msra.mxu0 0
        %2004 = vmatprep.subr.bf16.mxu0 0
        %2005 = vmatpush1.bf16.msra.mxu0 0
        %2006 = vmatprep.subr.bf16.mxu0 0
        %2007 = vmatpush1.bf16.msra.mxu0 0
        %2008 = vmatprep.subr.bf16.mxu0 0
        %2009 = vmatpush1.bf16.msra.mxu0 0
        %2010 = vmatprep.subr.bf16.mxu0 0
        %2011 = vmatpush1.bf16.msra.mxu0 0
        %2012 = vmatprep.subr.bf16.mxu0 0
        %2013 = vmatpush1.bf16.msra.mxu0 0
        %2014 = vmatprep.subr.bf16.mxu0 0
        %2015 = vmatpush1.bf16.msra.mxu0 0
        %2016 = vmatprep.subr.bf16.mxu0 0
        %2017 = vmatpush1.bf16.msra.mxu0 0
        %2018 = vmatprep.subr.bf16.mxu0 0
        %2019 = vmatpush1.bf16.msra.mxu0 0
        %2020 = vmatprep.subr.bf16.mxu0 0
        %2021 = vmatpush1.bf16.msra.mxu0 0
        %2022 = vmatprep.subr.bf16.mxu0 0
        %2023 = vmatpush1.bf16.msra.mxu0 0
        %2024 = vmatprep.subr.bf16.mxu0 0
        %2025 = vmatpush1.bf16.msra.mxu0 0
        %2026 = vmatprep.subr.bf16.mxu0 0
        %2027 = vmatpush1.bf16.msra.mxu0 0
        %2028 = vmatprep.subr.bf16.mxu0 0
        %2029 = vmatpush1.bf16.msra.mxu0 0
        %2030 = vmatprep.mubr.bf16.mxu0 0
        %2031 = vmatmul.mubr.bf16.gmra.mrb[0].mxu0 %v1996
        %v2032 = vpop.f32.mrb[0].mxu0
        %v2033 = vadd.f32 0.0, %v2032
        %v2034 = vpop.f32.mrb[0].mxu0
        %v2035 = vpop.f32.mrb[0].mxu0
        %v2036 = vadd.f32 0.0, %v2035
        %v2037 = vpop.f32.mrb[0].mxu0
        %2038 = vdwg.mxu0
        %2039 = vrot.lane.b32.xlu0 %v1547, 112
        %v2040 = vpop.permute.xlu0 %2039
        %2041 = vrot.lane.b32.xlu0 %v1549, 112
        %v2042 = vpop.permute.xlu0 %2041
        %v2044 = vsel %vm1553, %v2040, 0
        %v2047 = vsel %vm1553, %v2042, 0
        %2049 = vmatprep.subr.bf16.mxu0 0
        %2050 = vmatpush1.bf16.xpose.msra.mxu0 %v2047
        %2051 = vmatprep.subr.bf16.mxu0 0
        %2052 = vmatpush1.bf16.xpose.msra.mxu0 0
        %2053 = vmatprep.subr.bf16.mxu0 0
        %2054 = vmatpush1.bf16.xpose.msra.mxu0 0
        %2055 = vmatprep.subr.bf16.mxu0 0
        %2056 = vmatpush1.bf16.xpose.msra.mxu0 0
        %2057 = vmatprep.subr.bf16.mxu0 0
        %2058 = vmatpush1.bf16.xpose.msra.mxu0 0
        %2059 = vmatprep.subr.bf16.mxu0 0
        %2060 = vmatpush1.bf16.xpose.msra.mxu0 0
        %2061 = vmatprep.subr.bf16.mxu0 0
        %2062 = vmatpush1.bf16.xpose.msra.mxu0 0
        %2063 = vmatprep.subr.bf16.mxu0 0
        %2064 = vmatpush1.bf16.xpose.msra.mxu0 0
        %2065 = vmatprep.subr.bf16.mxu0 0
        %2066 = vmatpush1.bf16.xpose.msra.mxu0 0
        %2067 = vmatprep.subr.bf16.mxu0 0
        %2068 = vmatpush1.bf16.xpose.msra.mxu0 0
        %2069 = vmatprep.subr.bf16.mxu0 0
        %2070 = vmatpush1.bf16.xpose.msra.mxu0 0
        %2071 = vmatprep.subr.bf16.mxu0 0
        %2072 = vmatpush1.bf16.xpose.msra.mxu0 0
        %2073 = vmatprep.subr.bf16.mxu0 0
        %2074 = vmatpush1.bf16.xpose.msra.mxu0 0
        %2075 = vmatprep.subr.bf16.mxu0 0
        %2076 = vmatpush1.bf16.xpose.msra.mxu0 0
        %2077 = vmatprep.subr.bf16.mxu0 0
        %2078 = vmatpush1.bf16.xpose.msra.mxu0 0
        %2079 = vmatprep.subr.bf16.mxu0 0
        %2080 = vmatpush1.bf16.xpose.msra.mxu0 0
        %2081 = vmatprep.mubr.bf16.mxu0 0
        %2082 = vmatmul.mubr.bf16.gmra.mrb[0].mxu0 %v2044
        %v2083 = vpop.f32.mrb[0].mxu0
        %v2084 = vadd.f32 0.0, %v2083
        %v2085 = vpop.f32.mrb[0].mxu0
        %v2086 = vpop.f32.mrb[0].mxu0
        %v2087 = vadd.f32 0.0, %v2086
        %v2088 = vpop.f32.mrb[0].mxu0
        %2089 = vdwg.mxu0
        %2090 = vrot.lane.b32.xlu0 %v1548, 112
        %v2091 = vpop.permute.xlu0 %2090
        %2092 = vrot.lane.b32.xlu0 %v1550, 112
        %v2093 = vpop.permute.xlu0 %2092
        %v2095 = vsel %vm1553, %v2091, 0
        %v2098 = vsel %vm1553, %v2093, 0
        %2100 = vmatprep.subr.bf16.mxu0 0
        %2101 = vmatpush1.bf16.xpose.msra.mxu0 %v2098
        %2102 = vmatprep.subr.bf16.mxu0 0
        %2103 = vmatpush1.bf16.xpose.msra.mxu0 0
        %2104 = vmatprep.subr.bf16.mxu0 0
        %2105 = vmatpush1.bf16.xpose.msra.mxu0 0
        %2106 = vmatprep.subr.bf16.mxu0 0
        %2107 = vmatpush1.bf16.xpose.msra.mxu0 0
        %2108 = vmatprep.subr.bf16.mxu0 0
        %2109 = vmatpush1.bf16.xpose.msra.mxu0 0
        %2110 = vmatprep.subr.bf16.mxu0 0
        %2111 = vmatpush1.bf16.xpose.msra.mxu0 0
        %2112 = vmatprep.subr.bf16.mxu0 0
        %2113 = vmatpush1.bf16.xpose.msra.mxu0 0
        %2114 = vmatprep.subr.bf16.mxu0 0
        %2115 = vmatpush1.bf16.xpose.msra.mxu0 0
        %2116 = vmatprep.subr.bf16.mxu0 0
        %2117 = vmatpush1.bf16.xpose.msra.mxu0 0
        %2118 = vmatprep.subr.bf16.mxu0 0
        %2119 = vmatpush1.bf16.xpose.msra.mxu0 0
        %2120 = vmatprep.subr.bf16.mxu0 0
        %2121 = vmatpush1.bf16.xpose.msra.mxu0 0
        %2122 = vmatprep.subr.bf16.mxu0 0
        %2123 = vmatpush1.bf16.xpose.msra.mxu0 0
        %2124 = vmatprep.subr.bf16.mxu0 0
        %2125 = vmatpush1.bf16.xpose.msra.mxu0 0
        %2126 = vmatprep.subr.bf16.mxu0 0
        %2127 = vmatpush1.bf16.xpose.msra.mxu0 0
        %2128 = vmatprep.subr.bf16.mxu0 0
        %2129 = vmatpush1.bf16.xpose.msra.mxu0 0
        %2130 = vmatprep.subr.bf16.mxu0 0
        %2131 = vmatpush1.bf16.xpose.msra.mxu0 0
        %2132 = vmatprep.mubr.bf16.mxu0 0
        %2133 = vmatmul.mubr.bf16.gmra.mrb[0].mxu0 %v2095
        %v2134 = vpop.f32.mrb[0].mxu0
        %v2135 = vadd.f32 0.0, %v2134
        %v2136 = vpop.f32.mrb[0].mxu0
        %v2137 = vpop.f32.mrb[0].mxu0
        %v2138 = vadd.f32 0.0, %v2137
        %v2139 = vpop.f32.mrb[0].mxu0
        %2140 = vdwg.mxu0
        %v2141 = vmul.f32 %v2084, 0.35355338
        %v2142 = vmul.f32 %v2087, 0.35355338
        %v2143 = vmul.f32 %v2135, 0.35355338
        %v2144 = vmul.f32 %v2138, 0.35355338
        %v2145 = vsel %vm1652, %v2141, -inf
        %2146 = vmax.xlane.f32.xlu0 %v2145
        %v2147 = vpop.xlane.xlu0 %2146
        %v2148 = vsel %vm1652, %v2142, -inf
        %2149 = vmax.xlane.f32.xlu0 %v2148
        %v2150 = vpop.xlane.xlu0 %2149
        %v2151 = vsel %vm1652, %v2143, -inf
        %2152 = vmax.xlane.f32.xlu0 %v2151
        %v2153 = vpop.xlane.xlu0 %2152
        %v2154 = vsel %vm1652, %v2144, -inf
        %2155 = vmax.xlane.f32.xlu0 %v2154
        %v2156 = vpop.xlane.xlu0 %2155
        %v2157 = vsub.f32 %v2141, %v2147
        %v2158 = vsub.f32 %v2142, %v2150
        %v2159 = vsub.f32 %v2143, %v2153
        %v2160 = vsub.f32 %v2144, %v2156
        %v2161 = vmul.f32 %v2157, 1.442695
        %v2162 = vpow.pop %v2161
        %v2163 = vmul.f32 %v2158, 1.442695
        %v2164 = vpow.pop %v2163
        %v2165 = vmul.f32 %v2159, 1.442695
        %v2166 = vpow.pop %v2165
        %v2167 = vmul.f32 %v2160, 1.442695
        %v2168 = vpow.pop %v2167
        %v2169 = vsel %vm1652, %v2162, 0.0
        %2170 = vadd.xlane.f32.xlu0 %v2169
        %v2171 = vpop.xlane.xlu0 %2170
        %v2172 = vsel %vm1652, %v2164, 0.0
        %2173 = vadd.xlane.f32.xlu0 %v2172
        %v2174 = vpop.xlane.xlu0 %2173
        %v2175 = vsel %vm1652, %v2166, 0.0
        %2176 = vadd.xlane.f32.xlu0 %v2175
        %v2177 = vpop.xlane.xlu0 %2176
        %v2178 = vsel %vm1652, %v2168, 0.0
        %2179 = vadd.xlane.f32.xlu0 %v2178
        %v2180 = vpop.xlane.xlu0 %2179
        %v2181 = vrcp.pop %v2171
        %v2182 = vrcp.pop %v2174
        %v2183 = vrcp.pop %v2177
        %v2184 = vrcp.pop %v2180
        %v2185 = vmul.f32 %v2162, %v2181
        %v2186 = vmul.f32 %v2164, %v2182
        %v2187 = vmul.f32 %v2166, %v2183
        %v2188 = vmul.f32 %v2168, %v2184
        %v2189 = vpack.c.bf16 %v2186, %v2185
        %v2190 = vpack.c.bf16 %v2188, %v2187
        %2191 = vrot.lane.b32.xlu0 %v1551, 112
        %v2192 = vpop.permute.xlu0 %2191
        %v2195 = vsel %vm1652, %v2189, 0
        %2197 = vmatprep.subr.bf16.mxu0 0
        %2198 = vmatpush1.bf16.msra.mxu0 %v2192
        %2199 = vmatprep.subr.bf16.mxu0 0
        %2200 = vmatpush1.bf16.msra.mxu0 0
        %2201 = vmatprep.subr.bf16.mxu0 0
        %2202 = vmatpush1.bf16.msra.mxu0 0
        %2203 = vmatprep.subr.bf16.mxu0 0
        %2204 = vmatpush1.bf16.msra.mxu0 0
        %2205 = vmatprep.subr.bf16.mxu0 0
        %2206 = vmatpush1.bf16.msra.mxu0 0
        %2207 = vmatprep.subr.bf16.mxu0 0
        %2208 = vmatpush1.bf16.msra.mxu0 0
        %2209 = vmatprep.subr.bf16.mxu0 0
        %2210 = vmatpush1.bf16.msra.mxu0 0
        %2211 = vmatprep.subr.bf16.mxu0 0
        %2212 = vmatpush1.bf16.msra.mxu0 0
        %2213 = vmatprep.subr.bf16.mxu0 0
        %2214 = vmatpush1.bf16.msra.mxu0 0
        %2215 = vmatprep.subr.bf16.mxu0 0
        %2216 = vmatpush1.bf16.msra.mxu0 0
        %2217 = vmatprep.subr.bf16.mxu0 0
        %2218 = vmatpush1.bf16.msra.mxu0 0
        %2219 = vmatprep.subr.bf16.mxu0 0
        %2220 = vmatpush1.bf16.msra.mxu0 0
        %2221 = vmatprep.subr.bf16.mxu0 0
        %2222 = vmatpush1.bf16.msra.mxu0 0
        %2223 = vmatprep.subr.bf16.mxu0 0
        %2224 = vmatpush1.bf16.msra.mxu0 0
        %2225 = vmatprep.subr.bf16.mxu0 0
        %2226 = vmatpush1.bf16.msra.mxu0 0
        %2227 = vmatprep.subr.bf16.mxu0 0
        %2228 = vmatpush1.bf16.msra.mxu0 0
        %2229 = vmatprep.mubr.bf16.mxu0 0
        %2230 = vmatmul.mubr.bf16.gmra.mrb[0].mxu0 %v2195
        %v2231 = vpop.f32.mrb[0].mxu0
        %v2232 = vadd.f32 0.0, %v2231
        %v2233 = vpop.f32.mrb[0].mxu0
        %v2234 = vpop.f32.mrb[0].mxu0
        %v2235 = vadd.f32 0.0, %v2234
        %v2236 = vpop.f32.mrb[0].mxu0
        %2237 = vdwg.mxu0
        %2238 = vrot.lane.b32.xlu0 %v1552, 112
        %v2239 = vpop.permute.xlu0 %2238
        %v2242 = vsel %vm1652, %v2190, 0
        %2244 = vmatprep.subr.bf16.mxu0 0
        %2245 = vmatpush1.bf16.msra.mxu0 %v2239
        %2246 = vmatprep.subr.bf16.mxu0 0
        %2247 = vmatpush1.bf16.msra.mxu0 0
        %2248 = vmatprep.subr.bf16.mxu0 0
        %2249 = vmatpush1.bf16.msra.mxu0 0
        %2250 = vmatprep.subr.bf16.mxu0 0
        %2251 = vmatpush1.bf16.msra.mxu0 0
        %2252 = vmatprep.subr.bf16.mxu0 0
        %2253 = vmatpush1.bf16.msra.mxu0 0
        %2254 = vmatprep.subr.bf16.mxu0 0
        %2255 = vmatpush1.bf16.msra.mxu0 0
        %2256 = vmatprep.subr.bf16.mxu0 0
        %2257 = vmatpush1.bf16.msra.mxu0 0
        %2258 = vmatprep.subr.bf16.mxu0 0
        %2259 = vmatpush1.bf16.msra.mxu0 0
        %2260 = vmatprep.subr.bf16.mxu0 0
        %2261 = vmatpush1.bf16.msra.mxu0 0
        %2262 = vmatprep.subr.bf16.mxu0 0
        %2263 = vmatpush1.bf16.msra.mxu0 0
        %2264 = vmatprep.subr.bf16.mxu0 0
        %2265 = vmatpush1.bf16.msra.mxu0 0
        %2266 = vmatprep.subr.bf16.mxu0 0
        %2267 = vmatpush1.bf16.msra.mxu0 0
        %2268 = vmatprep.subr.bf16.mxu0 0
        %2269 = vmatpush1.bf16.msra.mxu0 0
        %2270 = vmatprep.subr.bf16.mxu0 0
        %2271 = vmatpush1.bf16.msra.mxu0 0
        %2272 = vmatprep.subr.bf16.mxu0 0
        %2273 = vmatpush1.bf16.msra.mxu0 0
        %2274 = vmatprep.subr.bf16.mxu0 0
        %2275 = vmatpush1.bf16.msra.mxu0 0
        %2276 = vmatprep.mubr.bf16.mxu0 0
        %2277 = vmatmul.mubr.bf16.gmra.mrb[0].mxu0 %v2242
        %v2278 = vpop.f32.mrb[0].mxu0
        %v2279 = vadd.f32 0.0, %v2278
        %v2280 = vpop.f32.mrb[0].mxu0
        %v2281 = vpop.f32.mrb[0].mxu0
        %v2282 = vadd.f32 0.0, %v2281
        %v2283 = vpop.f32.mrb[0].mxu0
        %2284 = vdwg.mxu0
        %2285 = vrot.lane.b32.xlu0 %v1547, 104
        %v2286 = vpop.permute.xlu0 %2285
        %2287 = vrot.lane.b32.xlu0 %v1549, 104
        %v2288 = vpop.permute.xlu0 %2287
        %v2290 = vsel %vm1553, %v2286, 0
        %v2293 = vsel %vm1553, %v2288, 0
        %2295 = vmatprep.subr.bf16.mxu0 0
        %2296 = vmatpush1.bf16.xpose.msra.mxu0 %v2293
        %2297 = vmatprep.subr.bf16.mxu0 0
        %2298 = vmatpush1.bf16.xpose.msra.mxu0 0
        %2299 = vmatprep.subr.bf16.mxu0 0
        %2300 = vmatpush1.bf16.xpose.msra.mxu0 0
        %2301 = vmatprep.subr.bf16.mxu0 0
        %2302 = vmatpush1.bf16.xpose.msra.mxu0 0
        %2303 = vmatprep.subr.bf16.mxu0 0
        %2304 = vmatpush1.bf16.xpose.msra.mxu0 0
        %2305 = vmatprep.subr.bf16.mxu0 0
        %2306 = vmatpush1.bf16.xpose.msra.mxu0 0
        %2307 = vmatprep.subr.bf16.mxu0 0
        %2308 = vmatpush1.bf16.xpose.msra.mxu0 0
        %2309 = vmatprep.subr.bf16.mxu0 0
        %2310 = vmatpush1.bf16.xpose.msra.mxu0 0
        %2311 = vmatprep.subr.bf16.mxu0 0
        %2312 = vmatpush1.bf16.xpose.msra.mxu0 0
        %2313 = vmatprep.subr.bf16.mxu0 0
        %2314 = vmatpush1.bf16.xpose.msra.mxu0 0
        %2315 = vmatprep.subr.bf16.mxu0 0
        %2316 = vmatpush1.bf16.xpose.msra.mxu0 0
        %2317 = vmatprep.subr.bf16.mxu0 0
        %2318 = vmatpush1.bf16.xpose.msra.mxu0 0
        %2319 = vmatprep.subr.bf16.mxu0 0
        %2320 = vmatpush1.bf16.xpose.msra.mxu0 0
        %2321 = vmatprep.subr.bf16.mxu0 0
        %2322 = vmatpush1.bf16.xpose.msra.mxu0 0
        %2323 = vmatprep.subr.bf16.mxu0 0
        %2324 = vmatpush1.bf16.xpose.msra.mxu0 0
        %2325 = vmatprep.subr.bf16.mxu0 0
        %2326 = vmatpush1.bf16.xpose.msra.mxu0 0
        %2327 = vmatprep.mubr.bf16.mxu0 0
        %2328 = vmatmul.mubr.bf16.gmra.mrb[0].mxu0 %v2290
        %v2329 = vpop.f32.mrb[0].mxu0
        %v2330 = vadd.f32 0.0, %v2329
        %v2331 = vpop.f32.mrb[0].mxu0
        %v2332 = vpop.f32.mrb[0].mxu0
        %v2333 = vadd.f32 0.0, %v2332
        %v2334 = vpop.f32.mrb[0].mxu0
        %2335 = vdwg.mxu0
        %2336 = vrot.lane.b32.xlu0 %v1548, 104
        %v2337 = vpop.permute.xlu0 %2336
        %2338 = vrot.lane.b32.xlu0 %v1550, 104
        %v2339 = vpop.permute.xlu0 %2338
        %v2341 = vsel %vm1553, %v2337, 0
        %v2344 = vsel %vm1553, %v2339, 0
        %2346 = vmatprep.subr.bf16.mxu0 0
        %2347 = vmatpush1.bf16.xpose.msra.mxu0 %v2344
        %2348 = vmatprep.subr.bf16.mxu0 0
        %2349 = vmatpush1.bf16.xpose.msra.mxu0 0
        %2350 = vmatprep.subr.bf16.mxu0 0
        %2351 = vmatpush1.bf16.xpose.msra.mxu0 0
        %2352 = vmatprep.subr.bf16.mxu0 0
        %2353 = vmatpush1.bf16.xpose.msra.mxu0 0
        %2354 = vmatprep.subr.bf16.mxu0 0
        %2355 = vmatpush1.bf16.xpose.msra.mxu0 0
        %2356 = vmatprep.subr.bf16.mxu0 0
        %2357 = vmatpush1.bf16.xpose.msra.mxu0 0
        %2358 = vmatprep.subr.bf16.mxu0 0
        %2359 = vmatpush1.bf16.xpose.msra.mxu0 0
        %2360 = vmatprep.subr.bf16.mxu0 0
        %2361 = vmatpush1.bf16.xpose.msra.mxu0 0
        %2362 = vmatprep.subr.bf16.mxu0 0
        %2363 = vmatpush1.bf16.xpose.msra.mxu0 0
        %2364 = vmatprep.subr.bf16.mxu0 0
        %2365 = vmatpush1.bf16.xpose.msra.mxu0 0
        %2366 = vmatprep.subr.bf16.mxu0 0
        %2367 = vmatpush1.bf16.xpose.msra.mxu0 0
        %2368 = vmatprep.subr.bf16.mxu0 0
        %2369 = vmatpush1.bf16.xpose.msra.mxu0 0
        %2370 = vmatprep.subr.bf16.mxu0 0
        %2371 = vmatpush1.bf16.xpose.msra.mxu0 0
        %2372 = vmatprep.subr.bf16.mxu0 0
        %2373 = vmatpush1.bf16.xpose.msra.mxu0 0
        %2374 = vmatprep.subr.bf16.mxu0 0
        %2375 = vmatpush1.bf16.xpose.msra.mxu0 0
        %2376 = vmatprep.subr.bf16.mxu0 0
        %2377 = vmatpush1.bf16.xpose.msra.mxu0 0
        %2378 = vmatprep.mubr.bf16.mxu0 0
        %2379 = vmatmul.mubr.bf16.gmra.mrb[0].mxu0 %v2341
        %v2380 = vpop.f32.mrb[0].mxu0
        %v2381 = vadd.f32 0.0, %v2380
        %v2382 = vpop.f32.mrb[0].mxu0
        %v2383 = vpop.f32.mrb[0].mxu0
        %v2384 = vadd.f32 0.0, %v2383
        %v2385 = vpop.f32.mrb[0].mxu0
        %2386 = vdwg.mxu0
        %v2387 = vmul.f32 %v2330, 0.35355338
        %v2388 = vmul.f32 %v2333, 0.35355338
        %v2389 = vmul.f32 %v2381, 0.35355338
        %v2390 = vmul.f32 %v2384, 0.35355338
        %v2391 = vsel %vm1652, %v2387, -inf
        %2392 = vmax.xlane.f32.xlu0 %v2391
        %v2393 = vpop.xlane.xlu0 %2392
        %v2394 = vsel %vm1652, %v2388, -inf
        %2395 = vmax.xlane.f32.xlu0 %v2394
        %v2396 = vpop.xlane.xlu0 %2395
        %v2397 = vsel %vm1652, %v2389, -inf
        %2398 = vmax.xlane.f32.xlu0 %v2397
        %v2399 = vpop.xlane.xlu0 %2398
        %v2400 = vsel %vm1652, %v2390, -inf
        %2401 = vmax.xlane.f32.xlu0 %v2400
        %v2402 = vpop.xlane.xlu0 %2401
        %v2403 = vsub.f32 %v2387, %v2393
        %v2404 = vsub.f32 %v2388, %v2396
        %v2405 = vsub.f32 %v2389, %v2399
        %v2406 = vsub.f32 %v2390, %v2402
        %v2407 = vmul.f32 %v2403, 1.442695
        %v2408 = vpow.pop %v2407
        %v2409 = vmul.f32 %v2404, 1.442695
        %v2410 = vpow.pop %v2409
        %v2411 = vmul.f32 %v2405, 1.442695
        %v2412 = vpow.pop %v2411
        %v2413 = vmul.f32 %v2406, 1.442695
        %v2414 = vpow.pop %v2413
        %v2415 = vsel %vm1652, %v2408, 0.0
        %2416 = vadd.xlane.f32.xlu0 %v2415
        %v2417 = vpop.xlane.xlu0 %2416
        %v2418 = vsel %vm1652, %v2410, 0.0
        %2419 = vadd.xlane.f32.xlu0 %v2418
        %v2420 = vpop.xlane.xlu0 %2419
        %v2421 = vsel %vm1652, %v2412, 0.0
        %2422 = vadd.xlane.f32.xlu0 %v2421
        %v2423 = vpop.xlane.xlu0 %2422
        %v2424 = vsel %vm1652, %v2414, 0.0
        %2425 = vadd.xlane.f32.xlu0 %v2424
        %v2426 = vpop.xlane.xlu0 %2425
        %v2427 = vrcp.pop %v2417
        %v2428 = vrcp.pop %v2420
        %v2429 = vrcp.pop %v2423
        %v2430 = vrcp.pop %v2426
        %v2431 = vmul.f32 %v2408, %v2427
        %v2432 = vmul.f32 %v2410, %v2428
        %v2433 = vmul.f32 %v2412, %v2429
        %v2434 = vmul.f32 %v2414, %v2430
        %v2435 = vpack.c.bf16 %v2432, %v2431
        %v2436 = vpack.c.bf16 %v2434, %v2433
        %2437 = vrot.lane.b32.xlu0 %v1551, 104
        %v2438 = vpop.permute.xlu0 %2437
        %v2441 = vsel %vm1652, %v2435, 0
        %2443 = vmatprep.subr.bf16.mxu0 0
        %2444 = vmatpush1.bf16.msra.mxu0 %v2438
        %2445 = vmatprep.subr.bf16.mxu0 0
        %2446 = vmatpush1.bf16.msra.mxu0 0
        %2447 = vmatprep.subr.bf16.mxu0 0
        %2448 = vmatpush1.bf16.msra.mxu0 0
        %2449 = vmatprep.subr.bf16.mxu0 0
        %2450 = vmatpush1.bf16.msra.mxu0 0
        %2451 = vmatprep.subr.bf16.mxu0 0
        %2452 = vmatpush1.bf16.msra.mxu0 0
        %2453 = vmatprep.subr.bf16.mxu0 0
        %2454 = vmatpush1.bf16.msra.mxu0 0
        %2455 = vmatprep.subr.bf16.mxu0 0
        %2456 = vmatpush1.bf16.msra.mxu0 0
        %2457 = vmatprep.subr.bf16.mxu0 0
        %2458 = vmatpush1.bf16.msra.mxu0 0
        %2459 = vmatprep.subr.bf16.mxu0 0
        %2460 = vmatpush1.bf16.msra.mxu0 0
        %2461 = vmatprep.subr.bf16.mxu0 0
        %2462 = vmatpush1.bf16.msra.mxu0 0
        %2463 = vmatprep.subr.bf16.mxu0 0
        %2464 = vmatpush1.bf16.msra.mxu0 0
        %2465 = vmatprep.subr.bf16.mxu0 0
        %2466 = vmatpush1.bf16.msra.mxu0 0
        %2467 = vmatprep.subr.bf16.mxu0 0
        %2468 = vmatpush1.bf16.msra.mxu0 0
        %2469 = vmatprep.subr.bf16.mxu0 0
        %2470 = vmatpush1.bf16.msra.mxu0 0
        %2471 = vmatprep.subr.bf16.mxu0 0
        %2472 = vmatpush1.bf16.msra.mxu0 0
        %2473 = vmatprep.subr.bf16.mxu0 0
        %2474 = vmatpush1.bf16.msra.mxu0 0
        %2475 = vmatprep.mubr.bf16.mxu0 0
        %2476 = vmatmul.mubr.bf16.gmra.mrb[0].mxu0 %v2441
        %v2477 = vpop.f32.mrb[0].mxu0
        %v2478 = vadd.f32 0.0, %v2477
        %v2479 = vpop.f32.mrb[0].mxu0
        %v2480 = vpop.f32.mrb[0].mxu0
        %v2481 = vadd.f32 0.0, %v2480
        %v2482 = vpop.f32.mrb[0].mxu0
        %2483 = vdwg.mxu0
        %2484 = vrot.lane.b32.xlu0 %v1552, 104
        %v2485 = vpop.permute.xlu0 %2484
        %v2488 = vsel %vm1652, %v2436, 0
        %2490 = vmatprep.subr.bf16.mxu0 0
        %2491 = vmatpush1.bf16.msra.mxu0 %v2485
        %2492 = vmatprep.subr.bf16.mxu0 0
        %2493 = vmatpush1.bf16.msra.mxu0 0
        %2494 = vmatprep.subr.bf16.mxu0 0
        %2495 = vmatpush1.bf16.msra.mxu0 0
        %2496 = vmatprep.subr.bf16.mxu0 0
        %2497 = vmatpush1.bf16.msra.mxu0 0
        %2498 = vmatprep.subr.bf16.mxu0 0
        %2499 = vmatpush1.bf16.msra.mxu0 0
        %2500 = vmatprep.subr.bf16.mxu0 0
        %2501 = vmatpush1.bf16.msra.mxu0 0
        %2502 = vmatprep.subr.bf16.mxu0 0
        %2503 = vmatpush1.bf16.msra.mxu0 0
        %2504 = vmatprep.subr.bf16.mxu0 0
        %2505 = vmatpush1.bf16.msra.mxu0 0
        %2506 = vmatprep.subr.bf16.mxu0 0
        %2507 = vmatpush1.bf16.msra.mxu0 0
        %2508 = vmatprep.subr.bf16.mxu0 0
        %2509 = vmatpush1.bf16.msra.mxu0 0
        %2510 = vmatprep.subr.bf16.mxu0 0
        %2511 = vmatpush1.bf16.msra.mxu0 0
        %2512 = vmatprep.subr.bf16.mxu0 0
        %2513 = vmatpush1.bf16.msra.mxu0 0
        %2514 = vmatprep.subr.bf16.mxu0 0
        %2515 = vmatpush1.bf16.msra.mxu0 0
        %2516 = vmatprep.subr.bf16.mxu0 0
        %2517 = vmatpush1.bf16.msra.mxu0 0
        %2518 = vmatprep.subr.bf16.mxu0 0
        %2519 = vmatpush1.bf16.msra.mxu0 0
        %2520 = vmatprep.subr.bf16.mxu0 0
        %2521 = vmatpush1.bf16.msra.mxu0 0
        %2522 = vmatprep.mubr.bf16.mxu0 0
        %2523 = vmatmul.mubr.bf16.gmra.mrb[0].mxu0 %v2488
        %v2524 = vpop.f32.mrb[0].mxu0
        %v2525 = vadd.f32 0.0, %v2524
        %v2526 = vpop.f32.mrb[0].mxu0
        %v2527 = vpop.f32.mrb[0].mxu0
        %v2528 = vadd.f32 0.0, %v2527
        %v2529 = vpop.f32.mrb[0].mxu0
        %2530 = vdwg.mxu0
        %2535 = vrot.lane.b32.xlu0 %v1985, 8
        %v2536 = vpop.permute.xlu0 %2535
        %2537 = vrot.lane.b32.xlu0 %v1988, 8
        %v2538 = vpop.permute.xlu0 %2537
        %2539 = vrot.lane.b32.xlu0 %v2033, 8
        %v2540 = vpop.permute.xlu0 %2539
        %2541 = vrot.lane.b32.xlu0 %v2036, 8
        %v2542 = vpop.permute.xlu0 %2541
        %2551 = vrot.lane.b32.xlu0 %v2232, 16
        %v2552 = vpop.permute.xlu0 %2551
        %2553 = vrot.lane.b32.xlu0 %v2235, 16
        %v2554 = vpop.permute.xlu0 %2553
        %2555 = vrot.lane.b32.xlu0 %v2279, 16
        %v2556 = vpop.permute.xlu0 %2555
        %2557 = vrot.lane.b32.xlu0 %v2282, 16
        %v2558 = vpop.permute.xlu0 %2557
        %2567 = vrot.lane.b32.xlu0 %v2478, 24
        %v2568 = vpop.permute.xlu0 %2567
        %2569 = vrot.lane.b32.xlu0 %v2481, 24
        %v2570 = vpop.permute.xlu0 %2569
        %2571 = vrot.lane.b32.xlu0 %v2525, 24
        %v2572 = vpop.permute.xlu0 %2571
        %2573 = vrot.lane.b32.xlu0 %v2528, 24
        %v2574 = vpop.permute.xlu0 %2573
        %v2579 = vsel %vm1553, %v1737, %v2536
        %v2580 = vsel %vm1553, %v1740, %v2538
        %v2581 = vsel %vm1553, %v1781, %v2540
        %v2582 = vsel %vm1553, %v1784, %v2542
        %v2583 = vsel %vm1652, %v2579, %v2552
        %v2584 = vsel %vm1652, %v2580, %v2554
        %v2585 = vsel %vm1652, %v2581, %v2556
        %v2586 = vsel %vm1652, %v2582, %v2558
        %vm2587 = vcmask 195584
        %v2588 = vsel %vm2587, %v2583, %v2568
        %v2589 = vsel %vm2587, %v2584, %v2570
        %v2590 = vsel %vm2587, %v2585, %v2572
        %v2591 = vsel %vm2587, %v2586, %v2574
        %v2592 = vpack.c.bf16 %v2589, %v2588
        %v2593 = vpack.c.bf16 %v2591, %v2590
        %v2594 = vld [vmem:[%s946] sm:$0xf]
        %v2595 = vld [vmem:[%s946 + $0x4] sm:$0xf]
        %v2596 = vld [vmem:[%s946 + $0x8] sm:$0xf]
        %v2597 = vld [vmem:[%s946 + $0xc] sm:$0xf]
        %v2602 = vunpack.c.l.b16 %v2594
        %v2603 = vunpack.c.l.b16 %v2595
        %v2604 = vunpack.c.l.b16 %v2596
        %v2605 = vunpack.c.l.b16 %v2597
        %v2606 = vpack.c.b16 %v2603, %v2602
        %v2607 = vpack.c.b16 %v2605, %v2604
        %v2611 = vsel %vm1249, %v2592, 0
        %v2614 = vsel %vm1249, %v2593, 0
        %2616 = vmatprep.subr.bf16.mxu0 0
        %2617 = vmatpush1.bf16.msra.mxu0 %v2606
        %2618 = vmatprep.subr.bf16.mxu0 0
        %2619 = vmatpush1.bf16.msra.mxu0 %v2607
        %2620 = vmatprep.subr.bf16.mxu0 0
        %2621 = vmatpush1.bf16.msra.mxu0 0
        %2622 = vmatprep.subr.bf16.mxu0 0
        %2623 = vmatpush1.bf16.msra.mxu0 0
        %2624 = vmatprep.subr.bf16.mxu0 0
        %2625 = vmatpush1.bf16.msra.mxu0 0
        %2626 = vmatprep.subr.bf16.mxu0 0
        %2627 = vmatpush1.bf16.msra.mxu0 0
        %2628 = vmatprep.subr.bf16.mxu0 0
        %2629 = vmatpush1.bf16.msra.mxu0 0
        %2630 = vmatprep.subr.bf16.mxu0 0
        %2631 = vmatpush1.bf16.msra.mxu0 0
        %2632 = vmatprep.subr.bf16.mxu0 0
        %2633 = vmatpush1.bf16.msra.mxu0 0
        %2634 = vmatprep.subr.bf16.mxu0 0
        %2635 = vmatpush1.bf16.msra.mxu0 0
        %2636 = vmatprep.subr.bf16.mxu0 0
        %2637 = vmatpush1.bf16.msra.mxu0 0
        %2638 = vmatprep.subr.bf16.mxu0 0
        %2639 = vmatpush1.bf16.msra.mxu0 0
        %2640 = vmatprep.subr.bf16.mxu0 0
        %2641 = vmatpush1.bf16.msra.mxu0 0
        %2642 = vmatprep.subr.bf16.mxu0 0
        %2643 = vmatpush1.bf16.msra.mxu0 0
        %2644 = vmatprep.subr.bf16.mxu0 0
        %2645 = vmatpush1.bf16.msra.mxu0 0
        %2646 = vmatprep.subr.bf16.mxu0 0
        %2647 = vmatpush1.bf16.msra.mxu0 0
        %2648 = vmatprep.mubr.bf16.mxu0 0
        %2649 = vmatmul.mubr.bf16.gmra.mrb[0].mxu0 %v2611
        %v2650 = vpop.f32.mrb[0].mxu0
        %v2651 = vadd.f32 0.0, %v2650
        %v2652 = vpop.f32.mrb[0].mxu0
        %v2653 = vpop.f32.mrb[0].mxu0
        %v2654 = vadd.f32 0.0, %v2653
        %v2655 = vpop.f32.mrb[0].mxu0
        %2656 = vmatprep.mubr.bf16.mxu0 0
        %2657 = vmatmul.mubr.bf16.gmra.mrb[0].mxu0 %v2614
        %v2658 = vpop.f32.mrb[0].mxu0
        %v2659 = vadd.f32 0.0, %v2658
        %v2660 = vpop.f32.mrb[0].mxu0
        %v2661 = vpop.f32.mrb[0].mxu0
        %v2662 = vadd.f32 0.0, %v2661
        %v2663 = vpop.f32.mrb[0].mxu0
        %2664 = vdwg.mxu0
        %v2665 = vadd.f32 %v1243, %v2651
        %v2666 = vadd.f32 %v1244, %v2654
        %v2667 = vadd.f32 %v1245, %v2659
        %v2668 = vadd.f32 %v1246, %v2662
        %v2669 = vld [vmem:[%s954] sm:$0x1]
        %v2671 = vlaneseq
        %v2672 = vshrl.u32 %v2671, 7
        %v2673 = vsub.s32 0, %v2672
        %v2674 = vrot.slane %v2669, %v2673
        %v2676 = vadd.f32 %v2665, %v2674
        %v2677 = vadd.f32 %v2666, %v2674
        %v2678 = vadd.f32 %v2667, %v2674
        %v2679 = vadd.f32 %v2668, %v2674
        %v2680 = vld [vmem:[%s962] sm:$0x1]
        %v2681 = vld [vmem:[%s970] sm:$0x1]
        %v2682 = vsel %vm1249, %v2676, 0.0
        %2683 = vadd.xlane.f32.xlu0 %v2682
        %v2684 = vpop.xlane.xlu0 %2683
        %v2685 = vsel %vm1249, %v2677, 0.0
        %2686 = vadd.xlane.f32.xlu0 %v2685
        %v2687 = vpop.xlane.xlu0 %2686
        %v2688 = vsel %vm1249, %v2678, 0.0
        %2689 = vadd.xlane.f32.xlu0 %v2688
        %v2690 = vpop.xlane.xlu0 %2689
        %v2691 = vsel %vm1249, %v2679, 0.0
        %2692 = vadd.xlane.f32.xlu0 %v2691
        %v2693 = vpop.xlane.xlu0 %2692
        %v2694 = vmul.f32 %v2684, %v1262
        %v2695 = vmul.f32 %v2687, %v1262
        %v2696 = vmul.f32 %v2690, %v1262
        %v2697 = vmul.f32 %v2693, %v1262
        %v2698 = vsub.f32 %v2676, %v2694
        %v2699 = vsub.f32 %v2677, %v2695
        %v2700 = vsub.f32 %v2678, %v2696
        %v2701 = vsub.f32 %v2679, %v2697
        %v2702 = vmul.f32 %v2698, %v2698
        %v2703 = vmul.f32 %v2699, %v2699
        %v2704 = vmul.f32 %v2700, %v2700
        %v2705 = vmul.f32 %v2701, %v2701
        %v2706 = vsel %vm1249, %v2702, 0.0
        %2707 = vadd.xlane.f32.xlu0 %v2706
        %v2708 = vpop.xlane.xlu0 %2707
        %v2709 = vsel %vm1249, %v2703, 0.0
        %2710 = vadd.xlane.f32.xlu0 %v2709
        %v2711 = vpop.xlane.xlu0 %2710
        %v2712 = vsel %vm1249, %v2704, 0.0
        %2713 = vadd.xlane.f32.xlu0 %v2712
        %v2714 = vpop.xlane.xlu0 %2713
        %v2715 = vsel %vm1249, %v2705, 0.0
        %2716 = vadd.xlane.f32.xlu0 %v2715
        %v2717 = vpop.xlane.xlu0 %2716
        %v2718 = vmul.f32 %v2708, %v1262
        %v2719 = vmul.f32 %v2711, %v1262
        %v2720 = vmul.f32 %v2714, %v1262
        %v2721 = vmul.f32 %v2717, %v1262
        %v2722 = vadd.f32 %v2718, 1e-06
        %v2723 = vadd.f32 %v2719, 1e-06
        %v2724 = vadd.f32 %v2720, 1e-06
        %v2725 = vadd.f32 %v2721, 1e-06
        %v2726 = vrsqrt.pop %v2722
        %v2727 = vrsqrt.pop %v2723
        %v2728 = vrsqrt.pop %v2724
        %v2729 = vrsqrt.pop %v2725
        %v2730 = vmul.f32 %v2698, %v2726
        %v2731 = vmul.f32 %v2699, %v2727
        %v2732 = vmul.f32 %v2700, %v2728
        %v2733 = vmul.f32 %v2701, %v2729
        %v2735 = vlaneseq
        %v2736 = vshrl.u32 %v2735, 7
        %v2737 = vsub.s32 0, %v2736
        %v2738 = vrot.slane %v2680, %v2737
        %v2740 = vmul.f32 %v2730, %v2738
        %v2741 = vmul.f32 %v2731, %v2738
        %v2742 = vmul.f32 %v2732, %v2738
        %v2743 = vmul.f32 %v2733, %v2738
        %v2745 = vlaneseq
        %v2746 = vshrl.u32 %v2745, 7
        %v2747 = vsub.s32 0, %v2746
        %v2748 = vrot.slane %v2681, %v2747
        %v2750 = vadd.f32 %v2740, %v2748
        %v2751 = vadd.f32 %v2741, %v2748
        %v2752 = vadd.f32 %v2742, %v2748
        %v2753 = vadd.f32 %v2743, %v2748
        %v2754 = vpack.c.bf16 %v2751, %v2750
        %v2755 = vpack.c.bf16 %v2753, %v2752
        %v2756 = vld [vmem:[%s1121] sm:$0xf]
        %v2757 = vld [vmem:[%s1121 + $0x4] sm:$0xf]
        %v2758 = vld [vmem:[%s1121 + $0x8] sm:$0xf]
        %v2759 = vld [vmem:[%s1121 + $0xc] sm:$0xf]
        %v2760 = vld [vmem:[%s1124] sm:$0x1]
        %v2762 = vlaneseq
        %v2763 = vshrl.u32 %v2762, 7
        %v2764 = vsub.s32 0, %v2763
        %v2765 = vrot.slane %v2760, %v2764
        %v2771 = vunpack.c.l.b16 %v2756
        %v2772 = vunpack.c.l.b16 %v2757
        %v2773 = vunpack.c.l.b16 %v2758
        %v2774 = vunpack.c.l.b16 %v2759
        %v2775 = vpack.c.b16 %v2772, %v2771
        %v2776 = vpack.c.b16 %v2774, %v2773
        %v2780 = vsel %vm1249, %v2754, 0
        %v2783 = vsel %vm1249, %v2755, 0
        %2785 = vmatprep.subr.bf16.mxu0 0
        %2786 = vmatpush1.bf16.msra.mxu0 %v2775
        %2787 = vmatprep.subr.bf16.mxu0 0
        %2788 = vmatpush1.bf16.msra.mxu0 %v2776
        %2789 = vmatprep.subr.bf16.mxu0 0
        %2790 = vmatpush1.bf16.msra.mxu0 0
        %2791 = vmatprep.subr.bf16.mxu0 0
        %2792 = vmatpush1.bf16.msra.mxu0 0
        %2793 = vmatprep.subr.bf16.mxu0 0
        %2794 = vmatpush1.bf16.msra.mxu0 0
        %2795 = vmatprep.subr.bf16.mxu0 0
        %2796 = vmatpush1.bf16.msra.mxu0 0
        %2797 = vmatprep.subr.bf16.mxu0 0
        %2798 = vmatpush1.bf16.msra.mxu0 0
        %2799 = vmatprep.subr.bf16.mxu0 0
        %2800 = vmatpush1.bf16.msra.mxu0 0
        %2801 = vmatprep.subr.bf16.mxu0 0
        %2802 = vmatpush1.bf16.msra.mxu0 0
        %2803 = vmatprep.subr.bf16.mxu0 0
        %2804 = vmatpush1.bf16.msra.mxu0 0
        %2805 = vmatprep.subr.bf16.mxu0 0
        %2806 = vmatpush1.bf16.msra.mxu0 0
        %2807 = vmatprep.subr.bf16.mxu0 0
        %2808 = vmatpush1.bf16.msra.mxu0 0
        %2809 = vmatprep.subr.bf16.mxu0 0
        %2810 = vmatpush1.bf16.msra.mxu0 0
        %2811 = vmatprep.subr.bf16.mxu0 0
        %2812 = vmatpush1.bf16.msra.mxu0 0
        %2813 = vmatprep.subr.bf16.mxu0 0
        %2814 = vmatpush1.bf16.msra.mxu0 0
        %2815 = vmatprep.subr.bf16.mxu0 0
        %2816 = vmatpush1.bf16.msra.mxu0 0
        %2817 = vmatprep.mubr.bf16.mxu0 0
        %2818 = vmatmul.mubr.bf16.gmra.mrb[0].mxu0 %v2780
        %v2819 = vpop.f32.mrb[0].mxu0
        %v2820 = vadd.f32 %v2765, %v2819
        %v2821 = vpop.f32.mrb[0].mxu0
        %v2822 = vpop.f32.mrb[0].mxu0
        %v2823 = vadd.f32 %v2765, %v2822
        %v2824 = vpop.f32.mrb[0].mxu0
        %2825 = vmatprep.mubr.bf16.mxu0 0
        %2826 = vmatmul.mubr.bf16.gmra.mrb[0].mxu0 %v2783
        %v2827 = vpop.f32.mrb[0].mxu0
        %v2828 = vadd.f32 %v2765, %v2827
        %v2829 = vpop.f32.mrb[0].mxu0
        %v2830 = vpop.f32.mrb[0].mxu0
        %v2831 = vadd.f32 %v2765, %v2830
        %v2832 = vpop.f32.mrb[0].mxu0
        %2833 = vdwg.mxu0
        %v2834 = vmul.f32 %v2820, 0.5
        %v2835 = vmul.f32 %v2823, 0.5
        %v2836 = vmul.f32 %v2828, 0.5
        %v2837 = vmul.f32 %v2831, 0.5
        %v2838 = vmul.f32 %v2820, 0.044715
        %v2839 = vmul.f32 %v2823, 0.044715
        %v2840 = vmul.f32 %v2828, 0.044715
        %v2841 = vmul.f32 %v2831, 0.044715
        %v2842 = vmul.f32 %v2838, %v2820
        %v2843 = vmul.f32 %v2839, %v2823
        %v2844 = vmul.f32 %v2840, %v2828
        %v2845 = vmul.f32 %v2841, %v2831
        %v2846 = vmul.f32 %v2842, %v2820
        %v2847 = vmul.f32 %v2843, %v2823
        %v2848 = vmul.f32 %v2844, %v2828
        %v2849 = vmul.f32 %v2845, %v2831
        %v2850 = vadd.f32 %v2820, %v2846
        %v2851 = vadd.f32 %v2823, %v2847
        %v2852 = vadd.f32 %v2828, %v2848
        %v2853 = vadd.f32 %v2831, %v2849
        %v2854 = vmul.f32 %v2850, 0.7978846
        %v2855 = vmul.f32 %v2851, 0.7978846
        %v2856 = vmul.f32 %v2852, 0.7978846
        %v2857 = vmul.f32 %v2853, 0.7978846
        %v2858 = vtanh.pop %v2854
        %v2859 = vtanh.pop %v2855
        %v2860 = vtanh.pop %v2856
        %v2861 = vtanh.pop %v2857
        %v2862 = vadd.f32 %v2858, 1.0
        %v2863 = vadd.f32 %v2859, 1.0
        %v2864 = vadd.f32 %v2860, 1.0
        %v2865 = vadd.f32 %v2861, 1.0
        %v2866 = vmul.f32 %v2834, %v2862
        %v2867 = vmul.f32 %v2835, %v2863
        %v2868 = vmul.f32 %v2836, %v2864
        %v2869 = vmul.f32 %v2837, %v2865
        %v2870 = vpack.c.bf16 %v2867, %v2866
        %v2871 = vpack.c.bf16 %v2869, %v2868
        %v2872 = vld [vmem:[%s1129] sm:$0xf]
        %v2873 = vld [vmem:[%s1129 + $0x4] sm:$0xf]
        %v2874 = vld [vmem:[%s1129 + $0x8] sm:$0xf]
        %v2875 = vld [vmem:[%s1129 + $0xc] sm:$0xf]
        %v2876 = vld [vmem:[%s1129 + $0x10] sm:$0xf]
        %v2877 = vld [vmem:[%s1129 + $0x14] sm:$0xf]
        %v2878 = vld [vmem:[%s1129 + $0x18] sm:$0xf]
        %v2879 = vld [vmem:[%s1129 + $0x1c] sm:$0xf]
        %v2888 = vunpack.c.l.b16 %v2872
        %v2889 = vunpack.c.l.b16 %v2873
        %v2890 = vunpack.c.l.b16 %v2874
        %v2891 = vunpack.c.l.b16 %v2875
        %v2892 = vunpack.c.l.b16 %v2876
        %v2893 = vunpack.c.l.b16 %v2877
        %v2894 = vunpack.c.l.b16 %v2878
        %v2895 = vunpack.c.l.b16 %v2879
        %v2896 = vpack.c.b16 %v2889, %v2888
        %v2897 = vpack.c.b16 %v2891, %v2890
        %v2898 = vpack.c.b16 %v2893, %v2892
        %v2899 = vpack.c.b16 %v2895, %v2894
        %vm2904 = vcmask 523264
        %v2906 = vsel %vm2904, %v2870, 0
        %v2909 = vsel %vm2904, %v2871, 0
        %2911 = vmatprep.subr.bf16.mxu0 0
        %2912 = vmatpush1.bf16.msra.mxu0 %v2896
        %2913 = vmatprep.subr.bf16.mxu0 0
        %2914 = vmatpush1.bf16.msra.mxu0 %v2897
        %2915 = vmatprep.subr.bf16.mxu0 0
        %2916 = vmatpush1.bf16.msra.mxu0 %v2898
        %2917 = vmatprep.subr.bf16.mxu0 0
        %2918 = vmatpush1.bf16.msra.mxu0 %v2899
        %2919 = vmatprep.subr.bf16.mxu0 0
        %2920 = vmatpush1.bf16.msra.mxu0 0
        %2921 = vmatprep.subr.bf16.mxu0 0
        %2922 = vmatpush1.bf16.msra.mxu0 0
        %2923 = vmatprep.subr.bf16.mxu0 0
        %2924 = vmatpush1.bf16.msra.mxu0 0
        %2925 = vmatprep.subr.bf16.mxu0 0
        %2926 = vmatpush1.bf16.msra.mxu0 0
        %2927 = vmatprep.subr.bf16.mxu0 0
        %2928 = vmatpush1.bf16.msra.mxu0 0
        %2929 = vmatprep.subr.bf16.mxu0 0
        %2930 = vmatpush1.bf16.msra.mxu0 0
        %2931 = vmatprep.subr.bf16.mxu0 0
        %2932 = vmatpush1.bf16.msra.mxu0 0
        %2933 = vmatprep.subr.bf16.mxu0 0
        %2934 = vmatpush1.bf16.msra.mxu0 0
        %2935 = vmatprep.subr.bf16.mxu0 0
        %2936 = vmatpush1.bf16.msra.mxu0 0
        %2937 = vmatprep.subr.bf16.mxu0 0
        %2938 = vmatpush1.bf16.msra.mxu0 0
        %2939 = vmatprep.subr.bf16.mxu0 0
        %2940 = vmatpush1.bf16.msra.mxu0 0
        %2941 = vmatprep.subr.bf16.mxu0 0
        %2942 = vmatpush1.bf16.msra.mxu0 0
        %2943 = vmatprep.mubr.bf16.mxu0 0
        %2944 = vmatmul.mubr.bf16.gmra.mrb[0].mxu0 %v2906
        %v2945 = vpop.f32.mrb[0].mxu0
        %v2946 = vadd.f32 0.0, %v2945
        %v2947 = vpop.f32.mrb[0].mxu0
        %v2948 = vpop.f32.mrb[0].mxu0
        %v2949 = vadd.f32 0.0, %v2948
        %v2950 = vpop.f32.mrb[0].mxu0
        %2951 = vmatprep.mubr.bf16.mxu0 0
        %2952 = vmatmul.mubr.bf16.gmra.mrb[0].mxu0 %v2909
        %v2953 = vpop.f32.mrb[0].mxu0
        %v2954 = vadd.f32 0.0, %v2953
        %v2955 = vpop.f32.mrb[0].mxu0
        %v2956 = vpop.f32.mrb[0].mxu0
        %v2957 = vadd.f32 0.0, %v2956
        %v2958 = vpop.f32.mrb[0].mxu0
        %2959 = vdwg.mxu0
        %v2960 = vadd.f32 %v2676, %v2946
        %v2961 = vadd.f32 %v2677, %v2949
        %v2962 = vadd.f32 %v2678, %v2954
        %v2963 = vadd.f32 %v2679, %v2957
        %v2964 = vld [vmem:[%s1132] sm:$0x1]
        %v2966 = vlaneseq
        %v2967 = vshrl.u32 %v2966, 7
        %v2968 = vsub.s32 0, %v2967
        %v2969 = vrot.slane %v2964, %v2968
        %v2971 = vadd.f32 %v2960, %v2969
        %v2972 = vadd.f32 %v2961, %v2969
        %v2973 = vadd.f32 %v2962, %v2969
        %v2974 = vadd.f32 %v2963, %v2969
        %2975 = vst.msk [vmem:[#allocation2] sm:$0xff] %vm1249, %v2971
        %2976 = vst.msk [vmem:[#allocation2 + $0x8] sm:$0xff] %vm1249, %v2972
        %2977 = vst.msk [vmem:[#allocation2 + $0x10] sm:$0xff] %vm1249, %v2973
        %2978 = vst.msk [vmem:[#allocation2 + $0x18] sm:$0xff] %vm1249, %v2974
        %p2979 = scmp.eq.s32.totalorder %s41, 1
        // Predicated region
        $region157: #{tpu_custom_call.1} parent=107 // pred_check
          %p2980 = pneg %p2979
        $region158: #{tpu_custom_call.1} parent=107 // pred_check_branch
          %2982 = sbr.rel (%p2980) target = $region160
        $region159: #{tpu_custom_call.1} parent=107 // pred_region
          %v2983 = vld [vmem:[%s20] sm:$0x1]
          %v2984 = vld [vmem:[%s21] sm:$0x1]
          %v2985 = vsel %vm1249, %v2971, 0.0
          %2986 = vadd.xlane.f32.xlu0 %v2985
          %v2987 = vpop.xlane.xlu0 %2986
          %v2988 = vsel %vm1249, %v2972, 0.0
          %2989 = vadd.xlane.f32.xlu0 %v2988
          %v2990 = vpop.xlane.xlu0 %2989
          %v2991 = vsel %vm1249, %v2973, 0.0
          %2992 = vadd.xlane.f32.xlu0 %v2991
          %v2993 = vpop.xlane.xlu0 %2992
          %v2994 = vsel %vm1249, %v2974, 0.0
          %2995 = vadd.xlane.f32.xlu0 %v2994
          %v2996 = vpop.xlane.xlu0 %2995
          %v2997 = vmul.f32 %v2987, %v1262
          %v2998 = vmul.f32 %v2990, %v1262
          %v2999 = vmul.f32 %v2993, %v1262
          %v3000 = vmul.f32 %v2996, %v1262
          %v3001 = vsub.f32 %v2971, %v2997
          %v3002 = vsub.f32 %v2972, %v2998
          %v3003 = vsub.f32 %v2973, %v2999
          %v3004 = vsub.f32 %v2974, %v3000
          %v3005 = vmul.f32 %v3001, %v3001
          %v3006 = vmul.f32 %v3002, %v3002
          %v3007 = vmul.f32 %v3003, %v3003
          %v3008 = vmul.f32 %v3004, %v3004
          %v3009 = vsel %vm1249, %v3005, 0.0
          %3010 = vadd.xlane.f32.xlu0 %v3009
          %v3011 = vpop.xlane.xlu0 %3010
          %v3012 = vsel %vm1249, %v3006, 0.0
          %3013 = vadd.xlane.f32.xlu0 %v3012
          %v3014 = vpop.xlane.xlu0 %3013
          %v3015 = vsel %vm1249, %v3007, 0.0
          %3016 = vadd.xlane.f32.xlu0 %v3015
          %v3017 = vpop.xlane.xlu0 %3016
          %v3018 = vsel %vm1249, %v3008, 0.0
          %3019 = vadd.xlane.f32.xlu0 %v3018
          %v3020 = vpop.xlane.xlu0 %3019
          %v3021 = vmul.f32 %v3011, %v1262
          %v3022 = vmul.f32 %v3014, %v1262
          %v3023 = vmul.f32 %v3017, %v1262
          %v3024 = vmul.f32 %v3020, %v1262
          %v3025 = vadd.f32 %v3021, 1e-06
          %v3026 = vadd.f32 %v3022, 1e-06
          %v3027 = vadd.f32 %v3023, 1e-06
          %v3028 = vadd.f32 %v3024, 1e-06
          %v3029 = vrsqrt.pop %v3025
          %v3030 = vrsqrt.pop %v3026
          %v3031 = vrsqrt.pop %v3027
          %v3032 = vrsqrt.pop %v3028
          %v3033 = vmul.f32 %v3001, %v3029
          %v3034 = vmul.f32 %v3002, %v3030
          %v3035 = vmul.f32 %v3003, %v3031
          %v3036 = vmul.f32 %v3004, %v3032
          %v3038 = vlaneseq
          %v3039 = vshrl.u32 %v3038, 7
          %v3040 = vsub.s32 0, %v3039
          %v3041 = vrot.slane %v2983, %v3040
          %v3043 = vmul.f32 %v3033, %v3041
          %v3044 = vmul.f32 %v3034, %v3041
          %v3045 = vmul.f32 %v3035, %v3041
          %v3046 = vmul.f32 %v3036, %v3041
          %v3048 = vlaneseq
          %v3049 = vshrl.u32 %v3048, 7
          %v3050 = vsub.s32 0, %v3049
          %v3051 = vrot.slane %v2984, %v3050
          %v3053 = vadd.f32 %v3043, %v3051
          %v3054 = vadd.f32 %v3044, %v3051
          %v3055 = vadd.f32 %v3045, %v3051
          %v3056 = vadd.f32 %v3046, %v3051
          %v3057 = vpack.c.bf16 %v3054, %v3053
          %v3058 = vpack.c.bf16 %v3056, %v3055
          %v3061 = vunpack.c.l.b16 %v3057
          %v3062 = vunpack.c.h.b16 %v3057
          %v3063 = vunpack.c.l.b16 %v3058
          %v3064 = vunpack.c.h.b16 %v3058
          %v3065 = vpack.c.b16 %v3061, %v3061
          %v3066 = vpack.c.b16 %v3062, %v3062
          %v3067 = vpack.c.b16 %v3063, %v3063
          %v3068 = vpack.c.b16 %v3064, %v3064
          %vm3073 = vcmask 257024
          %3074 = vst.msk [vmem:[#allocation17] sm:$0xf] %vm3073, %v3065
          %3075 = vst.msk [vmem:[#allocation17 + $0x4] sm:$0xf] %vm3073, %v3066
          %3076 = vst.msk [vmem:[#allocation17 + $0x8] sm:$0xf] %vm3073, %v3067
          %3077 = vst.msk [vmem:[#allocation17 + $0xc] sm:$0xf] %vm3073, %v3068
        $region160: #{tpu_custom_call.1} parent=107 // pred_fallthru
          _
        // Predicated region
        $region161: #{tpu_custom_call.1} parent=107 // pred_check
          %p3078 = pneg %p613
        $region162: #{tpu_custom_call.1} parent=107 // pred_check_branch
          %3080 = sbr.rel (%p3078) target = $region164
        $region163: #{tpu_custom_call.1} parent=107 // pred_region
          %s3081 = smul.u32 2, %s40
          %s3083 = ssub.s32 256, 256
          %3084 = vsyncadd [#allocation5], %s3083
          %s3085 = smul.addr %s3081, 2
          %s3086 = smul.addr %s3085, 64
          %s3087 = scalar_lea.hbm %s22, %s3086
          %s3088 = sshll.u32 [#allocation17], 4
          %s3089 = int_to_ptr.vmem [resolvable:$true] %s3088
          %3094 = dma.vmem_to_hbm [thread:$0]  %s3089, 256, %s3087, [#allocation5], 64, 64, 4
        $region164: #{tpu_custom_call.1} parent=107 // pred_fallthru
          _
        // Predicated region
        $region165: #{tpu_custom_call.1} parent=107 // pred_check
          %p3095 = pneg %p613
        $region166: #{tpu_custom_call.1} parent=107 // pred_check_branch
          %3097 = sbr.rel (%p3095) target = $region168
        $region167: #{tpu_custom_call.1} parent=107 // pred_region
          %3098 = dma.done [#allocation5], 256
        $region168: #{tpu_custom_call.1} parent=107 // pred_fallthru
          _
      $region108: #{tpu_custom_call.1} parent=5 // pred_fallthru
        _
      %p3099 = scmp.le.s32.totalorder 2, %s31
      // Predicated region
      $region169: #{tpu_custom_call.1} parent=5 // pred_check
        %p3100 = pneg %p3099
      $region170: #{tpu_custom_call.1} parent=5 // pred_check_branch
        %3102 = sbr.rel (%p3100) target = $region172
      $region171: #{tpu_custom_call.1} parent=5 // pred_region
        %s3103 = ssub.s32 %s31, 2
      $region172: #{tpu_custom_call.1} parent=5 // pred_fallthru
        _
    $region6: #{tpu_custom_call.1} parent=1 // loop_footer
      %s35 = sadd.s32 1, %s31
    $region7: #{tpu_custom_call.1} parent=1 // loop_footer_branch
      %30 = sbr.rel target = $region3
    $region8: #{tpu_custom_call.1} parent=1 // loop_exit
      _
    %3104 = vsyncpa [#allocation4], 1
    %s3105 = scalar_lea.sflag [#allocation4], 1
    %3106 = vsyncpa %s3105, 1
    %3107 = vsyncpa [#allocation7], 1
    %3108 = vsyncpa [#allocation5], 1
    %s3109 = scalar_lea.sflag [#allocation5], 1
    %3110 = vsyncpa %s3109, 1

</llo_original>
